<compile_context>
chip_gen: v6e
topology: v6e:2x2x1
jax: 0.10.0
libtpu: 0.0.40
codegen_flags: <defaults>
</compile_context>

<pallas_src>
import numpy as np
import jax
import jax.numpy as jnp
from jax.experimental import pallas as pl
from jax.experimental.pallas import tpu as pltpu

LN_EPS = 1e-5  # nn.LayerNorm default


def _layernorm(x, w, b):
    # x: (rows, D) f32, w/b: (1, D) f32 -- all statistics in f32
    mu = jnp.mean(x, axis=-1, keepdims=True)
    var = jnp.mean((x - mu) ** 2, axis=-1, keepdims=True)
    return (x - mu) * jax.lax.rsqrt(var + LN_EPS) * w + b


# ----------------------------- fused Pallas kernel --------------------------

def fused_transformer_kernel(x_ref, pos_ref,
                             wqkv_ref, bqkv_ref, wo_ref, bo_ref,
                             ln1w_ref, ln1b_ref, w1_ref, b1_ref, w2_ref, b2_ref,
                             ln2w_ref, ln2b_ref, o_ref):
    """Whole forward: (x + pos) -> depth x [MHA(1 head) -> LN1 -> MLP -> +res -> LN2].

    Activation layout inside the kernel is (N, S, D) where N = timepoints+1 (the
    attention "batch" axis) and S = batch (the axis attention mixes over).
    """
    N, S, D = x_ref.shape
    depth = wqkv_ref.shape[0]
    scale = 1.0 / float(D) ** 0.5  # head_dim == D for num_heads == 1

    # positional embedding add, broadcast over S (pos is (N, 1, D))
    a = x_ref[...] + pos_ref[...]                      # (N, S, D) f32

    for l in range(depth):                             # small depth -> unroll
        a2 = a.reshape(N * S, D)

        # in_proj: qkv = x @ W_in (pre-transposed on host to (D, 3D)), bf16 MXU, f32 acc
        qkv = jnp.dot(a2.astype(jnp.bfloat16), wqkv_ref[l],
                      preferred_element_type=jnp.float32) + bqkv_ref[l]   # (N*S, 3D) f32
        q = qkv[:, :D].reshape(N, S, D)
        k = qkv[:, D:2 * D].reshape(N, S, D)
        v = qkv[:, 2 * D:].reshape(N, S, D)

        # attention over the S axis, batched over N -- natural dot_general layouts,
        # no transposes needed.
        scores = jnp.einsum('nsd,ntd->nst',
                            q.astype(jnp.bfloat16), k.astype(jnp.bfloat16),
                            preferred_element_type=jnp.float32) * scale    # (N, S, S) f32
        m = jnp.max(scores, axis=-1, keepdims=True)
        e = jnp.exp(scores - m)
        denom = jnp.sum(e, axis=-1, keepdims=True)
        p = e * pl.reciprocal(denom, approx=True)                          # softmax (f32)

        ctx = jnp.einsum('nst,ntd->nsd',
                         p.astype(jnp.bfloat16), v.astype(jnp.bfloat16),
                         preferred_element_type=jnp.float32)               # (N, S, D) f32
        attn = ctx.reshape(N * S, D)

        # out_proj (weight pre-transposed to (D, D))
        attn = jnp.dot(attn.astype(jnp.bfloat16), wo_ref[l],
                       preferred_element_type=jnp.float32) + bo_ref[l]

        # layer_norm1 (no residual before it, matching the PyTorch forward)
        y = _layernorm(attn, ln1w_ref[l], ln1b_ref[l])

        # MLP: Linear -> ReLU -> (Dropout=id) -> Linear, then residual + layer_norm2
        h = jnp.dot(y.astype(jnp.bfloat16), w1_ref[l],
                    preferred_element_type=jnp.float32) + b1_ref[l]
        h = jnp.maximum(h, 0.0)
        m2 = jnp.dot(h.astype(jnp.bfloat16), w2_ref[l],
                     preferred_element_type=jnp.float32) + b2_ref[l]
        z = _layernorm(y + m2, ln2w_ref[l], ln2b_ref[l])

        a = z.reshape(N, S, D)

    o_ref[...] = a


# ----------------------------- wrappers --------------------------------------

def pack_params(params):
    """Host-side one-time prep: stack per-layer weights, pre-transpose for
    jnp.dot(x, w) (no in-kernel .T), cast matmul weights to bf16."""
    L = params['layers']

    def stk(name, transpose=False, dtype=None):
        arrs = [l[name] for l in L]
        if transpose:
            arrs = [a.T for a in arrs]
        out = jnp.stack(arrs, axis=0)
        if dtype is not None:
            out = out.astype(dtype)
        return out

    return {
        'w_qkv': stk('w_qkv', transpose=True, dtype=jnp.bfloat16),  # (depth, D, 3D)
        'b_qkv': stk('b_qkv'),                                      # (depth, 1, 3D)
        'w_out': stk('w_out', transpose=True, dtype=jnp.bfloat16),  # (depth, D, D)
        'b_out': stk('b_out'),                                      # (depth, 1, D)
        'ln1_w': stk('ln1_w'), 'ln1_b': stk('ln1_b'),               # (depth, 1, D)
        'w1':    stk('w1', transpose=True, dtype=jnp.bfloat16),     # (depth, D, H)
        'b1':    stk('b1'),                                         # (depth, 1, H)
        'w2':    stk('w2', transpose=True, dtype=jnp.bfloat16),     # (depth, H, D)
        'b2':    stk('b2'),                                         # (depth, 1, D)
        'ln2_w': stk('ln2_w'), 'ln2_b': stk('ln2_b'),               # (depth, 1, D)
    }


def transformer_forward(x, sampling_endpoints, params, packed):
    b, T, D = x.shape
    assert D % 128 == 0, "num_nodes must be a multiple of 128 (lane-aligned qkv slices)"

    cls = jnp.broadcast_to(params['cls_token'], (b, 1, D))
    xcat = jnp.concatenate([cls, x], axis=1)                        # (b, T+1, D)

    # One-time layout swap OUTSIDE the kernel: keep (T+1, b, D) inside so the
    # batched attention einsums need no in-kernel transposes.
    x_nsd = jnp.transpose(xcat, (1, 0, 2)).astype(jnp.float32)      # (T+1, b, D)
    pos = jnp.transpose(params['pos_embedding'][:, :T + 1], (1, 0, 2))  # (T+1, 1, D)
    # self.dropout(y): identity in eval mode

    args = (x_nsd, pos,
            packed['w_qkv'], packed['b_qkv'], packed['w_out'], packed['b_out'],
            packed['ln1_w'], packed['ln1_b'], packed['w1'], packed['b1'],
            packed['w2'], packed['b2'], packed['ln2_w'], packed['ln2_b'])

    y = pl.pallas_call(
        fused_transformer_kernel,
        out_shape=jax.ShapeDtypeStruct((T + 1, b, D), jnp.float32),
        in_specs=[pl.BlockSpec(memory_space=pltpu.MemorySpace.VMEM)] * len(args),
        out_specs=pl.BlockSpec(memory_space=pltpu.MemorySpace.VMEM),
    )(*args)

    y = jnp.transpose(y, (1, 0, 2))                                 # (b, T+1, D)
    idx = jnp.asarray(np.array(sampling_endpoints) + 1, dtype=jnp.int32)
    return jnp.take(y, idx, axis=1)


# ----------------------------- reference (plain JAX, f32) --------------------

def _ref_layer(x, p):
    S, N, D = x.shape
    x2 = x.reshape(S * N, D)
    qkv = x2 @ p['w_qkv'].T + p['b_qkv']
    q = qkv[:, :D].reshape(S, N, D)
    k = qkv[:, D:2 * D].reshape(S, N, D)
    v = qkv[:, 2 * D:].reshape(S, N, D)
    scores = jnp.einsum('snd,tnd->nst', q, k) / jnp.sqrt(jnp.float32(D))
    pa = jax.nn.softmax(scores, axis=-1)
    attn = jnp.einsum('nst,tnd->snd', pa, v).reshape(S * N, D)
    attn = attn @ p['w_out'].T + p['b_out']

    def ln(u, w, bb):
        mu = u.mean(-1, keepdims=True)
        var = ((u - mu) ** 2).mean(-1, keepdims=True)
        return (u - mu) / jnp.sqrt(var + LN_EPS) * w + bb

    y = ln(attn, p['ln1_w'], p['ln1_b'])
    h = jnp.maximum(y @ p['w1'].T + p['b1'], 0.0)
    z = ln(y + (h @ p['w2'].T + p['b2']), p['ln2_w'], p['ln2_b'])
    return z.reshape(S, N, D)


def reference_forward(x, sampling_endpoints, params):
    b, T, D = x.shape
    cls = jnp.broadcast_to(params['cls_token'], (b, 1, D))
    y = jnp.concatenate([cls, x], axis=1) + params['pos_embedding'][:, :T + 1]
    for lp in params['layers']:
        y = _ref_layer(y, lp)
    idx = jnp.asarray(np.array(sampling_endpoints) + 1, dtype=jnp.int32)
    return jnp.take(y, idx, axis=1)


# ----------------------------- params ----------------------------------------

def init_params(key, depth, timepoints, num_nodes, hidden_dim):
    D, H = num_nodes, hidden_dim
    keys = jax.random.split(key, 2 + depth)
    params = {
        'pos_embedding': jax.random.normal(keys[0], (1, timepoints + 1, D), jnp.float32),
        'cls_token': jax.random.normal(keys[1], (1, 1, D), jnp.float32),
        'layers': [],
    }
    s = 0.05
    for i in range(depth):
        lk = jax.random.split(keys[2 + i], 4)
        params['layers'].append({
            'w_qkv': s * jax.random.normal(lk[0], (3 * D, D), jnp.float32),
            'b_qkv': jnp.zeros((1, 3 * D), jnp.float32),
            'w_out': s * jax.random.normal(lk[1], (D, D), jnp.float32),
            'b_out': jnp.zeros((1, D), jnp.float32),
            'ln1_w': jnp.ones((1, D), jnp.float32),
            'ln1_b': jnp.zeros((1, D), jnp.float32),
            'w1': s * jax.random.normal(lk[2], (H, D), jnp.float32),
            'b1': 0.01 * jnp.ones((1, H), jnp.float32),
            'w2': s * jax.random.normal(lk[3], (D, H), jnp.float32),
            'b2': 0.01 * jnp.ones((1, D), jnp.float32),
            'ln2_w': jnp.ones((1, D), jnp.float32),
            'ln2_b': jnp.zeros((1, D), jnp.float32),
        })
    return params


# ----------------------------- main -------------------------------------------

if __name__ == "__main__":
    depth = 2
    timepoints = 7          # seq length inside layers is timepoints + 1 = 8
    num_nodes = 128         # embed dim (lane-aligned)
    hidden_dim = 128
    batch = 8

    key = jax.random.PRNGKey(0)
    pkey, xkey = jax.random.split(key)
    params = init_params(pkey, depth, timepoints, num_nodes, hidden_dim)
    packed = pack_params(params)
    x = jax.random.normal(xkey, (batch, timepoints, num_nodes), jnp.float32)
    sampling_endpoints = (1, 3, 6)

    fwd = jax.jit(transformer_forward, static_argnums=(1,))
    out = fwd(x, sampling_endpoints, params, packed)
    out = jax.block_until_ready(out)

    ref = reference_forward(x, sampling_endpoints, params)
    assert out.shape == (batch, len(sampling_endpoints), num_nodes), out.shape
    # Tolerance loosened slightly vs. pure-f32: projection matmuls run in bf16 on the
    # MXU (with f32 accumulation); LayerNorm/softmax statistics stay in f32.
    np.testing.assert_allclose(np.asarray(out), np.asarray(ref), atol=5e-2, rtol=5e-2)

    print("KERNEL_OK")
</pallas_src>

<mosaic_0001>
module attributes {stable_mosaic.version = 11 : i64} {
  func.func @fused_transformer_kernel(%arg0: memref<8x8x128xf32, #tpu.memory_space<vmem>>, %arg1: memref<8x1x128xf32, #tpu.memory_space<vmem>>, %arg2: memref<2x128x384xbf16, #tpu.memory_space<vmem>>, %arg3: memref<2x1x384xf32, #tpu.memory_space<vmem>>, %arg4: memref<2x128x128xbf16, #tpu.memory_space<vmem>>, %arg5: memref<2x1x128xf32, #tpu.memory_space<vmem>>, %arg6: memref<2x1x128xf32, #tpu.memory_space<vmem>>, %arg7: memref<2x1x128xf32, #tpu.memory_space<vmem>>, %arg8: memref<2x128x128xbf16, #tpu.memory_space<vmem>>, %arg9: memref<2x1x128xf32, #tpu.memory_space<vmem>>, %arg10: memref<2x128x128xbf16, #tpu.memory_space<vmem>>, %arg11: memref<2x1x128xf32, #tpu.memory_space<vmem>>, %arg12: memref<2x1x128xf32, #tpu.memory_space<vmem>>, %arg13: memref<2x1x128xf32, #tpu.memory_space<vmem>>, %arg14: memref<8x8x128xf32, #tpu.memory_space<vmem>>) attributes {dimension_semantics = [], scalar_prefetch = 0 : i64, scratch_operands = 0 : i64, tpu.core_type = #tpu.core_type<tc>} {
    %c0 = arith.constant 0 : index
    %c0_0 = arith.constant 0 : index
    %c0_1 = arith.constant 0 : index
    %0 = vector.load %arg0[%c0, %c0_0, %c0_1] : memref<8x8x128xf32, #tpu.memory_space<vmem>>, vector<8x8x128xf32>
    %c0_2 = arith.constant 0 : index
    %c0_3 = arith.constant 0 : index
    %c0_4 = arith.constant 0 : index
    %1 = vector.load %arg1[%c0_2, %c0_3, %c0_4] : memref<8x1x128xf32, #tpu.memory_space<vmem>>, vector<8x1x128xf32>
    %2 = vector.broadcast %1 : vector<8x1x128xf32> to vector<8x8x128xf32>
    %3 = arith.addf %0, %2 : vector<8x8x128xf32>
    %4 = vector.shape_cast %3 : vector<8x8x128xf32> to vector<64x128xf32>
    %5 = arith.truncf %4 : vector<64x128xf32> to vector<64x128xbf16>
    %c0_5 = arith.constant 0 : index
    %c0_6 = arith.constant 0 : index
    %c0_7 = arith.constant 0 : index
    %6 = vector.load %arg2[%c0_5, %c0_6, %c0_7] : memref<2x128x384xbf16, #tpu.memory_space<vmem>>, vector<1x128x384xbf16>
    %7 = vector.shape_cast %6 : vector<1x128x384xbf16> to vector<128x384xbf16>
    %cst = arith.constant dense<0.000000e+00> : vector<64x384xf32>
    %8 = tpu.matmul %5, %7, %cst {dimension_numbers = #tpu.dot_dimension_numbers<[1], [0], [0], [1], [0, 0, 1, 1], [], []>} : vector<64x128xbf16>, vector<128x384xbf16>, vector<64x384xf32> -> vector<64x384xf32>
    %c0_8 = arith.constant 0 : index
    %c0_9 = arith.constant 0 : index
    %c0_10 = arith.constant 0 : index
    %9 = vector.load %arg3[%c0_8, %c0_9, %c0_10] : memref<2x1x384xf32, #tpu.memory_space<vmem>>, vector<1x1x384xf32>
    %10 = vector.shape_cast %9 : vector<1x1x384xf32> to vector<1x384xf32>
    %11 = vector.broadcast %10 : vector<1x384xf32> to vector<64x384xf32>
    %12 = arith.addf %8, %11 : vector<64x384xf32>
    %13 = vector.extract_strided_slice %12 {offsets = [0, 0], sizes = [64, 128], strides = [1, 1]} : vector<64x384xf32> to vector<64x128xf32>
    %14 = vector.shape_cast %13 : vector<64x128xf32> to vector<8x8x128xf32>
    %15 = vector.extract_strided_slice %12 {offsets = [0, 128], sizes = [64, 128], strides = [1, 1]} : vector<64x384xf32> to vector<64x128xf32>
    %16 = vector.shape_cast %15 : vector<64x128xf32> to vector<8x8x128xf32>
    %17 = vector.extract_strided_slice %12 {offsets = [0, 256], sizes = [64, 128], strides = [1, 1]} : vector<64x384xf32> to vector<64x128xf32>
    %18 = vector.shape_cast %17 : vector<64x128xf32> to vector<8x8x128xf32>
    %19 = arith.truncf %14 : vector<8x8x128xf32> to vector<8x8x128xbf16>
    %20 = arith.truncf %16 : vector<8x8x128xf32> to vector<8x8x128xbf16>
    "tpu.trace_start"() <{level = 10 : i32, message = "nsd,ntd->nst"}> : () -> ()
    %cst_11 = arith.constant dense<0.000000e+00> : vector<8x8x8xf32>
    %21 = tpu.matmul %19, %20, %cst_11 {dimension_numbers = #tpu.dot_dimension_numbers<[2], [2], [1], [1], [0, 0, 0, 1, 1, 1], [0], [0]>} : vector<8x8x128xbf16>, vector<8x8x128xbf16>, vector<8x8x8xf32> -> vector<8x8x8xf32>
    "tpu.trace_stop"() : () -> ()
    %cst_12 = arith.constant 0.0883883461 : f32
    %22 = vector.broadcast %cst_12 : f32 to vector<8x8x8xf32>
    %23 = arith.mulf %21, %22 : vector<8x8x8xf32>
    %cst_13 = arith.constant dense<0xFF800000> : vector<8x8xf32>
    %24 = vector.multi_reduction <maximumf>, %23, %cst_13 [2] : vector<8x8x8xf32> to vector<8x8xf32>
    %25 = vector.shape_cast %24 : vector<8x8xf32> to vector<8x8x1xf32>
    %26 = vector.broadcast %25 : vector<8x8x1xf32> to vector<8x8x8xf32>
    %27 = arith.subf %23, %26 : vector<8x8x8xf32>
    %28 = math.exp %27 : vector<8x8x8xf32>
    %cst_14 = arith.constant dense<0.000000e+00> : vector<8x8xf32>
    %29 = vector.multi_reduction <add>, %28, %cst_14 [2] : vector<8x8x8xf32> to vector<8x8xf32>
    %30 = vector.shape_cast %29 : vector<8x8xf32> to vector<8x8x1xf32>
    %31 = tpu.reciprocal %30 {approx = true} : vector<8x8x1xf32> -> vector<8x8x1xf32>
    %32 = vector.broadcast %31 : vector<8x8x1xf32> to vector<8x8x8xf32>
    %33 = arith.mulf %28, %32 : vector<8x8x8xf32>
    %34 = arith.truncf %33 : vector<8x8x8xf32> to vector<8x8x8xbf16>
    %35 = arith.truncf %18 : vector<8x8x128xf32> to vector<8x8x128xbf16>
    "tpu.trace_start"() <{level = 10 : i32, message = "nst,ntd->nsd"}> : () -> ()
    %cst_15 = arith.constant dense<0.000000e+00> : vector<8x8x128xf32>
    %36 = tpu.matmul %34, %35, %cst_15 {dimension_numbers = #tpu.dot_dimension_numbers<[2], [1], [1], [2], [0, 0, 0, 1, 1, 2], [0], [0]>} : vector<8x8x8xbf16>, vector<8x8x128xbf16>, vector<8x8x128xf32> -> vector<8x8x128xf32>
    "tpu.trace_stop"() : () -> ()
    %37 = vector.shape_cast %36 : vector<8x8x128xf32> to vector<64x128xf32>
    %38 = arith.truncf %37 : vector<64x128xf32> to vector<64x128xbf16>
    %c0_16 = arith.constant 0 : index
    %c0_17 = arith.constant 0 : index
    %c0_18 = arith.constant 0 : index
    %39 = vector.load %arg4[%c0_16, %c0_17, %c0_18] : memref<2x128x128xbf16, #tpu.memory_space<vmem>>, vector<1x128x128xbf16>
    %40 = vector.shape_cast %39 : vector<1x128x128xbf16> to vector<128x128xbf16>
    %cst_19 = arith.constant dense<0.000000e+00> : vector<64x128xf32>
    %41 = tpu.matmul %38, %40, %cst_19 {dimension_numbers = #tpu.dot_dimension_numbers<[1], [0], [0], [1], [0, 0, 1, 1], [], []>} : vector<64x128xbf16>, vector<128x128xbf16>, vector<64x128xf32> -> vector<64x128xf32>
    %c0_20 = arith.constant 0 : index
    %c0_21 = arith.constant 0 : index
    %c0_22 = arith.constant 0 : index
    %42 = vector.load %arg5[%c0_20, %c0_21, %c0_22] : memref<2x1x128xf32, #tpu.memory_space<vmem>>, vector<1x1x128xf32>
    %43 = vector.shape_cast %42 : vector<1x1x128xf32> to vector<1x128xf32>
    %44 = vector.broadcast %43 : vector<1x128xf32> to vector<64x128xf32>
    %45 = arith.addf %41, %44 : vector<64x128xf32>
    %c0_23 = arith.constant 0 : index
    %c0_24 = arith.constant 0 : index
    %c0_25 = arith.constant 0 : index
    %46 = vector.load %arg6[%c0_23, %c0_24, %c0_25] : memref<2x1x128xf32, #tpu.memory_space<vmem>>, vector<1x1x128xf32>
    %47 = vector.shape_cast %46 : vector<1x1x128xf32> to vector<1x128xf32>
    %c0_26 = arith.constant 0 : index
    %c0_27 = arith.constant 0 : index
    %c0_28 = arith.constant 0 : index
    %48 = vector.load %arg7[%c0_26, %c0_27, %c0_28] : memref<2x1x128xf32, #tpu.memory_space<vmem>>, vector<1x1x128xf32>
    %49 = vector.shape_cast %48 : vector<1x1x128xf32> to vector<1x128xf32>
    %cst_29 = arith.constant dense<0.000000e+00> : vector<64xf32>
    %50 = vector.multi_reduction <add>, %45, %cst_29 [1] : vector<64x128xf32> to vector<64xf32>
    %51 = vector.shape_cast %50 : vector<64xf32> to vector<64x1xf32>
    %cst_30 = arith.constant 1.280000e+02 : f32
    %52 = vector.broadcast %cst_30 : f32 to vector<64x1xf32>
    %53 = arith.divf %51, %52 : vector<64x1xf32>
    %54 = vector.broadcast %53 : vector<64x1xf32> to vector<64x128xf32>
    %55 = arith.subf %45, %54 : vector<64x128xf32>
    %56 = arith.mulf %55, %55 : vector<64x128xf32>
    %cst_31 = arith.constant dense<0.000000e+00> : vector<64xf32>
    %57 = vector.multi_reduction <add>, %56, %cst_31 [1] : vector<64x128xf32> to vector<64xf32>
    %58 = vector.shape_cast %57 : vector<64xf32> to vector<64x1xf32>
    %cst_32 = arith.constant 1.280000e+02 : f32
    %59 = vector.broadcast %cst_32 : f32 to vector<64x1xf32>
    %60 = arith.divf %58, %59 : vector<64x1xf32>
    %61 = vector.broadcast %53 : vector<64x1xf32> to vector<64x128xf32>
    %62 = arith.subf %45, %61 : vector<64x128xf32>
    %cst_33 = arith.constant 9.99999974E-6 : f32
    %63 = vector.broadcast %cst_33 : f32 to vector<64x1xf32>
    %64 = arith.addf %60, %63 : vector<64x1xf32>
    %65 = math.rsqrt %64 : vector<64x1xf32>
    %66 = vector.broadcast %65 : vector<64x1xf32> to vector<64x128xf32>
    %67 = arith.mulf %62, %66 : vector<64x128xf32>
    %68 = vector.broadcast %47 : vector<1x128xf32> to vector<64x128xf32>
    %69 = arith.mulf %67, %68 : vector<64x128xf32>
    %70 = vector.broadcast %49 : vector<1x128xf32> to vector<64x128xf32>
    %71 = arith.addf %69, %70 : vector<64x128xf32>
    %72 = arith.truncf %71 : vector<64x128xf32> to vector<64x128xbf16>
    %c0_34 = arith.constant 0 : index
    %c0_35 = arith.constant 0 : index
    %c0_36 = arith.constant 0 : index
    %73 = vector.load %arg8[%c0_34, %c0_35, %c0_36] : memref<2x128x128xbf16, #tpu.memory_space<vmem>>, vector<1x128x128xbf16>
    %74 = vector.shape_cast %73 : vector<1x128x128xbf16> to vector<128x128xbf16>
    %cst_37 = arith.constant dense<0.000000e+00> : vector<64x128xf32>
    %75 = tpu.matmul %72, %74, %cst_37 {dimension_numbers = #tpu.dot_dimension_numbers<[1], [0], [0], [1], [0, 0, 1, 1], [], []>} : vector<64x128xbf16>, vector<128x128xbf16>, vector<64x128xf32> -> vector<64x128xf32>
    %c0_38 = arith.constant 0 : index
    %c0_39 = arith.constant 0 : index
    %c0_40 = arith.constant 0 : index
    %76 = vector.load %arg9[%c0_38, %c0_39, %c0_40] : memref<2x1x128xf32, #tpu.memory_space<vmem>>, vector<1x1x128xf32>
    %77 = vector.shape_cast %76 : vector<1x1x128xf32> to vector<1x128xf32>
    %78 = vector.broadcast %77 : vector<1x128xf32> to vector<64x128xf32>
    %79 = arith.addf %75, %78 : vector<64x128xf32>
    %cst_41 = arith.constant 0.000000e+00 : f32
    %80 = vector.broadcast %cst_41 : f32 to vector<64x128xf32>
    %81 = arith.maximumf %79, %80 : vector<64x128xf32>
    %82 = arith.truncf %81 : vector<64x128xf32> to vector<64x128xbf16>
    %c0_42 = arith.constant 0 : index
    %c0_43 = arith.constant 0 : index
    %c0_44 = arith.constant 0 : index
    %83 = vector.load %arg10[%c0_42, %c0_43, %c0_44] : memref<2x128x128xbf16, #tpu.memory_space<vmem>>, vector<1x128x128xbf16>
    %84 = vector.shape_cast %83 : vector<1x128x128xbf16> to vector<128x128xbf16>
    %cst_45 = arith.constant dense<0.000000e+00> : vector<64x128xf32>
    %85 = tpu.matmul %82, %84, %cst_45 {dimension_numbers = #tpu.dot_dimension_numbers<[1], [0], [0], [1], [0, 0, 1, 1], [], []>} : vector<64x128xbf16>, vector<128x128xbf16>, vector<64x128xf32> -> vector<64x128xf32>
    %c0_46 = arith.constant 0 : index
    %c0_47 = arith.constant 0 : index
    %c0_48 = arith.constant 0 : index
    %86 = vector.load %arg11[%c0_46, %c0_47, %c0_48] : memref<2x1x128xf32, #tpu.memory_space<vmem>>, vector<1x1x128xf32>
    %87 = vector.shape_cast %86 : vector<1x1x128xf32> to vector<1x128xf32>
    %88 = vector.broadcast %87 : vector<1x128xf32> to vector<64x128xf32>
    %89 = arith.addf %85, %88 : vector<64x128xf32>
    %90 = arith.addf %71, %89 : vector<64x128xf32>
    %c0_49 = arith.constant 0 : index
    %c0_50 = arith.constant 0 : index
    %c0_51 = arith.constant 0 : index
    %91 = vector.load %arg12[%c0_49, %c0_50, %c0_51] : memref<2x1x128xf32, #tpu.memory_space<vmem>>, vector<1x1x128xf32>
    %92 = vector.shape_cast %91 : vector<1x1x128xf32> to vector<1x128xf32>
    %c0_52 = arith.constant 0 : index
    %c0_53 = arith.constant 0 : index
    %c0_54 = arith.constant 0 : index
    %93 = vector.load %arg13[%c0_52, %c0_53, %c0_54] : memref<2x1x128xf32, #tpu.memory_space<vmem>>, vector<1x1x128xf32>
    %94 = vector.shape_cast %93 : vector<1x1x128xf32> to vector<1x128xf32>
    %cst_55 = arith.constant dense<0.000000e+00> : vector<64xf32>
    %95 = vector.multi_reduction <add>, %90, %cst_55 [1] : vector<64x128xf32> to vector<64xf32>
    %96 = vector.shape_cast %95 : vector<64xf32> to vector<64x1xf32>
    %cst_56 = arith.constant 1.280000e+02 : f32
    %97 = vector.broadcast %cst_56 : f32 to vector<64x1xf32>
    %98 = arith.divf %96, %97 : vector<64x1xf32>
    %99 = vector.broadcast %98 : vector<64x1xf32> to vector<64x128xf32>
    %100 = arith.subf %90, %99 : vector<64x128xf32>
    %101 = arith.mulf %100, %100 : vector<64x128xf32>
    %cst_57 = arith.constant dense<0.000000e+00> : vector<64xf32>
    %102 = vector.multi_reduction <add>, %101, %cst_57 [1] : vector<64x128xf32> to vector<64xf32>
    %103 = vector.shape_cast %102 : vector<64xf32> to vector<64x1xf32>
    %cst_58 = arith.constant 1.280000e+02 : f32
    %104 = vector.broadcast %cst_58 : f32 to vector<64x1xf32>
    %105 = arith.divf %103, %104 : vector<64x1xf32>
    %106 = vector.broadcast %98 : vector<64x1xf32> to vector<64x128xf32>
    %107 = arith.subf %90, %106 : vector<64x128xf32>
    %cst_59 = arith.constant 9.99999974E-6 : f32
    %108 = vector.broadcast %cst_59 : f32 to vector<64x1xf32>
    %109 = arith.addf %105, %108 : vector<64x1xf32>
    %110 = math.rsqrt %109 : vector<64x1xf32>
    %111 = vector.broadcast %110 : vector<64x1xf32> to vector<64x128xf32>
    %112 = arith.mulf %107, %111 : vector<64x128xf32>
    %113 = vector.broadcast %92 : vector<1x128xf32> to vector<64x128xf32>
    %114 = arith.mulf %112, %113 : vector<64x128xf32>
    %115 = vector.broadcast %94 : vector<1x128xf32> to vector<64x128xf32>
    %116 = arith.addf %114, %115 : vector<64x128xf32>
    %117 = vector.shape_cast %116 : vector<64x128xf32> to vector<8x8x128xf32>
    %118 = vector.shape_cast %117 : vector<8x8x128xf32> to vector<64x128xf32>
    %119 = arith.truncf %118 : vector<64x128xf32> to vector<64x128xbf16>
    %c1 = arith.constant 1 : index
    %c0_60 = arith.constant 0 : index
    %c0_61 = arith.constant 0 : index
    %120 = vector.load %arg2[%c1, %c0_60, %c0_61] : memref<2x128x384xbf16, #tpu.memory_space<vmem>>, vector<1x128x384xbf16>
    %121 = vector.shape_cast %120 : vector<1x128x384xbf16> to vector<128x384xbf16>
    %cst_62 = arith.constant dense<0.000000e+00> : vector<64x384xf32>
    %122 = tpu.matmul %119, %121, %cst_62 {dimension_numbers = #tpu.dot_dimension_numbers<[1], [0], [0], [1], [0, 0, 1, 1], [], []>} : vector<64x128xbf16>, vector<128x384xbf16>, vector<64x384xf32> -> vector<64x384xf32>
    %c1_63 = arith.constant 1 : index
    %c0_64 = arith.constant 0 : index
    %c0_65 = arith.constant 0 : index
    %123 = vector.load %arg3[%c1_63, %c0_64, %c0_65] : memref<2x1x384xf32, #tpu.memory_space<vmem>>, vector<1x1x384xf32>
    %124 = vector.shape_cast %123 : vector<1x1x384xf32> to vector<1x384xf32>
    %125 = vector.broadcast %124 : vector<1x384xf32> to vector<64x384xf32>
    %126 = arith.addf %122, %125 : vector<64x384xf32>
    %127 = vector.extract_strided_slice %126 {offsets = [0, 0], sizes = [64, 128], strides = [1, 1]} : vector<64x384xf32> to vector<64x128xf32>
    %128 = vector.shape_cast %127 : vector<64x128xf32> to vector<8x8x128xf32>
    %129 = vector.extract_strided_slice %126 {offsets = [0, 128], sizes = [64, 128], strides = [1, 1]} : vector<64x384xf32> to vector<64x128xf32>
    %130 = vector.shape_cast %129 : vector<64x128xf32> to vector<8x8x128xf32>
    %131 = vector.extract_strided_slice %126 {offsets = [0, 256], sizes = [64, 128], strides = [1, 1]} : vector<64x384xf32> to vector<64x128xf32>
    %132 = vector.shape_cast %131 : vector<64x128xf32> to vector<8x8x128xf32>
    %133 = arith.truncf %128 : vector<8x8x128xf32> to vector<8x8x128xbf16>
    %134 = arith.truncf %130 : vector<8x8x128xf32> to vector<8x8x128xbf16>
    "tpu.trace_start"() <{level = 10 : i32, message = "nsd,ntd->nst"}> : () -> ()
    %cst_66 = arith.constant dense<0.000000e+00> : vector<8x8x8xf32>
    %135 = tpu.matmul %133, %134, %cst_66 {dimension_numbers = #tpu.dot_dimension_numbers<[2], [2], [1], [1], [0, 0, 0, 1, 1, 1], [0], [0]>} : vector<8x8x128xbf16>, vector<8x8x128xbf16>, vector<8x8x8xf32> -> vector<8x8x8xf32>
    "tpu.trace_stop"() : () -> ()
    %cst_67 = arith.constant 0.0883883461 : f32
    %136 = vector.broadcast %cst_67 : f32 to vector<8x8x8xf32>
    %137 = arith.mulf %135, %136 : vector<8x8x8xf32>
    %cst_68 = arith.constant dense<0xFF800000> : vector<8x8xf32>
    %138 = vector.multi_reduction <maximumf>, %137, %cst_68 [2] : vector<8x8x8xf32> to vector<8x8xf32>
    %139 = vector.shape_cast %138 : vector<8x8xf32> to vector<8x8x1xf32>
    %140 = vector.broadcast %139 : vector<8x8x1xf32> to vector<8x8x8xf32>
    %141 = arith.subf %137, %140 : vector<8x8x8xf32>
    %142 = math.exp %141 : vector<8x8x8xf32>
    %cst_69 = arith.constant dense<0.000000e+00> : vector<8x8xf32>
    %143 = vector.multi_reduction <add>, %142, %cst_69 [2] : vector<8x8x8xf32> to vector<8x8xf32>
    %144 = vector.shape_cast %143 : vector<8x8xf32> to vector<8x8x1xf32>
    %145 = tpu.reciprocal %144 {approx = true} : vector<8x8x1xf32> -> vector<8x8x1xf32>
    %146 = vector.broadcast %145 : vector<8x8x1xf32> to vector<8x8x8xf32>
    %147 = arith.mulf %142, %146 : vector<8x8x8xf32>
    %148 = arith.truncf %147 : vector<8x8x8xf32> to vector<8x8x8xbf16>
    %149 = arith.truncf %132 : vector<8x8x128xf32> to vector<8x8x128xbf16>
    "tpu.trace_start"() <{level = 10 : i32, message = "nst,ntd->nsd"}> : () -> ()
    %cst_70 = arith.constant dense<0.000000e+00> : vector<8x8x128xf32>
    %150 = tpu.matmul %148, %149, %cst_70 {dimension_numbers = #tpu.dot_dimension_numbers<[2], [1], [1], [2], [0, 0, 0, 1, 1, 2], [0], [0]>} : vector<8x8x8xbf16>, vector<8x8x128xbf16>, vector<8x8x128xf32> -> vector<8x8x128xf32>
    "tpu.trace_stop"() : () -> ()
    %151 = vector.shape_cast %150 : vector<8x8x128xf32> to vector<64x128xf32>
    %152 = arith.truncf %151 : vector<64x128xf32> to vector<64x128xbf16>
    %c1_71 = arith.constant 1 : index
    %c0_72 = arith.constant 0 : index
    %c0_73 = arith.constant 0 : index
    %153 = vector.load %arg4[%c1_71, %c0_72, %c0_73] : memref<2x128x128xbf16, #tpu.memory_space<vmem>>, vector<1x128x128xbf16>
    %154 = vector.shape_cast %153 : vector<1x128x128xbf16> to vector<128x128xbf16>
    %cst_74 = arith.constant dense<0.000000e+00> : vector<64x128xf32>
    %155 = tpu.matmul %152, %154, %cst_74 {dimension_numbers = #tpu.dot_dimension_numbers<[1], [0], [0], [1], [0, 0, 1, 1], [], []>} : vector<64x128xbf16>, vector<128x128xbf16>, vector<64x128xf32> -> vector<64x128xf32>
    %c1_75 = arith.constant 1 : index
    %c0_76 = arith.constant 0 : index
    %c0_77 = arith.constant 0 : index
    %156 = vector.load %arg5[%c1_75, %c0_76, %c0_77] : memref<2x1x128xf32, #tpu.memory_space<vmem>>, vector<1x1x128xf32>
    %157 = vector.shape_cast %156 : vector<1x1x128xf32> to vector<1x128xf32>
    %158 = vector.broadcast %157 : vector<1x128xf32> to vector<64x128xf32>
    %159 = arith.addf %155, %158 : vector<64x128xf32>
    %c1_78 = arith.constant 1 : index
    %c0_79 = arith.constant 0 : index
    %c0_80 = arith.constant 0 : index
    %160 = vector.load %arg6[%c1_78, %c0_79, %c0_80] : memref<2x1x128xf32, #tpu.memory_space<vmem>>, vector<1x1x128xf32>
    %161 = vector.shape_cast %160 : vector<1x1x128xf32> to vector<1x128xf32>
    %c1_81 = arith.constant 1 : index
    %c0_82 = arith.constant 0 : index
    %c0_83 = arith.constant 0 : index
    %162 = vector.load %arg7[%c1_81, %c0_82, %c0_83] : memref<2x1x128xf32, #tpu.memory_space<vmem>>, vector<1x1x128xf32>
    %163 = vector.shape_cast %162 : vector<1x1x128xf32> to vector<1x128xf32>
    %cst_84 = arith.constant dense<0.000000e+00> : vector<64xf32>
    %164 = vector.multi_reduction <add>, %159, %cst_84 [1] : vector<64x128xf32> to vector<64xf32>
    %165 = vector.shape_cast %164 : vector<64xf32> to vector<64x1xf32>
    %cst_85 = arith.constant 1.280000e+02 : f32
    %166 = vector.broadcast %cst_85 : f32 to vector<64x1xf32>
    %167 = arith.divf %165, %166 : vector<64x1xf32>
    %168 = vector.broadcast %167 : vector<64x1xf32> to vector<64x128xf32>
    %169 = arith.subf %159, %168 : vector<64x128xf32>
    %170 = arith.mulf %169, %169 : vector<64x128xf32>
    %cst_86 = arith.constant dense<0.000000e+00> : vector<64xf32>
    %171 = vector.multi_reduction <add>, %170, %cst_86 [1] : vector<64x128xf32> to vector<64xf32>
    %172 = vector.shape_cast %171 : vector<64xf32> to vector<64x1xf32>
    %cst_87 = arith.constant 1.280000e+02 : f32
    %173 = vector.broadcast %cst_87 : f32 to vector<64x1xf32>
    %174 = arith.divf %172, %173 : vector<64x1xf32>
    %175 = vector.broadcast %167 : vector<64x1xf32> to vector<64x128xf32>
    %176 = arith.subf %159, %175 : vector<64x128xf32>
    %cst_88 = arith.constant 9.99999974E-6 : f32
    %177 = vector.broadcast %cst_88 : f32 to vector<64x1xf32>
    %178 = arith.addf %174, %177 : vector<64x1xf32>
    %179 = math.rsqrt %178 : vector<64x1xf32>
    %180 = vector.broadcast %179 : vector<64x1xf32> to vector<64x128xf32>
    %181 = arith.mulf %176, %180 : vector<64x128xf32>
    %182 = vector.broadcast %161 : vector<1x128xf32> to vector<64x128xf32>
    %183 = arith.mulf %181, %182 : vector<64x128xf32>
    %184 = vector.broadcast %163 : vector<1x128xf32> to vector<64x128xf32>
    %185 = arith.addf %183, %184 : vector<64x128xf32>
    %186 = arith.truncf %185 : vector<64x128xf32> to vector<64x128xbf16>
    %c1_89 = arith.constant 1 : index
    %c0_90 = arith.constant 0 : index
    %c0_91 = arith.constant 0 : index
    %187 = vector.load %arg8[%c1_89, %c0_90, %c0_91] : memref<2x128x128xbf16, #tpu.memory_space<vmem>>, vector<1x128x128xbf16>
    %188 = vector.shape_cast %187 : vector<1x128x128xbf16> to vector<128x128xbf16>
    %cst_92 = arith.constant dense<0.000000e+00> : vector<64x128xf32>
    %189 = tpu.matmul %186, %188, %cst_92 {dimension_numbers = #tpu.dot_dimension_numbers<[1], [0], [0], [1], [0, 0, 1, 1], [], []>} : vector<64x128xbf16>, vector<128x128xbf16>, vector<64x128xf32> -> vector<64x128xf32>
    %c1_93 = arith.constant 1 : index
    %c0_94 = arith.constant 0 : index
    %c0_95 = arith.constant 0 : index
    %190 = vector.load %arg9[%c1_93, %c0_94, %c0_95] : memref<2x1x128xf32, #tpu.memory_space<vmem>>, vector<1x1x128xf32>
    %191 = vector.shape_cast %190 : vector<1x1x128xf32> to vector<1x128xf32>
    %192 = vector.broadcast %191 : vector<1x128xf32> to vector<64x128xf32>
    %193 = arith.addf %189, %192 : vector<64x128xf32>
    %cst_96 = arith.constant 0.000000e+00 : f32
    %194 = vector.broadcast %cst_96 : f32 to vector<64x128xf32>
    %195 = arith.maximumf %193, %194 : vector<64x128xf32>
    %196 = arith.truncf %195 : vector<64x128xf32> to vector<64x128xbf16>
    %c1_97 = arith.constant 1 : index
    %c0_98 = arith.constant 0 : index
    %c0_99 = arith.constant 0 : index
    %197 = vector.load %arg10[%c1_97, %c0_98, %c0_99] : memref<2x128x128xbf16, #tpu.memory_space<vmem>>, vector<1x128x128xbf16>
    %198 = vector.shape_cast %197 : vector<1x128x128xbf16> to vector<128x128xbf16>
    %cst_100 = arith.constant dense<0.000000e+00> : vector<64x128xf32>
    %199 = tpu.matmul %196, %198, %cst_100 {dimension_numbers = #tpu.dot_dimension_numbers<[1], [0], [0], [1], [0, 0, 1, 1], [], []>} : vector<64x128xbf16>, vector<128x128xbf16>, vector<64x128xf32> -> vector<64x128xf32>
    %c1_101 = arith.constant 1 : index
    %c0_102 = arith.constant 0 : index
    %c0_103 = arith.constant 0 : index
    %200 = vector.load %arg11[%c1_101, %c0_102, %c0_103] : memref<2x1x128xf32, #tpu.memory_space<vmem>>, vector<1x1x128xf32>
    %201 = vector.shape_cast %200 : vector<1x1x128xf32> to vector<1x128xf32>
    %202 = vector.broadcast %201 : vector<1x128xf32> to vector<64x128xf32>
    %203 = arith.addf %199, %202 : vector<64x128xf32>
    %204 = arith.addf %185, %203 : vector<64x128xf32>
    %c1_104 = arith.constant 1 : index
    %c0_105 = arith.constant 0 : index
    %c0_106 = arith.constant 0 : index
    %205 = vector.load %arg12[%c1_104, %c0_105, %c0_106] : memref<2x1x128xf32, #tpu.memory_space<vmem>>, vector<1x1x128xf32>
    %206 = vector.shape_cast %205 : vector<1x1x128xf32> to vector<1x128xf32>
    %c1_107 = arith.constant 1 : index
    %c0_108 = arith.constant 0 : index
    %c0_109 = arith.constant 0 : index
    %207 = vector.load %arg13[%c1_107, %c0_108, %c0_109] : memref<2x1x128xf32, #tpu.memory_space<vmem>>, vector<1x1x128xf32>
    %208 = vector.shape_cast %207 : vector<1x1x128xf32> to vector<1x128xf32>
    %cst_110 = arith.constant dense<0.000000e+00> : vector<64xf32>
    %209 = vector.multi_reduction <add>, %204, %cst_110 [1] : vector<64x128xf32> to vector<64xf32>
    %210 = vector.shape_cast %209 : vector<64xf32> to vector<64x1xf32>
    %cst_111 = arith.constant 1.280000e+02 : f32
    %211 = vector.broadcast %cst_111 : f32 to vector<64x1xf32>
    %212 = arith.divf %210, %211 : vector<64x1xf32>
    %213 = vector.broadcast %212 : vector<64x1xf32> to vector<64x128xf32>
    %214 = arith.subf %204, %213 : vector<64x128xf32>
    %215 = arith.mulf %214, %214 : vector<64x128xf32>
    %cst_112 = arith.constant dense<0.000000e+00> : vector<64xf32>
    %216 = vector.multi_reduction <add>, %215, %cst_112 [1] : vector<64x128xf32> to vector<64xf32>
    %217 = vector.shape_cast %216 : vector<64xf32> to vector<64x1xf32>
    %cst_113 = arith.constant 1.280000e+02 : f32
    %218 = vector.broadcast %cst_113 : f32 to vector<64x1xf32>
    %219 = arith.divf %217, %218 : vector<64x1xf32>
    %220 = vector.broadcast %212 : vector<64x1xf32> to vector<64x128xf32>
    %221 = arith.subf %204, %220 : vector<64x128xf32>
    %cst_114 = arith.constant 9.99999974E-6 : f32
    %222 = vector.broadcast %cst_114 : f32 to vector<64x1xf32>
    %223 = arith.addf %219, %222 : vector<64x1xf32>
    %224 = math.rsqrt %223 : vector<64x1xf32>
    %225 = vector.broadcast %224 : vector<64x1xf32> to vector<64x128xf32>
    %226 = arith.mulf %221, %225 : vector<64x128xf32>
    %227 = vector.broadcast %206 : vector<1x128xf32> to vector<64x128xf32>
    %228 = arith.mulf %226, %227 : vector<64x128xf32>
    %229 = vector.broadcast %208 : vector<1x128xf32> to vector<64x128xf32>
    %230 = arith.addf %228, %229 : vector<64x128xf32>
    %231 = vector.shape_cast %230 : vector<64x128xf32> to vector<8x8x128xf32>
    %c0_115 = arith.constant 0 : index
    %c0_116 = arith.constant 0 : index
    %c0_117 = arith.constant 0 : index
    %232 = vector.load %arg14[%c0_115, %c0_116, %c0_117] : memref<8x8x128xf32, #tpu.memory_space<vmem>>, vector<8x8x128xf32>
    tpu.vector_store %arg14[%c0_115, %c0_116, %c0_117], %231 {strides = array<i32>} : memref<8x8x128xf32, #tpu.memory_space<vmem>>, vector<8x8x128xf32>,
    return
  }
}

</mosaic_0001>

<llo_original>
// kernel: transformer_forward.1
$region0: #{transformer_forward.1}
  #allocation0 [shape = 'u32[]', space=smem, size = 0x4, offset = 0x4, fixed_abs, tag = 'smem constant byte address 0x4 - core index']
  #allocation1 [shape = 'u32[144,128]{1,0:T(1,128)}', space=vmem, size = 0x12000, scoped, tag = 'internal scratch']
  %s0 = inlined_call_operand.vmem [shape: f32[8,8,128], index: 0, kind: input, shape index: {}]
  %s1 = inlined_call_operand.vmem [shape: f32[8,1,128], index: 1, kind: input, shape index: {}]
  %s2 = inlined_call_operand.hbm [shape: bf16[2,128,384], index: 2, kind: input, shape index: {}]
  %s3 = inlined_call_operand.vmem [shape: f32[2,1,384], index: 3, kind: input, shape index: {}]
  %s4 = inlined_call_operand.vmem [shape: bf16[2,128,128], index: 4, kind: input, shape index: {}]
  %s5 = inlined_call_operand.vmem [shape: f32[2,1,128], index: 5, kind: input, shape index: {}]
  %s6 = inlined_call_operand.vmem [shape: f32[2,1,128], index: 6, kind: input, shape index: {}]
  %s7 = inlined_call_operand.vmem [shape: f32[2,1,128], index: 7, kind: input, shape index: {}]
  %s8 = inlined_call_operand.hbm [shape: bf16[2,128,128], index: 8, kind: input, shape index: {}]
  %s9 = inlined_call_operand.vmem [shape: f32[2,1,128], index: 9, kind: input, shape index: {}]
  %s10 = inlined_call_operand.hbm [shape: bf16[2,128,128], index: 10, kind: input, shape index: {}]
  %s11 = inlined_call_operand.vmem [shape: f32[2,1,128], index: 11, kind: input, shape index: {}]
  %s12 = inlined_call_operand.hbm [shape: f32[2,1,128], index: 12, kind: input, shape index: {}]
  %s13 = inlined_call_operand.hbm [shape: f32[2,1,128], index: 13, kind: input, shape index: {}]
  %s14 = inlined_call_operand.vmem [shape: f32[8,8,128], index: 14, kind: output, shape index: {}]
  %s15 = sld [smem:[#allocation0]]
  $region86: #{transformer_forward.1} parent=0
    _
  %s17 = ssub.s32 1, %s15
  %s18 = scalar_select 0, %s17, %s15
  $region1: #{transformer_forward.1} parent=0
    #allocation2 [shape = 'u8[196608]{0}', space=vmem, size = 0x30000, scoped, tag = 'input window, operand 2, single buffered']
    #allocation3 [shape = 's32[1]{0}', space=sflag, size = 0x4, scoped, tag = 'scoped memory for transformer_forward.1']
    #allocation4 [shape = 'u8[65536]{0}', space=vmem, size = 0x10000, scoped, tag = 'input window, operand 8, single buffered']
    #allocation5 [shape = 's32[1]{0}', space=sflag, size = 0x4, scoped, tag = 'scoped memory for transformer_forward.1']
    #allocation6 [shape = 'u8[65536]{0}', space=vmem, size = 0x10000, scoped, tag = 'input window, operand 10, single buffered']
    #allocation7 [shape = 'u8[1024]{0}', space=vmem, size = 0x400, scoped, tag = 'input window, operand 12, single buffered']
    #allocation8 [shape = 's32[1]{0}', space=sflag, size = 0x4, scoped, tag = 'scoped memory for transformer_forward.1']
    #allocation9 [shape = 'u8[1024]{0}', space=vmem, size = 0x400, scoped, tag = 'input window, operand 13, single buffered']
    %19 = vsyncpa [#allocation3], 0
    %20 = vsyncpa [#allocation5], 0
    %21 = vsyncpa [#allocation8], 0
    // Predicated region
    $region2: #{transformer_forward.1} parent=1 // pred_check
      _
    $region3: #{transformer_forward.1} parent=1 // pred_check_branch
      %23 = sbr.rel (0) target = $region5
    $region4: #{transformer_forward.1} parent=1 // pred_region
      _
    $region5: #{transformer_forward.1} parent=1 // pred_fallthru
      _
    // Predicated region
    $region6: #{transformer_forward.1} parent=1 // pred_check
      _
    $region7: #{transformer_forward.1} parent=1 // pred_check_branch
      %25 = sbr.rel (0) target = $region9
    $region8: #{transformer_forward.1} parent=1 // pred_region
      _
    $region9: #{transformer_forward.1} parent=1 // pred_fallthru
      _
    // Predicated region
    $region10: #{transformer_forward.1} parent=1 // pred_check
      _
    $region11: #{transformer_forward.1} parent=1 // pred_check_branch
      %27 = sbr.rel (0) target = $region13
    $region12: #{transformer_forward.1} parent=1 // pred_region
      %s29 = ssub.s32 6144, 6144
      %30 = vsyncadd [#allocation3], %s29
      %s31 = sshll.u32 [#allocation2], 4
      %s32 = int_to_ptr.vmem [resolvable:$true] %s31
      %37 = dma.hbm_to_vmem [thread:$0]  %s2, 6144, %s32, [#allocation3], 192, 192, 12
    $region13: #{transformer_forward.1} parent=1 // pred_fallthru
      _
    // Predicated region
    $region14: #{transformer_forward.1} parent=1 // pred_check
      _
    $region15: #{transformer_forward.1} parent=1 // pred_check_branch
      %39 = sbr.rel (0) target = $region17
    $region16: #{transformer_forward.1} parent=1 // pred_region
      _
    $region17: #{transformer_forward.1} parent=1 // pred_fallthru
      _
    // Predicated region
    $region18: #{transformer_forward.1} parent=1 // pred_check
      _
    $region19: #{transformer_forward.1} parent=1 // pred_check_branch
      %41 = sbr.rel (0) target = $region21
    $region20: #{transformer_forward.1} parent=1 // pred_region
      _
    $region21: #{transformer_forward.1} parent=1 // pred_fallthru
      _
    // Predicated region
    $region22: #{transformer_forward.1} parent=1 // pred_check
      _
    $region23: #{transformer_forward.1} parent=1 // pred_check_branch
      %43 = sbr.rel (0) target = $region25
    $region24: #{transformer_forward.1} parent=1 // pred_region
      _
    $region25: #{transformer_forward.1} parent=1 // pred_fallthru
      _
    // Predicated region
    $region26: #{transformer_forward.1} parent=1 // pred_check
      _
    $region27: #{transformer_forward.1} parent=1 // pred_check_branch
      %45 = sbr.rel (0) target = $region29
    $region28: #{transformer_forward.1} parent=1 // pred_region
      _
    $region29: #{transformer_forward.1} parent=1 // pred_fallthru
      _
    // Predicated region
    $region30: #{transformer_forward.1} parent=1 // pred_check
      _
    $region31: #{transformer_forward.1} parent=1 // pred_check_branch
      %47 = sbr.rel (0) target = $region33
    $region32: #{transformer_forward.1} parent=1 // pred_region
      _
    $region33: #{transformer_forward.1} parent=1 // pred_fallthru
      _
    // Predicated region
    $region34: #{transformer_forward.1} parent=1 // pred_check
      _
    $region35: #{transformer_forward.1} parent=1 // pred_check_branch
      %49 = sbr.rel (0) target = $region37
    $region36: #{transformer_forward.1} parent=1 // pred_region
      %s51 = ssub.s32 2048, 2048
      %52 = vsyncadd [#allocation5], %s51
      %s53 = sshll.u32 [#allocation4], 4
      %s54 = int_to_ptr.vmem [resolvable:$true] %s53
      %59 = dma.hbm_to_vmem [thread:$0]  %s8, 2048, %s54, [#allocation5], 64, 64, 4
    $region37: #{transformer_forward.1} parent=1 // pred_fallthru
      _
    // Predicated region
    $region38: #{transformer_forward.1} parent=1 // pred_check
      _
    $region39: #{transformer_forward.1} parent=1 // pred_check_branch
      %61 = sbr.rel (0) target = $region41
    $region40: #{transformer_forward.1} parent=1 // pred_region
      _
    $region41: #{transformer_forward.1} parent=1 // pred_fallthru
      _
    // Predicated region
    $region42: #{transformer_forward.1} parent=1 // pred_check
      _
    $region43: #{transformer_forward.1} parent=1 // pred_check_branch
      %63 = sbr.rel (0) target = $region45
    $region44: #{transformer_forward.1} parent=1 // pred_region
      %s65 = ssub.s32 2048, 2048
      %66 = vsyncadd [#allocation5], %s65
      %s67 = sshll.u32 [#allocation6], 4
      %s68 = int_to_ptr.vmem [resolvable:$true] %s67
      %73 = dma.hbm_to_vmem [thread:$0]  %s10, 2048, %s68, [#allocation5], 64, 64, 4
    $region45: #{transformer_forward.1} parent=1 // pred_fallthru
      _
    // Predicated region
    $region46: #{transformer_forward.1} parent=1 // pred_check
      _
    $region47: #{transformer_forward.1} parent=1 // pred_check_branch
      %75 = sbr.rel (0) target = $region49
    $region48: #{transformer_forward.1} parent=1 // pred_region
      _
    $region49: #{transformer_forward.1} parent=1 // pred_fallthru
      _
    // Predicated region
    $region50: #{transformer_forward.1} parent=1 // pred_check
      _
    $region51: #{transformer_forward.1} parent=1 // pred_check_branch
      %77 = sbr.rel (0) target = $region53
    $region52: #{transformer_forward.1} parent=1 // pred_region
      %s79 = ssub.s32 32, 32
      %80 = vsyncadd [#allocation8], %s79
      %s81 = sshll.u32 [#allocation7], 4
      %s82 = int_to_ptr.vmem [resolvable:$true] %s81
      %87 = dma.hbm_to_vmem [thread:$0]  %s12, 32, %s82, [#allocation8], 16, 16, 1
    $region53: #{transformer_forward.1} parent=1 // pred_fallthru
      _
    // Predicated region
    $region54: #{transformer_forward.1} parent=1 // pred_check
      _
    $region55: #{transformer_forward.1} parent=1 // pred_check_branch
      %89 = sbr.rel (0) target = $region57
    $region56: #{transformer_forward.1} parent=1 // pred_region
      %s91 = ssub.s32 32, 32
      %92 = vsyncadd [#allocation8], %s91
      %s93 = sshll.u32 [#allocation9], 4
      %s94 = int_to_ptr.vmem [resolvable:$true] %s93
      %99 = dma.hbm_to_vmem [thread:$0]  %s13, 32, %s94, [#allocation8], 16, 16, 1
    $region57: #{transformer_forward.1} parent=1 // pred_fallthru
      _
    // Predicated region
    $region58: #{transformer_forward.1} parent=1 // pred_check
      _
    $region59: #{transformer_forward.1} parent=1 // pred_check_branch
      %101 = sbr.rel (0) target = $region61
    $region60: #{transformer_forward.1} parent=1 // pred_region
      %102 = dma.done [#allocation3], 6144
    $region61: #{transformer_forward.1} parent=1 // pred_fallthru
      _
    // Predicated region
    $region62: #{transformer_forward.1} parent=1 // pred_check
      _
    $region63: #{transformer_forward.1} parent=1 // pred_check_branch
      %104 = sbr.rel (0) target = $region65
    $region64: #{transformer_forward.1} parent=1 // pred_region
      %105 = dma.done [#allocation5], 2048
    $region65: #{transformer_forward.1} parent=1 // pred_fallthru
      _
    // Predicated region
    $region66: #{transformer_forward.1} parent=1 // pred_check
      _
    $region67: #{transformer_forward.1} parent=1 // pred_check_branch
      %107 = sbr.rel (0) target = $region69
    $region68: #{transformer_forward.1} parent=1 // pred_region
      %108 = dma.done [#allocation5], 2048
    $region69: #{transformer_forward.1} parent=1 // pred_fallthru
      _
    // Predicated region
    $region70: #{transformer_forward.1} parent=1 // pred_check
      _
    $region71: #{transformer_forward.1} parent=1 // pred_check_branch
      %110 = sbr.rel (0) target = $region73
    $region72: #{transformer_forward.1} parent=1 // pred_region
      %111 = dma.done [#allocation8], 32
    $region73: #{transformer_forward.1} parent=1 // pred_fallthru
      _
    // Predicated region
    $region74: #{transformer_forward.1} parent=1 // pred_check
      _
    $region75: #{transformer_forward.1} parent=1 // pred_check_branch
      %113 = sbr.rel (0) target = $region77
    $region76: #{transformer_forward.1} parent=1 // pred_region
      %114 = dma.done [#allocation8], 32
    $region77: #{transformer_forward.1} parent=1 // pred_fallthru
      _
    %v116 = vld [vmem:[%s0] sm:$0xff]
    %v117 = vld [vmem:[%s0 + $0x8] sm:$0xff]
    %v118 = vld [vmem:[%s0 + $0x10] sm:$0xff]
    %v119 = vld [vmem:[%s0 + $0x18] sm:$0xff]
    %v120 = vld [vmem:[%s0 + $0x20] sm:$0xff]
    %v121 = vld [vmem:[%s0 + $0x28] sm:$0xff]
    %v122 = vld [vmem:[%s0 + $0x30] sm:$0xff]
    %v123 = vld [vmem:[%s0 + $0x38] sm:$0xff]
    %v124 = vld [vmem:[%s1] sm:$0x1]
    %v125 = vld [vmem:[%s1 + $0x1] sm:$0x1]
    %v126 = vld [vmem:[%s1 + $0x2] sm:$0x1]
    %v127 = vld [vmem:[%s1 + $0x3] sm:$0x1]
    %v128 = vld [vmem:[%s1 + $0x4] sm:$0x1]
    %v129 = vld [vmem:[%s1 + $0x5] sm:$0x1]
    %v130 = vld [vmem:[%s1 + $0x6] sm:$0x1]
    %v131 = vld [vmem:[%s1 + $0x7] sm:$0x1]
    %v140 = vlaneseq
    %v141 = vshrl.u32 %v140, 7
    %v142 = vsub.s32 0, %v141
    %v143 = vrot.slane %v124, %v142
    %v144 = vlaneseq
    %v145 = vshrl.u32 %v144, 7
    %v146 = vsub.s32 0, %v145
    %v147 = vrot.slane %v125, %v146
    %v148 = vlaneseq
    %v149 = vshrl.u32 %v148, 7
    %v150 = vsub.s32 0, %v149
    %v151 = vrot.slane %v126, %v150
    %v152 = vlaneseq
    %v153 = vshrl.u32 %v152, 7
    %v154 = vsub.s32 0, %v153
    %v155 = vrot.slane %v127, %v154
    %v156 = vlaneseq
    %v157 = vshrl.u32 %v156, 7
    %v158 = vsub.s32 0, %v157
    %v159 = vrot.slane %v128, %v158
    %v160 = vlaneseq
    %v161 = vshrl.u32 %v160, 7
    %v162 = vsub.s32 0, %v161
    %v163 = vrot.slane %v129, %v162
    %v164 = vlaneseq
    %v165 = vshrl.u32 %v164, 7
    %v166 = vsub.s32 0, %v165
    %v167 = vrot.slane %v130, %v166
    %v168 = vlaneseq
    %v169 = vshrl.u32 %v168, 7
    %v170 = vsub.s32 0, %v169
    %v171 = vrot.slane %v131, %v170
    %v180 = vadd.f32 %v116, %v143
    %v181 = vadd.f32 %v117, %v147
    %v182 = vadd.f32 %v118, %v151
    %v183 = vadd.f32 %v119, %v155
    %v184 = vadd.f32 %v120, %v159
    %v185 = vadd.f32 %v121, %v163
    %v186 = vadd.f32 %v122, %v167
    %v187 = vadd.f32 %v123, %v171
    %v188 = vpack.c.bf16 %v181, %v180
    %v189 = vpack.c.bf16 %v183, %v182
    %v190 = vpack.c.bf16 %v185, %v184
    %v191 = vpack.c.bf16 %v187, %v186
    %v192 = vld [vmem:[#allocation2] sm:$0xff]
    %v193 = vld [vmem:[#allocation2 + $0x8] sm:$0xf]
    %v194 = vld [vmem:[#allocation2 + $0xc] sm:$0xff]
    %v195 = vld [vmem:[#allocation2 + $0x14] sm:$0xf]
    %v196 = vld [vmem:[#allocation2 + $0x18] sm:$0xff]
    %v197 = vld [vmem:[#allocation2 + $0x20] sm:$0xf]
    %v198 = vld [vmem:[#allocation2 + $0x24] sm:$0xff]
    %v199 = vld [vmem:[#allocation2 + $0x2c] sm:$0xf]
    %v200 = vld [vmem:[#allocation2 + $0x30] sm:$0xff]
    %v201 = vld [vmem:[#allocation2 + $0x38] sm:$0xf]
    %v202 = vld [vmem:[#allocation2 + $0x3c] sm:$0xff]
    %v203 = vld [vmem:[#allocation2 + $0x44] sm:$0xf]
    %v204 = vld [vmem:[#allocation2 + $0x48] sm:$0xff]
    %v205 = vld [vmem:[#allocation2 + $0x50] sm:$0xf]
    %v206 = vld [vmem:[#allocation2 + $0x54] sm:$0xff]
    %v207 = vld [vmem:[#allocation2 + $0x5c] sm:$0xf]
    %v208 = vld [vmem:[#allocation2 + $0x60] sm:$0xff]
    %v209 = vld [vmem:[#allocation2 + $0x68] sm:$0xf]
    %v210 = vld [vmem:[#allocation2 + $0x6c] sm:$0xff]
    %v211 = vld [vmem:[#allocation2 + $0x74] sm:$0xf]
    %v212 = vld [vmem:[#allocation2 + $0x78] sm:$0xff]
    %v213 = vld [vmem:[#allocation2 + $0x80] sm:$0xf]
    %v214 = vld [vmem:[#allocation2 + $0x84] sm:$0xff]
    %v215 = vld [vmem:[#allocation2 + $0x8c] sm:$0xf]
    %v216 = vld [vmem:[#allocation2 + $0x90] sm:$0xff]
    %v217 = vld [vmem:[#allocation2 + $0x98] sm:$0xf]
    %v218 = vld [vmem:[#allocation2 + $0x9c] sm:$0xff]
    %v219 = vld [vmem:[#allocation2 + $0xa4] sm:$0xf]
    %v220 = vld [vmem:[#allocation2 + $0xa8] sm:$0xff]
    %v221 = vld [vmem:[#allocation2 + $0xb0] sm:$0xf]
    %v222 = vld [vmem:[#allocation2 + $0xb4] sm:$0xff]
    %v223 = vld [vmem:[#allocation2 + $0xbc] sm:$0xf]
    %v224 = vld [vmem:[%s3] sm:$0x7]
    %v226 = vlaneseq
    %v227 = vshrl.u32 %v226, 7
    %v228 = vsub.s32 0, %v227
    %v229 = vrot.slane %v224, %v228
    %v230 = vlaneseq
    %v231 = vshrl.u32 %v230, 7
    %v232 = vsub.s32 1, %v231
    %v233 = vrot.slane %v224, %v232
    %v234 = vlaneseq
    %v235 = vshrl.u32 %v234, 7
    %v236 = vsub.s32 2, %v235
    %v237 = vrot.slane %v224, %v236
    %v273 = vunpack.c.l.b16 %v192
    %v274 = vunpack.c.h.b16 %v192
    %v275 = vunpack.c.l.b16 %v193
    %v276 = vunpack.c.l.b16 %v194
    %v277 = vunpack.c.h.b16 %v194
    %v278 = vunpack.c.l.b16 %v195
    %v279 = vunpack.c.l.b16 %v196
    %v280 = vunpack.c.h.b16 %v196
    %v281 = vunpack.c.l.b16 %v197
    %v282 = vunpack.c.l.b16 %v198
    %v283 = vunpack.c.h.b16 %v198
    %v284 = vunpack.c.l.b16 %v199
    %v285 = vunpack.c.l.b16 %v200
    %v286 = vunpack.c.h.b16 %v200
    %v287 = vunpack.c.l.b16 %v201
    %v288 = vunpack.c.l.b16 %v202
    %v289 = vunpack.c.h.b16 %v202
    %v290 = vunpack.c.l.b16 %v203
    %v291 = vunpack.c.l.b16 %v204
    %v292 = vunpack.c.h.b16 %v204
    %v293 = vunpack.c.l.b16 %v205
    %v294 = vunpack.c.l.b16 %v206
    %v295 = vunpack.c.h.b16 %v206
    %v296 = vunpack.c.l.b16 %v207
    %v297 = vunpack.c.l.b16 %v208
    %v298 = vunpack.c.h.b16 %v208
    %v299 = vunpack.c.l.b16 %v209
    %v300 = vunpack.c.l.b16 %v210
    %v301 = vunpack.c.h.b16 %v210
    %v302 = vunpack.c.l.b16 %v211
    %v303 = vunpack.c.l.b16 %v212
    %v304 = vunpack.c.h.b16 %v212
    %v305 = vunpack.c.l.b16 %v213
    %v306 = vunpack.c.l.b16 %v214
    %v307 = vunpack.c.h.b16 %v214
    %v308 = vunpack.c.l.b16 %v215
    %v309 = vunpack.c.l.b16 %v216
    %v310 = vunpack.c.h.b16 %v216
    %v311 = vunpack.c.l.b16 %v217
    %v312 = vunpack.c.l.b16 %v218
    %v313 = vunpack.c.h.b16 %v218
    %v314 = vunpack.c.l.b16 %v219
    %v315 = vunpack.c.l.b16 %v220
    %v316 = vunpack.c.h.b16 %v220
    %v317 = vunpack.c.l.b16 %v221
    %v318 = vunpack.c.l.b16 %v222
    %v319 = vunpack.c.h.b16 %v222
    %v320 = vunpack.c.l.b16 %v223
    %v321 = vpack.c.b16 %v276, %v273
    %v322 = vpack.c.b16 %v277, %v274
    %v323 = vpack.c.b16 %v278, %v275
    %v324 = vpack.c.b16 %v282, %v279
    %v325 = vpack.c.b16 %v283, %v280
    %v326 = vpack.c.b16 %v284, %v281
    %v327 = vpack.c.b16 %v288, %v285
    %v328 = vpack.c.b16 %v289, %v286
    %v329 = vpack.c.b16 %v290, %v287
    %v330 = vpack.c.b16 %v294, %v291
    %v331 = vpack.c.b16 %v295, %v292
    %v332 = vpack.c.b16 %v296, %v293
    %v333 = vpack.c.b16 %v300, %v297
    %v334 = vpack.c.b16 %v301, %v298
    %v335 = vpack.c.b16 %v302, %v299
    %v336 = vpack.c.b16 %v306, %v303
    %v337 = vpack.c.b16 %v307, %v304
    %v338 = vpack.c.b16 %v308, %v305
    %v339 = vpack.c.b16 %v312, %v309
    %v340 = vpack.c.b16 %v313, %v310
    %v341 = vpack.c.b16 %v314, %v311
    %v342 = vpack.c.b16 %v318, %v315
    %v343 = vpack.c.b16 %v319, %v316
    %v344 = vpack.c.b16 %v320, %v317
    %369 = vmatprep.subr.bf16.mxu0 %v343
    %370 = vmatpush1.bf16.msra.mxu0 %v342
    %371 = vmatprep.subr.bf16.mxu0 %v340
    %372 = vmatpush1.bf16.msra.mxu0 %v339
    %373 = vmatprep.subr.bf16.mxu0 %v337
    %374 = vmatpush1.bf16.msra.mxu0 %v336
    %375 = vmatprep.subr.bf16.mxu0 %v334
    %376 = vmatpush1.bf16.msra.mxu0 %v333
    %377 = vmatprep.subr.bf16.mxu0 %v331
    %378 = vmatpush1.bf16.msra.mxu0 %v330
    %379 = vmatprep.subr.bf16.mxu0 %v328
    %380 = vmatpush1.bf16.msra.mxu0 %v327
    %381 = vmatprep.subr.bf16.mxu0 %v325
    %382 = vmatpush1.bf16.msra.mxu0 %v324
    %383 = vmatprep.subr.bf16.mxu0 %v322
    %384 = vmatpush1.bf16.msra.mxu0 %v321
    %385 = vmatprep.subr.bf16.mxu0 0
    %386 = vmatpush2.bf16.msra.mxu0 0
    %387 = vmatprep.subr.bf16.mxu0 0
    %388 = vmatpush2.bf16.msra.mxu0 0
    %389 = vmatprep.subr.bf16.mxu0 0
    %390 = vmatpush2.bf16.msra.mxu0 0
    %391 = vmatprep.subr.bf16.mxu0 0
    %392 = vmatpush2.bf16.msra.mxu0 0
    %393 = vmatprep.subr.bf16.mxu0 0
    %394 = vmatpush2.bf16.msra.mxu0 0
    %395 = vmatprep.subr.bf16.mxu0 0
    %396 = vmatpush2.bf16.msra.mxu0 0
    %397 = vmatprep.subr.bf16.mxu0 0
    %398 = vmatpush2.bf16.msra.mxu0 0
    %399 = vmatprep.subr.bf16.mxu0 0
    %400 = vmatpush2.bf16.msra.mxu0 0
    %401 = vmatprep.mubr.bf16.mxu0 0
    %402 = vmatmul.mubr.bf16.gmra.mxu0 %v188
    %v403 = vpop.f32.mrf.mxu0
    %v404 = vadd.f32 %v229, %v403
    %v405 = vpop.f32.mrf.mxu0
    %v406 = vadd.f32 %v233, %v405
    %v407 = vpop.f32.mrf.mxu0
    %v408 = vadd.f32 %v229, %v407
    %v409 = vpop.f32.mrf.mxu0
    %v410 = vadd.f32 %v233, %v409
    %411 = vmatprep.mubr.bf16.mxu0 0
    %412 = vmatmul.mubr.bf16.gmra.mxu0 %v189
    %v413 = vpop.f32.mrf.mxu0
    %v414 = vadd.f32 %v229, %v413
    %v415 = vpop.f32.mrf.mxu0
    %v416 = vadd.f32 %v233, %v415
    %v417 = vpop.f32.mrf.mxu0
    %v418 = vadd.f32 %v229, %v417
    %v419 = vpop.f32.mrf.mxu0
    %v420 = vadd.f32 %v233, %v419
    %421 = vmatprep.mubr.bf16.mxu0 0
    %422 = vmatmul.mubr.bf16.gmra.mxu0 %v190
    %v423 = vpop.f32.mrf.mxu0
    %v424 = vadd.f32 %v229, %v423
    %v425 = vpop.f32.mrf.mxu0
    %v426 = vadd.f32 %v233, %v425
    %v427 = vpop.f32.mrf.mxu0
    %v428 = vadd.f32 %v229, %v427
    %v429 = vpop.f32.mrf.mxu0
    %v430 = vadd.f32 %v233, %v429
    %431 = vmatprep.mubr.bf16.mxu0 0
    %432 = vmatmul.mubr.bf16.gmra.mxu0 %v191
    %v433 = vpop.f32.mrf.mxu0
    %v434 = vadd.f32 %v229, %v433
    %v435 = vpop.f32.mrf.mxu0
    %v436 = vadd.f32 %v233, %v435
    %v437 = vpop.f32.mrf.mxu0
    %v438 = vadd.f32 %v229, %v437
    %v439 = vpop.f32.mrf.mxu0
    %v440 = vadd.f32 %v233, %v439
    %441 = vdwg.mxu0
    %442 = vmatprep.subr.bf16.mxu0 0
    %443 = vmatpush1.bf16.msra.mxu0 %v344
    %444 = vmatprep.subr.bf16.mxu0 0
    %445 = vmatpush1.bf16.msra.mxu0 %v341
    %446 = vmatprep.subr.bf16.mxu0 0
    %447 = vmatpush1.bf16.msra.mxu0 %v338
    %448 = vmatprep.subr.bf16.mxu0 0
    %449 = vmatpush1.bf16.msra.mxu0 %v335
    %450 = vmatprep.subr.bf16.mxu0 0
    %451 = vmatpush1.bf16.msra.mxu0 %v332
    %452 = vmatprep.subr.bf16.mxu0 0
    %453 = vmatpush1.bf16.msra.mxu0 %v329
    %454 = vmatprep.subr.bf16.mxu0 0
    %455 = vmatpush1.bf16.msra.mxu0 %v326
    %456 = vmatprep.subr.bf16.mxu0 0
    %457 = vmatpush1.bf16.msra.mxu0 %v323
    %458 = vmatprep.subr.bf16.mxu0 0
    %459 = vmatpush2.bf16.msra.mxu0 0
    %460 = vmatprep.subr.bf16.mxu0 0
    %461 = vmatpush2.bf16.msra.mxu0 0
    %462 = vmatprep.subr.bf16.mxu0 0
    %463 = vmatpush2.bf16.msra.mxu0 0
    %464 = vmatprep.subr.bf16.mxu0 0
    %465 = vmatpush2.bf16.msra.mxu0 0
    %466 = vmatprep.subr.bf16.mxu0 0
    %467 = vmatpush2.bf16.msra.mxu0 0
    %468 = vmatprep.subr.bf16.mxu0 0
    %469 = vmatpush2.bf16.msra.mxu0 0
    %470 = vmatprep.subr.bf16.mxu0 0
    %471 = vmatpush2.bf16.msra.mxu0 0
    %472 = vmatprep.subr.bf16.mxu0 0
    %473 = vmatpush2.bf16.msra.mxu0 0
    %474 = vmatprep.mubr.bf16.mxu0 0
    %475 = vmatmul.mubr.bf16.gmra.mxu0 %v188
    %v476 = vpop.f32.mrf.mxu0
    %v477 = vadd.f32 %v237, %v476
    %v478 = vpop.f32.mrf.mxu0
    %v479 = vpop.f32.mrf.mxu0
    %v480 = vadd.f32 %v237, %v479
    %v481 = vpop.f32.mrf.mxu0
    %482 = vmatprep.mubr.bf16.mxu0 0
    %483 = vmatmul.mubr.bf16.gmra.mxu0 %v189
    %v484 = vpop.f32.mrf.mxu0
    %v485 = vadd.f32 %v237, %v484
    %v486 = vpop.f32.mrf.mxu0
    %v487 = vpop.f32.mrf.mxu0
    %v488 = vadd.f32 %v237, %v487
    %v489 = vpop.f32.mrf.mxu0
    %490 = vmatprep.mubr.bf16.mxu0 0
    %491 = vmatmul.mubr.bf16.gmra.mxu0 %v190
    %v492 = vpop.f32.mrf.mxu0
    %v493 = vadd.f32 %v237, %v492
    %v494 = vpop.f32.mrf.mxu0
    %v495 = vpop.f32.mrf.mxu0
    %v496 = vadd.f32 %v237, %v495
    %v497 = vpop.f32.mrf.mxu0
    %498 = vmatprep.mubr.bf16.mxu0 0
    %499 = vmatmul.mubr.bf16.gmra.mxu0 %v191
    %v500 = vpop.f32.mrf.mxu0
    %v501 = vadd.f32 %v237, %v500
    %v502 = vpop.f32.mrf.mxu0
    %v503 = vpop.f32.mrf.mxu0
    %v504 = vadd.f32 %v237, %v503
    %v505 = vpop.f32.mrf.mxu0
    %506 = vdwg.mxu0
    %v507 = vpack.c.bf16 %v404, %v404
    %v508 = vpack.c.bf16 %v408, %v408
    %v509 = vpack.c.bf16 %v414, %v414
    %v510 = vpack.c.bf16 %v418, %v418
    %v511 = vpack.c.bf16 %v424, %v424
    %v512 = vpack.c.bf16 %v428, %v428
    %v513 = vpack.c.bf16 %v434, %v434
    %v514 = vpack.c.bf16 %v438, %v438
    %v515 = vpack.c.bf16 %v406, %v406
    %v516 = vpack.c.bf16 %v410, %v410
    %v517 = vpack.c.bf16 %v416, %v416
    %v518 = vpack.c.bf16 %v420, %v420
    %v519 = vpack.c.bf16 %v426, %v426
    %v520 = vpack.c.bf16 %v430, %v430
    %v521 = vpack.c.bf16 %v436, %v436
    %v522 = vpack.c.bf16 %v440, %v440
    %523 = vmatprep.subr.bf16.mxu0 0
    %524 = vmatpush1.bf16.xpose.msra.mxu0 0
    %525 = vmatprep.subr.bf16.mxu0 0
    %526 = vmatpush1.bf16.xpose.msra.mxu0 0
    %527 = vmatprep.subr.bf16.mxu0 0
    %528 = vmatpush1.bf16.xpose.msra.mxu0 0
    %529 = vmatprep.subr.bf16.mxu0 0
    %530 = vmatpush1.bf16.xpose.msra.mxu0 0
    %531 = vmatprep.subr.bf16.mxu0 0
    %532 = vmatpush1.bf16.xpose.msra.mxu0 0
    %533 = vmatprep.subr.bf16.mxu0 0
    %534 = vmatpush1.bf16.xpose.msra.mxu0 0
    %535 = vmatprep.subr.bf16.mxu0 0
    %536 = vmatpush1.bf16.xpose.msra.mxu0 0
    %537 = vmatprep.subr.bf16.mxu0 0
    %538 = vmatpush1.bf16.xpose.msra.mxu0 %v515
    %539 = vmatprep.subr.bf16.mxu0 0
    %540 = vmatpush2.bf16.xpose.msra.mxu0 0
    %541 = vmatprep.subr.bf16.mxu0 0
    %542 = vmatpush2.bf16.xpose.msra.mxu0 0
    %543 = vmatprep.subr.bf16.mxu0 0
    %544 = vmatpush2.bf16.xpose.msra.mxu0 0
    %545 = vmatprep.subr.bf16.mxu0 0
    %546 = vmatpush2.bf16.xpose.msra.mxu0 0
    %547 = vmatprep.subr.bf16.mxu0 0
    %548 = vmatpush2.bf16.xpose.msra.mxu0 0
    %549 = vmatprep.subr.bf16.mxu0 0
    %550 = vmatpush2.bf16.xpose.msra.mxu0 0
    %551 = vmatprep.subr.bf16.mxu0 0
    %552 = vmatpush2.bf16.xpose.msra.mxu0 0
    %553 = vmatprep.subr.bf16.mxu0 0
    %554 = vmatpush2.bf16.xpose.msra.mxu0 0
    %555 = vmatprep.mubr.bf16.mxu0 0
    %556 = vmatmul.mubr.bf16.gmra.mxu0 %v507
    %v557 = vpop.f32.mrf.mxu0
    %v558 = vadd.f32 0.0, %v557
    %v559 = vpop.f32.mrf.mxu0
    %v560 = vpop.f32.mrf.mxu0
    %v561 = vpop.f32.mrf.mxu0
    %562 = vdwg.mxu0
    %563 = vmatprep.subr.bf16.mxu0 0
    %564 = vmatpush1.bf16.xpose.msra.mxu0 0
    %565 = vmatprep.subr.bf16.mxu0 0
    %566 = vmatpush1.bf16.xpose.msra.mxu0 0
    %567 = vmatprep.subr.bf16.mxu0 0
    %568 = vmatpush1.bf16.xpose.msra.mxu0 0
    %569 = vmatprep.subr.bf16.mxu0 0
    %570 = vmatpush1.bf16.xpose.msra.mxu0 0
    %571 = vmatprep.subr.bf16.mxu0 0
    %572 = vmatpush1.bf16.xpose.msra.mxu0 0
    %573 = vmatprep.subr.bf16.mxu0 0
    %574 = vmatpush1.bf16.xpose.msra.mxu0 0
    %575 = vmatprep.subr.bf16.mxu0 0
    %576 = vmatpush1.bf16.xpose.msra.mxu0 0
    %577 = vmatprep.subr.bf16.mxu0 0
    %578 = vmatpush1.bf16.xpose.msra.mxu0 %v516
    %579 = vmatprep.subr.bf16.mxu0 0
    %580 = vmatpush2.bf16.xpose.msra.mxu0 0
    %581 = vmatprep.subr.bf16.mxu0 0
    %582 = vmatpush2.bf16.xpose.msra.mxu0 0
    %583 = vmatprep.subr.bf16.mxu0 0
    %584 = vmatpush2.bf16.xpose.msra.mxu0 0
    %585 = vmatprep.subr.bf16.mxu0 0
    %586 = vmatpush2.bf16.xpose.msra.mxu0 0
    %587 = vmatprep.subr.bf16.mxu0 0
    %588 = vmatpush2.bf16.xpose.msra.mxu0 0
    %589 = vmatprep.subr.bf16.mxu0 0
    %590 = vmatpush2.bf16.xpose.msra.mxu0 0
    %591 = vmatprep.subr.bf16.mxu0 0
    %592 = vmatpush2.bf16.xpose.msra.mxu0 0
    %593 = vmatprep.subr.bf16.mxu0 0
    %594 = vmatpush2.bf16.xpose.msra.mxu0 0
    %595 = vmatprep.mubr.bf16.mxu0 0
    %596 = vmatmul.mubr.bf16.gmra.mxu0 %v508
    %v597 = vpop.f32.mrf.mxu0
    %v598 = vadd.f32 0.0, %v597
    %v599 = vpop.f32.mrf.mxu0
    %v600 = vpop.f32.mrf.mxu0
    %v601 = vpop.f32.mrf.mxu0
    %602 = vdwg.mxu0
    %603 = vmatprep.subr.bf16.mxu0 0
    %604 = vmatpush1.bf16.xpose.msra.mxu0 0
    %605 = vmatprep.subr.bf16.mxu0 0
    %606 = vmatpush1.bf16.xpose.msra.mxu0 0
    %607 = vmatprep.subr.bf16.mxu0 0
    %608 = vmatpush1.bf16.xpose.msra.mxu0 0
    %609 = vmatprep.subr.bf16.mxu0 0
    %610 = vmatpush1.bf16.xpose.msra.mxu0 0
    %611 = vmatprep.subr.bf16.mxu0 0
    %612 = vmatpush1.bf16.xpose.msra.mxu0 0
    %613 = vmatprep.subr.bf16.mxu0 0
    %614 = vmatpush1.bf16.xpose.msra.mxu0 0
    %615 = vmatprep.subr.bf16.mxu0 0
    %616 = vmatpush1.bf16.xpose.msra.mxu0 0
    %617 = vmatprep.subr.bf16.mxu0 0
    %618 = vmatpush1.bf16.xpose.msra.mxu0 %v517
    %619 = vmatprep.subr.bf16.mxu0 0
    %620 = vmatpush2.bf16.xpose.msra.mxu0 0
    %621 = vmatprep.subr.bf16.mxu0 0
    %622 = vmatpush2.bf16.xpose.msra.mxu0 0
    %623 = vmatprep.subr.bf16.mxu0 0
    %624 = vmatpush2.bf16.xpose.msra.mxu0 0
    %625 = vmatprep.subr.bf16.mxu0 0
    %626 = vmatpush2.bf16.xpose.msra.mxu0 0
    %627 = vmatprep.subr.bf16.mxu0 0
    %628 = vmatpush2.bf16.xpose.msra.mxu0 0
    %629 = vmatprep.subr.bf16.mxu0 0
    %630 = vmatpush2.bf16.xpose.msra.mxu0 0
    %631 = vmatprep.subr.bf16.mxu0 0
    %632 = vmatpush2.bf16.xpose.msra.mxu0 0
    %633 = vmatprep.subr.bf16.mxu0 0
    %634 = vmatpush2.bf16.xpose.msra.mxu0 0
    %635 = vmatprep.mubr.bf16.mxu0 0
    %636 = vmatmul.mubr.bf16.gmra.mxu0 %v509
    %v637 = vpop.f32.mrf.mxu0
    %v638 = vadd.f32 0.0, %v637
    %v639 = vpop.f32.mrf.mxu0
    %v640 = vpop.f32.mrf.mxu0
    %v641 = vpop.f32.mrf.mxu0
    %642 = vdwg.mxu0
    %643 = vmatprep.subr.bf16.mxu0 0
    %644 = vmatpush1.bf16.xpose.msra.mxu0 0
    %645 = vmatprep.subr.bf16.mxu0 0
    %646 = vmatpush1.bf16.xpose.msra.mxu0 0
    %647 = vmatprep.subr.bf16.mxu0 0
    %648 = vmatpush1.bf16.xpose.msra.mxu0 0
    %649 = vmatprep.subr.bf16.mxu0 0
    %650 = vmatpush1.bf16.xpose.msra.mxu0 0
    %651 = vmatprep.subr.bf16.mxu0 0
    %652 = vmatpush1.bf16.xpose.msra.mxu0 0
    %653 = vmatprep.subr.bf16.mxu0 0
    %654 = vmatpush1.bf16.xpose.msra.mxu0 0
    %655 = vmatprep.subr.bf16.mxu0 0
    %656 = vmatpush1.bf16.xpose.msra.mxu0 0
    %657 = vmatprep.subr.bf16.mxu0 0
    %658 = vmatpush1.bf16.xpose.msra.mxu0 %v518
    %659 = vmatprep.subr.bf16.mxu0 0
    %660 = vmatpush2.bf16.xpose.msra.mxu0 0
    %661 = vmatprep.subr.bf16.mxu0 0
    %662 = vmatpush2.bf16.xpose.msra.mxu0 0
    %663 = vmatprep.subr.bf16.mxu0 0
    %664 = vmatpush2.bf16.xpose.msra.mxu0 0
    %665 = vmatprep.subr.bf16.mxu0 0
    %666 = vmatpush2.bf16.xpose.msra.mxu0 0
    %667 = vmatprep.subr.bf16.mxu0 0
    %668 = vmatpush2.bf16.xpose.msra.mxu0 0
    %669 = vmatprep.subr.bf16.mxu0 0
    %670 = vmatpush2.bf16.xpose.msra.mxu0 0
    %671 = vmatprep.subr.bf16.mxu0 0
    %672 = vmatpush2.bf16.xpose.msra.mxu0 0
    %673 = vmatprep.subr.bf16.mxu0 0
    %674 = vmatpush2.bf16.xpose.msra.mxu0 0
    %675 = vmatprep.mubr.bf16.mxu0 0
    %676 = vmatmul.mubr.bf16.gmra.mxu0 %v510
    %v677 = vpop.f32.mrf.mxu0
    %v678 = vadd.f32 0.0, %v677
    %v679 = vpop.f32.mrf.mxu0
    %v680 = vpop.f32.mrf.mxu0
    %v681 = vpop.f32.mrf.mxu0
    %682 = vdwg.mxu0
    %683 = vmatprep.subr.bf16.mxu0 0
    %684 = vmatpush1.bf16.xpose.msra.mxu0 0
    %685 = vmatprep.subr.bf16.mxu0 0
    %686 = vmatpush1.bf16.xpose.msra.mxu0 0
    %687 = vmatprep.subr.bf16.mxu0 0
    %688 = vmatpush1.bf16.xpose.msra.mxu0 0
    %689 = vmatprep.subr.bf16.mxu0 0
    %690 = vmatpush1.bf16.xpose.msra.mxu0 0
    %691 = vmatprep.subr.bf16.mxu0 0
    %692 = vmatpush1.bf16.xpose.msra.mxu0 0
    %693 = vmatprep.subr.bf16.mxu0 0
    %694 = vmatpush1.bf16.xpose.msra.mxu0 0
    %695 = vmatprep.subr.bf16.mxu0 0
    %696 = vmatpush1.bf16.xpose.msra.mxu0 0
    %697 = vmatprep.subr.bf16.mxu0 0
    %698 = vmatpush1.bf16.xpose.msra.mxu0 %v519
    %699 = vmatprep.subr.bf16.mxu0 0
    %700 = vmatpush2.bf16.xpose.msra.mxu0 0
    %701 = vmatprep.subr.bf16.mxu0 0
    %702 = vmatpush2.bf16.xpose.msra.mxu0 0
    %703 = vmatprep.subr.bf16.mxu0 0
    %704 = vmatpush2.bf16.xpose.msra.mxu0 0
    %705 = vmatprep.subr.bf16.mxu0 0
    %706 = vmatpush2.bf16.xpose.msra.mxu0 0
    %707 = vmatprep.subr.bf16.mxu0 0
    %708 = vmatpush2.bf16.xpose.msra.mxu0 0
    %709 = vmatprep.subr.bf16.mxu0 0
    %710 = vmatpush2.bf16.xpose.msra.mxu0 0
    %711 = vmatprep.subr.bf16.mxu0 0
    %712 = vmatpush2.bf16.xpose.msra.mxu0 0
    %713 = vmatprep.subr.bf16.mxu0 0
    %714 = vmatpush2.bf16.xpose.msra.mxu0 0
    %715 = vmatprep.mubr.bf16.mxu0 0
    %716 = vmatmul.mubr.bf16.gmra.mxu0 %v511
    %v717 = vpop.f32.mrf.mxu0
    %v718 = vadd.f32 0.0, %v717
    %v719 = vpop.f32.mrf.mxu0
    %v720 = vpop.f32.mrf.mxu0
    %v721 = vpop.f32.mrf.mxu0
    %722 = vdwg.mxu0
    %723 = vmatprep.subr.bf16.mxu0 0
    %724 = vmatpush1.bf16.xpose.msra.mxu0 0
    %725 = vmatprep.subr.bf16.mxu0 0
    %726 = vmatpush1.bf16.xpose.msra.mxu0 0
    %727 = vmatprep.subr.bf16.mxu0 0
    %728 = vmatpush1.bf16.xpose.msra.mxu0 0
    %729 = vmatprep.subr.bf16.mxu0 0
    %730 = vmatpush1.bf16.xpose.msra.mxu0 0
    %731 = vmatprep.subr.bf16.mxu0 0
    %732 = vmatpush1.bf16.xpose.msra.mxu0 0
    %733 = vmatprep.subr.bf16.mxu0 0
    %734 = vmatpush1.bf16.xpose.msra.mxu0 0
    %735 = vmatprep.subr.bf16.mxu0 0
    %736 = vmatpush1.bf16.xpose.msra.mxu0 0
    %737 = vmatprep.subr.bf16.mxu0 0
    %738 = vmatpush1.bf16.xpose.msra.mxu0 %v520
    %739 = vmatprep.subr.bf16.mxu0 0
    %740 = vmatpush2.bf16.xpose.msra.mxu0 0
    %741 = vmatprep.subr.bf16.mxu0 0
    %742 = vmatpush2.bf16.xpose.msra.mxu0 0
    %743 = vmatprep.subr.bf16.mxu0 0
    %744 = vmatpush2.bf16.xpose.msra.mxu0 0
    %745 = vmatprep.subr.bf16.mxu0 0
    %746 = vmatpush2.bf16.xpose.msra.mxu0 0
    %747 = vmatprep.subr.bf16.mxu0 0
    %748 = vmatpush2.bf16.xpose.msra.mxu0 0
    %749 = vmatprep.subr.bf16.mxu0 0
    %750 = vmatpush2.bf16.xpose.msra.mxu0 0
    %751 = vmatprep.subr.bf16.mxu0 0
    %752 = vmatpush2.bf16.xpose.msra.mxu0 0
    %753 = vmatprep.subr.bf16.mxu0 0
    %754 = vmatpush2.bf16.xpose.msra.mxu0 0
    %755 = vmatprep.mubr.bf16.mxu0 0
    %756 = vmatmul.mubr.bf16.gmra.mxu0 %v512
    %v757 = vpop.f32.mrf.mxu0
    %v758 = vadd.f32 0.0, %v757
    %v759 = vpop.f32.mrf.mxu0
    %v760 = vpop.f32.mrf.mxu0
    %v761 = vpop.f32.mrf.mxu0
    %762 = vdwg.mxu0
    %763 = vmatprep.subr.bf16.mxu0 0
    %764 = vmatpush1.bf16.xpose.msra.mxu0 0
    %765 = vmatprep.subr.bf16.mxu0 0
    %766 = vmatpush1.bf16.xpose.msra.mxu0 0
    %767 = vmatprep.subr.bf16.mxu0 0
    %768 = vmatpush1.bf16.xpose.msra.mxu0 0
    %769 = vmatprep.subr.bf16.mxu0 0
    %770 = vmatpush1.bf16.xpose.msra.mxu0 0
    %771 = vmatprep.subr.bf16.mxu0 0
    %772 = vmatpush1.bf16.xpose.msra.mxu0 0
    %773 = vmatprep.subr.bf16.mxu0 0
    %774 = vmatpush1.bf16.xpose.msra.mxu0 0
    %775 = vmatprep.subr.bf16.mxu0 0
    %776 = vmatpush1.bf16.xpose.msra.mxu0 0
    %777 = vmatprep.subr.bf16.mxu0 0
    %778 = vmatpush1.bf16.xpose.msra.mxu0 %v521
    %779 = vmatprep.subr.bf16.mxu0 0
    %780 = vmatpush2.bf16.xpose.msra.mxu0 0
    %781 = vmatprep.subr.bf16.mxu0 0
    %782 = vmatpush2.bf16.xpose.msra.mxu0 0
    %783 = vmatprep.subr.bf16.mxu0 0
    %784 = vmatpush2.bf16.xpose.msra.mxu0 0
    %785 = vmatprep.subr.bf16.mxu0 0
    %786 = vmatpush2.bf16.xpose.msra.mxu0 0
    %787 = vmatprep.subr.bf16.mxu0 0
    %788 = vmatpush2.bf16.xpose.msra.mxu0 0
    %789 = vmatprep.subr.bf16.mxu0 0
    %790 = vmatpush2.bf16.xpose.msra.mxu0 0
    %791 = vmatprep.subr.bf16.mxu0 0
    %792 = vmatpush2.bf16.xpose.msra.mxu0 0
    %793 = vmatprep.subr.bf16.mxu0 0
    %794 = vmatpush2.bf16.xpose.msra.mxu0 0
    %795 = vmatprep.mubr.bf16.mxu0 0
    %796 = vmatmul.mubr.bf16.gmra.mxu0 %v513
    %v797 = vpop.f32.mrf.mxu0
    %v798 = vadd.f32 0.0, %v797
    %v799 = vpop.f32.mrf.mxu0
    %v800 = vpop.f32.mrf.mxu0
    %v801 = vpop.f32.mrf.mxu0
    %802 = vdwg.mxu0
    %803 = vmatprep.subr.bf16.mxu0 0
    %804 = vmatpush1.bf16.xpose.msra.mxu0 0
    %805 = vmatprep.subr.bf16.mxu0 0
    %806 = vmatpush1.bf16.xpose.msra.mxu0 0
    %807 = vmatprep.subr.bf16.mxu0 0
    %808 = vmatpush1.bf16.xpose.msra.mxu0 0
    %809 = vmatprep.subr.bf16.mxu0 0
    %810 = vmatpush1.bf16.xpose.msra.mxu0 0
    %811 = vmatprep.subr.bf16.mxu0 0
    %812 = vmatpush1.bf16.xpose.msra.mxu0 0
    %813 = vmatprep.subr.bf16.mxu0 0
    %814 = vmatpush1.bf16.xpose.msra.mxu0 0
    %815 = vmatprep.subr.bf16.mxu0 0
    %816 = vmatpush1.bf16.xpose.msra.mxu0 0
    %817 = vmatprep.subr.bf16.mxu0 0
    %818 = vmatpush1.bf16.xpose.msra.mxu0 %v522
    %819 = vmatprep.subr.bf16.mxu0 0
    %820 = vmatpush2.bf16.xpose.msra.mxu0 0
    %821 = vmatprep.subr.bf16.mxu0 0
    %822 = vmatpush2.bf16.xpose.msra.mxu0 0
    %823 = vmatprep.subr.bf16.mxu0 0
    %824 = vmatpush2.bf16.xpose.msra.mxu0 0
    %825 = vmatprep.subr.bf16.mxu0 0
    %826 = vmatpush2.bf16.xpose.msra.mxu0 0
    %827 = vmatprep.subr.bf16.mxu0 0
    %828 = vmatpush2.bf16.xpose.msra.mxu0 0
    %829 = vmatprep.subr.bf16.mxu0 0
    %830 = vmatpush2.bf16.xpose.msra.mxu0 0
    %831 = vmatprep.subr.bf16.mxu0 0
    %832 = vmatpush2.bf16.xpose.msra.mxu0 0
    %833 = vmatprep.subr.bf16.mxu0 0
    %834 = vmatpush2.bf16.xpose.msra.mxu0 0
    %835 = vmatprep.mubr.bf16.mxu0 0
    %836 = vmatmul.mubr.bf16.gmra.mxu0 %v514
    %v837 = vpop.f32.mrf.mxu0
    %v838 = vadd.f32 0.0, %v837
    %v839 = vpop.f32.mrf.mxu0
    %v840 = vpop.f32.mrf.mxu0
    %v841 = vpop.f32.mrf.mxu0
    %842 = vdwg.mxu0
    %v843 = vmul.f32 %v558, 0.088388346
    %v844 = vmul.f32 %v598, 0.088388346
    %v845 = vmul.f32 %v638, 0.088388346
    %v846 = vmul.f32 %v678, 0.088388346
    %v847 = vmul.f32 %v718, 0.088388346
    %v848 = vmul.f32 %v758, 0.088388346
    %v849 = vmul.f32 %v798, 0.088388346
    %v850 = vmul.f32 %v838, 0.088388346
    %vm851 = vcmask 64512
    %v852 = vsel %vm851, %v843, -inf
    %853 = vmax.xlane.f32.xlu0 %v852
    %v854 = vpop.xlane.xlu0 %853
    %v855 = vsel %vm851, %v844, -inf
    %856 = vmax.xlane.f32.xlu0 %v855
    %v857 = vpop.xlane.xlu0 %856
    %v858 = vsel %vm851, %v845, -inf
    %859 = vmax.xlane.f32.xlu0 %v858
    %v860 = vpop.xlane.xlu0 %859
    %v861 = vsel %vm851, %v846, -inf
    %862 = vmax.xlane.f32.xlu0 %v861
    %v863 = vpop.xlane.xlu0 %862
    %v864 = vsel %vm851, %v847, -inf
    %865 = vmax.xlane.f32.xlu0 %v864
    %v866 = vpop.xlane.xlu0 %865
    %v867 = vsel %vm851, %v848, -inf
    %868 = vmax.xlane.f32.xlu0 %v867
    %v869 = vpop.xlane.xlu0 %868
    %v870 = vsel %vm851, %v849, -inf
    %871 = vmax.xlane.f32.xlu0 %v870
    %v872 = vpop.xlane.xlu0 %871
    %v873 = vsel %vm851, %v850, -inf
    %874 = vmax.xlane.f32.xlu0 %v873
    %v875 = vpop.xlane.xlu0 %874
    %v876 = vsub.f32 %v843, %v854
    %v877 = vsub.f32 %v844, %v857
    %v878 = vsub.f32 %v845, %v860
    %v879 = vsub.f32 %v846, %v863
    %v880 = vsub.f32 %v847, %v866
    %v881 = vsub.f32 %v848, %v869
    %v882 = vsub.f32 %v849, %v872
    %v883 = vsub.f32 %v850, %v875
    %v884 = vmul.f32 %v876, 1.442695
    %v885 = vpow.pop %v884
    %v886 = vmul.f32 %v877, 1.442695
    %v887 = vpow.pop %v886
    %v888 = vmul.f32 %v878, 1.442695
    %v889 = vpow.pop %v888
    %v890 = vmul.f32 %v879, 1.442695
    %v891 = vpow.pop %v890
    %v892 = vmul.f32 %v880, 1.442695
    %v893 = vpow.pop %v892
    %v894 = vmul.f32 %v881, 1.442695
    %v895 = vpow.pop %v894
    %v896 = vmul.f32 %v882, 1.442695
    %v897 = vpow.pop %v896
    %v898 = vmul.f32 %v883, 1.442695
    %v899 = vpow.pop %v898
    %v900 = vsel %vm851, %v885, 0.0
    %901 = vadd.xlane.f32.xlu0 %v900
    %v902 = vpop.xlane.xlu0 %901
    %v903 = vsel %vm851, %v887, 0.0
    %904 = vadd.xlane.f32.xlu0 %v903
    %v905 = vpop.xlane.xlu0 %904
    %v906 = vsel %vm851, %v889, 0.0
    %907 = vadd.xlane.f32.xlu0 %v906
    %v908 = vpop.xlane.xlu0 %907
    %v909 = vsel %vm851, %v891, 0.0
    %910 = vadd.xlane.f32.xlu0 %v909
    %v911 = vpop.xlane.xlu0 %910
    %v912 = vsel %vm851, %v893, 0.0
    %913 = vadd.xlane.f32.xlu0 %v912
    %v914 = vpop.xlane.xlu0 %913
    %v915 = vsel %vm851, %v895, 0.0
    %916 = vadd.xlane.f32.xlu0 %v915
    %v917 = vpop.xlane.xlu0 %916
    %v918 = vsel %vm851, %v897, 0.0
    %919 = vadd.xlane.f32.xlu0 %v918
    %v920 = vpop.xlane.xlu0 %919
    %v921 = vsel %vm851, %v899, 0.0
    %922 = vadd.xlane.f32.xlu0 %v921
    %v923 = vpop.xlane.xlu0 %922
    %v924 = vrcp.pop %v902
    %v925 = vrcp.pop %v905
    %v926 = vrcp.pop %v908
    %v927 = vrcp.pop %v911
    %v928 = vrcp.pop %v914
    %v929 = vrcp.pop %v917
    %v930 = vrcp.pop %v920
    %v931 = vrcp.pop %v923
    %v932 = vmul.f32 %v885, %v924
    %v933 = vmul.f32 %v887, %v925
    %v934 = vmul.f32 %v889, %v926
    %v935 = vmul.f32 %v891, %v927
    %v936 = vmul.f32 %v893, %v928
    %v937 = vmul.f32 %v895, %v929
    %v938 = vmul.f32 %v897, %v930
    %v939 = vmul.f32 %v899, %v931
    %v940 = vpack.c.bf16 %v932, %v932
    %v941 = vpack.c.bf16 %v933, %v933
    %v942 = vpack.c.bf16 %v934, %v934
    %v943 = vpack.c.bf16 %v935, %v935
    %v944 = vpack.c.bf16 %v936, %v936
    %v945 = vpack.c.bf16 %v937, %v937
    %v946 = vpack.c.bf16 %v938, %v938
    %v947 = vpack.c.bf16 %v939, %v939
    %v948 = vpack.c.bf16 %v477, %v477
    %v949 = vpack.c.bf16 %v480, %v480
    %v950 = vpack.c.bf16 %v485, %v485
    %v951 = vpack.c.bf16 %v488, %v488
    %v952 = vpack.c.bf16 %v493, %v493
    %v953 = vpack.c.bf16 %v496, %v496
    %v954 = vpack.c.bf16 %v501, %v501
    %v955 = vpack.c.bf16 %v504, %v504
    %v957 = vsel %vm851, %v940, 0
    %vm959 = vcmask 1043456
    %v961 = vsel %vm959, %v948, 0
    %963 = vmatprep.subr.bf16.mxu0 0
    %964 = vmatpush1.bf16.msra.mxu0 0
    %965 = vmatprep.subr.bf16.mxu0 0
    %966 = vmatpush1.bf16.msra.mxu0 0
    %967 = vmatprep.subr.bf16.mxu0 0
    %968 = vmatpush1.bf16.msra.mxu0 0
    %969 = vmatprep.subr.bf16.mxu0 0
    %970 = vmatpush1.bf16.msra.mxu0 0
    %971 = vmatprep.subr.bf16.mxu0 0
    %972 = vmatpush1.bf16.msra.mxu0 0
    %973 = vmatprep.subr.bf16.mxu0 0
    %974 = vmatpush1.bf16.msra.mxu0 0
    %975 = vmatprep.subr.bf16.mxu0 0
    %976 = vmatpush1.bf16.msra.mxu0 0
    %977 = vmatprep.subr.bf16.mxu0 0
    %978 = vmatpush1.bf16.msra.mxu0 %v961
    %979 = vmatprep.subr.bf16.mxu0 0
    %980 = vmatpush2.bf16.msra.mxu0 0
    %981 = vmatprep.subr.bf16.mxu0 0
    %982 = vmatpush2.bf16.msra.mxu0 0
    %983 = vmatprep.subr.bf16.mxu0 0
    %984 = vmatpush2.bf16.msra.mxu0 0
    %985 = vmatprep.subr.bf16.mxu0 0
    %986 = vmatpush2.bf16.msra.mxu0 0
    %987 = vmatprep.subr.bf16.mxu0 0
    %988 = vmatpush2.bf16.msra.mxu0 0
    %989 = vmatprep.subr.bf16.mxu0 0
    %990 = vmatpush2.bf16.msra.mxu0 0
    %991 = vmatprep.subr.bf16.mxu0 0
    %992 = vmatpush2.bf16.msra.mxu0 0
    %993 = vmatprep.subr.bf16.mxu0 0
    %994 = vmatpush2.bf16.msra.mxu0 0
    %995 = vmatprep.mubr.bf16.mxu0 0
    %996 = vmatmul.mubr.bf16.gmra.mxu0 %v957
    %v997 = vpop.f32.mrf.mxu0
    %v998 = vadd.f32 0.0, %v997
    %v999 = vpop.f32.mrf.mxu0
    %v1000 = vpop.f32.mrf.mxu0
    %v1001 = vpop.f32.mrf.mxu0
    %1002 = vdwg.mxu0
    %v1004 = vsel %vm851, %v941, 0
    %v1007 = vsel %vm959, %v949, 0
    %1009 = vmatprep.subr.bf16.mxu0 0
    %1010 = vmatpush1.bf16.msra.mxu0 0
    %1011 = vmatprep.subr.bf16.mxu0 0
    %1012 = vmatpush1.bf16.msra.mxu0 0
    %1013 = vmatprep.subr.bf16.mxu0 0
    %1014 = vmatpush1.bf16.msra.mxu0 0
    %1015 = vmatprep.subr.bf16.mxu0 0
    %1016 = vmatpush1.bf16.msra.mxu0 0
    %1017 = vmatprep.subr.bf16.mxu0 0
    %1018 = vmatpush1.bf16.msra.mxu0 0
    %1019 = vmatprep.subr.bf16.mxu0 0
    %1020 = vmatpush1.bf16.msra.mxu0 0
    %1021 = vmatprep.subr.bf16.mxu0 0
    %1022 = vmatpush1.bf16.msra.mxu0 0
    %1023 = vmatprep.subr.bf16.mxu0 0
    %1024 = vmatpush1.bf16.msra.mxu0 %v1007
    %1025 = vmatprep.subr.bf16.mxu0 0
    %1026 = vmatpush2.bf16.msra.mxu0 0
    %1027 = vmatprep.subr.bf16.mxu0 0
    %1028 = vmatpush2.bf16.msra.mxu0 0
    %1029 = vmatprep.subr.bf16.mxu0 0
    %1030 = vmatpush2.bf16.msra.mxu0 0
    %1031 = vmatprep.subr.bf16.mxu0 0
    %1032 = vmatpush2.bf16.msra.mxu0 0
    %1033 = vmatprep.subr.bf16.mxu0 0
    %1034 = vmatpush2.bf16.msra.mxu0 0
    %1035 = vmatprep.subr.bf16.mxu0 0
    %1036 = vmatpush2.bf16.msra.mxu0 0
    %1037 = vmatprep.subr.bf16.mxu0 0
    %1038 = vmatpush2.bf16.msra.mxu0 0
    %1039 = vmatprep.subr.bf16.mxu0 0
    %1040 = vmatpush2.bf16.msra.mxu0 0
    %1041 = vmatprep.mubr.bf16.mxu0 0
    %1042 = vmatmul.mubr.bf16.gmra.mxu0 %v1004
    %v1043 = vpop.f32.mrf.mxu0
    %v1044 = vadd.f32 0.0, %v1043
    %v1045 = vpop.f32.mrf.mxu0
    %v1046 = vpop.f32.mrf.mxu0
    %v1047 = vpop.f32.mrf.mxu0
    %1048 = vdwg.mxu0
    %v1050 = vsel %vm851, %v942, 0
    %v1053 = vsel %vm959, %v950, 0
    %1055 = vmatprep.subr.bf16.mxu0 0
    %1056 = vmatpush1.bf16.msra.mxu0 0
    %1057 = vmatprep.subr.bf16.mxu0 0
    %1058 = vmatpush1.bf16.msra.mxu0 0
    %1059 = vmatprep.subr.bf16.mxu0 0
    %1060 = vmatpush1.bf16.msra.mxu0 0
    %1061 = vmatprep.subr.bf16.mxu0 0
    %1062 = vmatpush1.bf16.msra.mxu0 0
    %1063 = vmatprep.subr.bf16.mxu0 0
    %1064 = vmatpush1.bf16.msra.mxu0 0
    %1065 = vmatprep.subr.bf16.mxu0 0
    %1066 = vmatpush1.bf16.msra.mxu0 0
    %1067 = vmatprep.subr.bf16.mxu0 0
    %1068 = vmatpush1.bf16.msra.mxu0 0
    %1069 = vmatprep.subr.bf16.mxu0 0
    %1070 = vmatpush1.bf16.msra.mxu0 %v1053
    %1071 = vmatprep.subr.bf16.mxu0 0
    %1072 = vmatpush2.bf16.msra.mxu0 0
    %1073 = vmatprep.subr.bf16.mxu0 0
    %1074 = vmatpush2.bf16.msra.mxu0 0
    %1075 = vmatprep.subr.bf16.mxu0 0
    %1076 = vmatpush2.bf16.msra.mxu0 0
    %1077 = vmatprep.subr.bf16.mxu0 0
    %1078 = vmatpush2.bf16.msra.mxu0 0
    %1079 = vmatprep.subr.bf16.mxu0 0
    %1080 = vmatpush2.bf16.msra.mxu0 0
    %1081 = vmatprep.subr.bf16.mxu0 0
    %1082 = vmatpush2.bf16.msra.mxu0 0
    %1083 = vmatprep.subr.bf16.mxu0 0
    %1084 = vmatpush2.bf16.msra.mxu0 0
    %1085 = vmatprep.subr.bf16.mxu0 0
    %1086 = vmatpush2.bf16.msra.mxu0 0
    %1087 = vmatprep.mubr.bf16.mxu0 0
    %1088 = vmatmul.mubr.bf16.gmra.mxu0 %v1050
    %v1089 = vpop.f32.mrf.mxu0
    %v1090 = vadd.f32 0.0, %v1089
    %v1091 = vpop.f32.mrf.mxu0
    %v1092 = vpop.f32.mrf.mxu0
    %v1093 = vpop.f32.mrf.mxu0
    %1094 = vdwg.mxu0
    %v1096 = vsel %vm851, %v943, 0
    %v1099 = vsel %vm959, %v951, 0
    %1101 = vmatprep.subr.bf16.mxu0 0
    %1102 = vmatpush1.bf16.msra.mxu0 0
    %1103 = vmatprep.subr.bf16.mxu0 0
    %1104 = vmatpush1.bf16.msra.mxu0 0
    %1105 = vmatprep.subr.bf16.mxu0 0
    %1106 = vmatpush1.bf16.msra.mxu0 0
    %1107 = vmatprep.subr.bf16.mxu0 0
    %1108 = vmatpush1.bf16.msra.mxu0 0
    %1109 = vmatprep.subr.bf16.mxu0 0
    %1110 = vmatpush1.bf16.msra.mxu0 0
    %1111 = vmatprep.subr.bf16.mxu0 0
    %1112 = vmatpush1.bf16.msra.mxu0 0
    %1113 = vmatprep.subr.bf16.mxu0 0
    %1114 = vmatpush1.bf16.msra.mxu0 0
    %1115 = vmatprep.subr.bf16.mxu0 0
    %1116 = vmatpush1.bf16.msra.mxu0 %v1099
    %1117 = vmatprep.subr.bf16.mxu0 0
    %1118 = vmatpush2.bf16.msra.mxu0 0
    %1119 = vmatprep.subr.bf16.mxu0 0
    %1120 = vmatpush2.bf16.msra.mxu0 0
    %1121 = vmatprep.subr.bf16.mxu0 0
    %1122 = vmatpush2.bf16.msra.mxu0 0
    %1123 = vmatprep.subr.bf16.mxu0 0
    %1124 = vmatpush2.bf16.msra.mxu0 0
    %1125 = vmatprep.subr.bf16.mxu0 0
    %1126 = vmatpush2.bf16.msra.mxu0 0
    %1127 = vmatprep.subr.bf16.mxu0 0
    %1128 = vmatpush2.bf16.msra.mxu0 0
    %1129 = vmatprep.subr.bf16.mxu0 0
    %1130 = vmatpush2.bf16.msra.mxu0 0
    %1131 = vmatprep.subr.bf16.mxu0 0
    %1132 = vmatpush2.bf16.msra.mxu0 0
    %1133 = vmatprep.mubr.bf16.mxu0 0
    %1134 = vmatmul.mubr.bf16.gmra.mxu0 %v1096
    %v1135 = vpop.f32.mrf.mxu0
    %v1136 = vadd.f32 0.0, %v1135
    %v1137 = vpop.f32.mrf.mxu0
    %v1138 = vpop.f32.mrf.mxu0
    %v1139 = vpop.f32.mrf.mxu0
    %1140 = vdwg.mxu0
    %v1142 = vsel %vm851, %v944, 0
    %v1145 = vsel %vm959, %v952, 0
    %1147 = vmatprep.subr.bf16.mxu0 0
    %1148 = vmatpush1.bf16.msra.mxu0 0
    %1149 = vmatprep.subr.bf16.mxu0 0
    %1150 = vmatpush1.bf16.msra.mxu0 0
    %1151 = vmatprep.subr.bf16.mxu0 0
    %1152 = vmatpush1.bf16.msra.mxu0 0
    %1153 = vmatprep.subr.bf16.mxu0 0
    %1154 = vmatpush1.bf16.msra.mxu0 0
    %1155 = vmatprep.subr.bf16.mxu0 0
    %1156 = vmatpush1.bf16.msra.mxu0 0
    %1157 = vmatprep.subr.bf16.mxu0 0
    %1158 = vmatpush1.bf16.msra.mxu0 0
    %1159 = vmatprep.subr.bf16.mxu0 0
    %1160 = vmatpush1.bf16.msra.mxu0 0
    %1161 = vmatprep.subr.bf16.mxu0 0
    %1162 = vmatpush1.bf16.msra.mxu0 %v1145
    %1163 = vmatprep.subr.bf16.mxu0 0
    %1164 = vmatpush2.bf16.msra.mxu0 0
    %1165 = vmatprep.subr.bf16.mxu0 0
    %1166 = vmatpush2.bf16.msra.mxu0 0
    %1167 = vmatprep.subr.bf16.mxu0 0
    %1168 = vmatpush2.bf16.msra.mxu0 0
    %1169 = vmatprep.subr.bf16.mxu0 0
    %1170 = vmatpush2.bf16.msra.mxu0 0
    %1171 = vmatprep.subr.bf16.mxu0 0
    %1172 = vmatpush2.bf16.msra.mxu0 0
    %1173 = vmatprep.subr.bf16.mxu0 0
    %1174 = vmatpush2.bf16.msra.mxu0 0
    %1175 = vmatprep.subr.bf16.mxu0 0
    %1176 = vmatpush2.bf16.msra.mxu0 0
    %1177 = vmatprep.subr.bf16.mxu0 0
    %1178 = vmatpush2.bf16.msra.mxu0 0
    %1179 = vmatprep.mubr.bf16.mxu0 0
    %1180 = vmatmul.mubr.bf16.gmra.mxu0 %v1142
    %v1181 = vpop.f32.mrf.mxu0
    %v1182 = vadd.f32 0.0, %v1181
    %v1183 = vpop.f32.mrf.mxu0
    %v1184 = vpop.f32.mrf.mxu0
    %v1185 = vpop.f32.mrf.mxu0
    %1186 = vdwg.mxu0
    %v1188 = vsel %vm851, %v945, 0
    %v1191 = vsel %vm959, %v953, 0
    %1193 = vmatprep.subr.bf16.mxu0 0
    %1194 = vmatpush1.bf16.msra.mxu0 0
    %1195 = vmatprep.subr.bf16.mxu0 0
    %1196 = vmatpush1.bf16.msra.mxu0 0
    %1197 = vmatprep.subr.bf16.mxu0 0
    %1198 = vmatpush1.bf16.msra.mxu0 0
    %1199 = vmatprep.subr.bf16.mxu0 0
    %1200 = vmatpush1.bf16.msra.mxu0 0
    %1201 = vmatprep.subr.bf16.mxu0 0
    %1202 = vmatpush1.bf16.msra.mxu0 0
    %1203 = vmatprep.subr.bf16.mxu0 0
    %1204 = vmatpush1.bf16.msra.mxu0 0
    %1205 = vmatprep.subr.bf16.mxu0 0
    %1206 = vmatpush1.bf16.msra.mxu0 0
    %1207 = vmatprep.subr.bf16.mxu0 0
    %1208 = vmatpush1.bf16.msra.mxu0 %v1191
    %1209 = vmatprep.subr.bf16.mxu0 0
    %1210 = vmatpush2.bf16.msra.mxu0 0
    %1211 = vmatprep.subr.bf16.mxu0 0
    %1212 = vmatpush2.bf16.msra.mxu0 0
    %1213 = vmatprep.subr.bf16.mxu0 0
    %1214 = vmatpush2.bf16.msra.mxu0 0
    %1215 = vmatprep.subr.bf16.mxu0 0
    %1216 = vmatpush2.bf16.msra.mxu0 0
    %1217 = vmatprep.subr.bf16.mxu0 0
    %1218 = vmatpush2.bf16.msra.mxu0 0
    %1219 = vmatprep.subr.bf16.mxu0 0
    %1220 = vmatpush2.bf16.msra.mxu0 0
    %1221 = vmatprep.subr.bf16.mxu0 0
    %1222 = vmatpush2.bf16.msra.mxu0 0
    %1223 = vmatprep.subr.bf16.mxu0 0
    %1224 = vmatpush2.bf16.msra.mxu0 0
    %1225 = vmatprep.mubr.bf16.mxu0 0
    %1226 = vmatmul.mubr.bf16.gmra.mxu0 %v1188
    %v1227 = vpop.f32.mrf.mxu0
    %v1228 = vadd.f32 0.0, %v1227
    %v1229 = vpop.f32.mrf.mxu0
    %v1230 = vpop.f32.mrf.mxu0
    %v1231 = vpop.f32.mrf.mxu0
    %1232 = vdwg.mxu0
    %v1234 = vsel %vm851, %v946, 0
    %v1237 = vsel %vm959, %v954, 0
    %1239 = vmatprep.subr.bf16.mxu0 0
    %1240 = vmatpush1.bf16.msra.mxu0 0
    %1241 = vmatprep.subr.bf16.mxu0 0
    %1242 = vmatpush1.bf16.msra.mxu0 0
    %1243 = vmatprep.subr.bf16.mxu0 0
    %1244 = vmatpush1.bf16.msra.mxu0 0
    %1245 = vmatprep.subr.bf16.mxu0 0
    %1246 = vmatpush1.bf16.msra.mxu0 0
    %1247 = vmatprep.subr.bf16.mxu0 0
    %1248 = vmatpush1.bf16.msra.mxu0 0
    %1249 = vmatprep.subr.bf16.mxu0 0
    %1250 = vmatpush1.bf16.msra.mxu0 0
    %1251 = vmatprep.subr.bf16.mxu0 0
    %1252 = vmatpush1.bf16.msra.mxu0 0
    %1253 = vmatprep.subr.bf16.mxu0 0
    %1254 = vmatpush1.bf16.msra.mxu0 %v1237
    %1255 = vmatprep.subr.bf16.mxu0 0
    %1256 = vmatpush2.bf16.msra.mxu0 0
    %1257 = vmatprep.subr.bf16.mxu0 0
    %1258 = vmatpush2.bf16.msra.mxu0 0
    %1259 = vmatprep.subr.bf16.mxu0 0
    %1260 = vmatpush2.bf16.msra.mxu0 0
    %1261 = vmatprep.subr.bf16.mxu0 0
    %1262 = vmatpush2.bf16.msra.mxu0 0
    %1263 = vmatprep.subr.bf16.mxu0 0
    %1264 = vmatpush2.bf16.msra.mxu0 0
    %1265 = vmatprep.subr.bf16.mxu0 0
    %1266 = vmatpush2.bf16.msra.mxu0 0
    %1267 = vmatprep.subr.bf16.mxu0 0
    %1268 = vmatpush2.bf16.msra.mxu0 0
    %1269 = vmatprep.subr.bf16.mxu0 0
    %1270 = vmatpush2.bf16.msra.mxu0 0
    %1271 = vmatprep.mubr.bf16.mxu0 0
    %1272 = vmatmul.mubr.bf16.gmra.mxu0 %v1234
    %v1273 = vpop.f32.mrf.mxu0
    %v1274 = vadd.f32 0.0, %v1273
    %v1275 = vpop.f32.mrf.mxu0
    %v1276 = vpop.f32.mrf.mxu0
    %v1277 = vpop.f32.mrf.mxu0
    %1278 = vdwg.mxu0
    %v1280 = vsel %vm851, %v947, 0
    %v1283 = vsel %vm959, %v955, 0
    %1285 = vmatprep.subr.bf16.mxu0 0
    %1286 = vmatpush1.bf16.msra.mxu0 0
    %1287 = vmatprep.subr.bf16.mxu0 0
    %1288 = vmatpush1.bf16.msra.mxu0 0
    %1289 = vmatprep.subr.bf16.mxu0 0
    %1290 = vmatpush1.bf16.msra.mxu0 0
    %1291 = vmatprep.subr.bf16.mxu0 0
    %1292 = vmatpush1.bf16.msra.mxu0 0
    %1293 = vmatprep.subr.bf16.mxu0 0
    %1294 = vmatpush1.bf16.msra.mxu0 0
    %1295 = vmatprep.subr.bf16.mxu0 0
    %1296 = vmatpush1.bf16.msra.mxu0 0
    %1297 = vmatprep.subr.bf16.mxu0 0
    %1298 = vmatpush1.bf16.msra.mxu0 0
    %1299 = vmatprep.subr.bf16.mxu0 0
    %1300 = vmatpush1.bf16.msra.mxu0 %v1283
    %1301 = vmatprep.subr.bf16.mxu0 0
    %1302 = vmatpush2.bf16.msra.mxu0 0
    %1303 = vmatprep.subr.bf16.mxu0 0
    %1304 = vmatpush2.bf16.msra.mxu0 0
    %1305 = vmatprep.subr.bf16.mxu0 0
    %1306 = vmatpush2.bf16.msra.mxu0 0
    %1307 = vmatprep.subr.bf16.mxu0 0
    %1308 = vmatpush2.bf16.msra.mxu0 0
    %1309 = vmatprep.subr.bf16.mxu0 0
    %1310 = vmatpush2.bf16.msra.mxu0 0
    %1311 = vmatprep.subr.bf16.mxu0 0
    %1312 = vmatpush2.bf16.msra.mxu0 0
    %1313 = vmatprep.subr.bf16.mxu0 0
    %1314 = vmatpush2.bf16.msra.mxu0 0
    %1315 = vmatprep.subr.bf16.mxu0 0
    %1316 = vmatpush2.bf16.msra.mxu0 0
    %1317 = vmatprep.mubr.bf16.mxu0 0
    %1318 = vmatmul.mubr.bf16.gmra.mxu0 %v1280
    %v1319 = vpop.f32.mrf.mxu0
    %v1320 = vadd.f32 0.0, %v1319
    %v1321 = vpop.f32.mrf.mxu0
    %v1322 = vpop.f32.mrf.mxu0
    %v1323 = vpop.f32.mrf.mxu0
    %1324 = vdwg.mxu0
    %v1325 = vpack.c.bf16 %v1044, %v998
    %v1326 = vpack.c.bf16 %v1136, %v1090
    %v1327 = vpack.c.bf16 %v1228, %v1182
    %v1328 = vpack.c.bf16 %v1320, %v1274
    %v1329 = vld [vmem:[%s4] sm:$0xf]
    %v1330 = vld [vmem:[%s4 + $0x4] sm:$0xf]
    %v1331 = vld [vmem:[%s4 + $0x8] sm:$0xf]
    %v1332 = vld [vmem:[%s4 + $0xc] sm:$0xf]
    %v1333 = vld [vmem:[%s4 + $0x10] sm:$0xf]
    %v1334 = vld [vmem:[%s4 + $0x14] sm:$0xf]
    %v1335 = vld [vmem:[%s4 + $0x18] sm:$0xf]
    %v1336 = vld [vmem:[%s4 + $0x1c] sm:$0xf]
    %v1337 = vld [vmem:[%s4 + $0x20] sm:$0xf]
    %v1338 = vld [vmem:[%s4 + $0x24] sm:$0xf]
    %v1339 = vld [vmem:[%s4 + $0x28] sm:$0xf]
    %v1340 = vld [vmem:[%s4 + $0x2c] sm:$0xf]
    %v1341 = vld [vmem:[%s4 + $0x30] sm:$0xf]
    %v1342 = vld [vmem:[%s4 + $0x34] sm:$0xf]
    %v1343 = vld [vmem:[%s4 + $0x38] sm:$0xf]
    %v1344 = vld [vmem:[%s4 + $0x3c] sm:$0xf]
    %v1345 = vld [vmem:[%s5] sm:$0x1]
    %v1347 = vlaneseq
    %v1348 = vshrl.u32 %v1347, 7
    %v1349 = vsub.s32 0, %v1348
    %v1350 = vrot.slane %v1345, %v1349
    %v1368 = vunpack.c.l.b16 %v1329
    %v1369 = vunpack.c.l.b16 %v1330
    %v1370 = vunpack.c.l.b16 %v1331
    %v1371 = vunpack.c.l.b16 %v1332
    %v1372 = vunpack.c.l.b16 %v1333
    %v1373 = vunpack.c.l.b16 %v1334
    %v1374 = vunpack.c.l.b16 %v1335
    %v1375 = vunpack.c.l.b16 %v1336
    %v1376 = vunpack.c.l.b16 %v1337
    %v1377 = vunpack.c.l.b16 %v1338
    %v1378 = vunpack.c.l.b16 %v1339
    %v1379 = vunpack.c.l.b16 %v1340
    %v1380 = vunpack.c.l.b16 %v1341
    %v1381 = vunpack.c.l.b16 %v1342
    %v1382 = vunpack.c.l.b16 %v1343
    %v1383 = vunpack.c.l.b16 %v1344
    %v1384 = vpack.c.b16 %v1369, %v1368
    %v1385 = vpack.c.b16 %v1371, %v1370
    %v1386 = vpack.c.b16 %v1373, %v1372
    %v1387 = vpack.c.b16 %v1375, %v1374
    %v1388 = vpack.c.b16 %v1377, %v1376
    %v1389 = vpack.c.b16 %v1379, %v1378
    %v1390 = vpack.c.b16 %v1381, %v1380
    %v1391 = vpack.c.b16 %v1383, %v1382
    %1400 = vmatprep.subr.bf16.mxu0 0
    %1401 = vmatpush1.bf16.msra.mxu0 %v1391
    %1402 = vmatprep.subr.bf16.mxu0 0
    %1403 = vmatpush1.bf16.msra.mxu0 %v1390
    %1404 = vmatprep.subr.bf16.mxu0 0
    %1405 = vmatpush1.bf16.msra.mxu0 %v1389
    %1406 = vmatprep.subr.bf16.mxu0 0
    %1407 = vmatpush1.bf16.msra.mxu0 %v1388
    %1408 = vmatprep.subr.bf16.mxu0 0
    %1409 = vmatpush1.bf16.msra.mxu0 %v1387
    %1410 = vmatprep.subr.bf16.mxu0 0
    %1411 = vmatpush1.bf16.msra.mxu0 %v1386
    %1412 = vmatprep.subr.bf16.mxu0 0
    %1413 = vmatpush1.bf16.msra.mxu0 %v1385
    %1414 = vmatprep.subr.bf16.mxu0 0
    %1415 = vmatpush1.bf16.msra.mxu0 %v1384
    %1416 = vmatprep.subr.bf16.mxu0 0
    %1417 = vmatpush2.bf16.msra.mxu0 0
    %1418 = vmatprep.subr.bf16.mxu0 0
    %1419 = vmatpush2.bf16.msra.mxu0 0
    %1420 = vmatprep.subr.bf16.mxu0 0
    %1421 = vmatpush2.bf16.msra.mxu0 0
    %1422 = vmatprep.subr.bf16.mxu0 0
    %1423 = vmatpush2.bf16.msra.mxu0 0
    %1424 = vmatprep.subr.bf16.mxu0 0
    %1425 = vmatpush2.bf16.msra.mxu0 0
    %1426 = vmatprep.subr.bf16.mxu0 0
    %1427 = vmatpush2.bf16.msra.mxu0 0
    %1428 = vmatprep.subr.bf16.mxu0 0
    %1429 = vmatpush2.bf16.msra.mxu0 0
    %1430 = vmatprep.subr.bf16.mxu0 0
    %1431 = vmatpush2.bf16.msra.mxu0 0
    %1432 = vmatprep.mubr.bf16.mxu0 0
    %1433 = vmatmul.mubr.bf16.gmra.mxu0 %v1325
    %v1434 = vpop.f32.mrf.mxu0
    %v1435 = vadd.f32 %v1350, %v1434
    %v1436 = vpop.f32.mrf.mxu0
    %v1437 = vpop.f32.mrf.mxu0
    %v1438 = vadd.f32 %v1350, %v1437
    %v1439 = vpop.f32.mrf.mxu0
    %1440 = vmatprep.mubr.bf16.mxu0 0
    %1441 = vmatmul.mubr.bf16.gmra.mxu0 %v1326
    %v1442 = vpop.f32.mrf.mxu0
    %v1443 = vadd.f32 %v1350, %v1442
    %v1444 = vpop.f32.mrf.mxu0
    %v1445 = vpop.f32.mrf.mxu0
    %v1446 = vadd.f32 %v1350, %v1445
    %v1447 = vpop.f32.mrf.mxu0
    %1448 = vmatprep.mubr.bf16.mxu0 0
    %1449 = vmatmul.mubr.bf16.gmra.mxu0 %v1327
    %v1450 = vpop.f32.mrf.mxu0
    %v1451 = vadd.f32 %v1350, %v1450
    %v1452 = vpop.f32.mrf.mxu0
    %v1453 = vpop.f32.mrf.mxu0
    %v1454 = vadd.f32 %v1350, %v1453
    %v1455 = vpop.f32.mrf.mxu0
    %1456 = vmatprep.mubr.bf16.mxu0 0
    %1457 = vmatmul.mubr.bf16.gmra.mxu0 %v1328
    %v1458 = vpop.f32.mrf.mxu0
    %v1459 = vadd.f32 %v1350, %v1458
    %v1460 = vpop.f32.mrf.mxu0
    %v1461 = vpop.f32.mrf.mxu0
    %v1462 = vadd.f32 %v1350, %v1461
    %v1463 = vpop.f32.mrf.mxu0
    %1464 = vdwg.mxu0
    %v1465 = vld [vmem:[%s6] sm:$0x1]
    %v1466 = vld [vmem:[%s7] sm:$0x1]
    %1467 = vadd.xlane.f32.xlu0 %v1435
    %v1468 = vpop.xlane.xlu0 %1467
    %1469 = vadd.xlane.f32.xlu0 %v1438
    %v1470 = vpop.xlane.xlu0 %1469
    %1471 = vadd.xlane.f32.xlu0 %v1443
    %v1472 = vpop.xlane.xlu0 %1471
    %1473 = vadd.xlane.f32.xlu0 %v1446
    %v1474 = vpop.xlane.xlu0 %1473
    %1475 = vadd.xlane.f32.xlu0 %v1451
    %v1476 = vpop.xlane.xlu0 %1475
    %1477 = vadd.xlane.f32.xlu0 %v1454
    %v1478 = vpop.xlane.xlu0 %1477
    %1479 = vadd.xlane.f32.xlu0 %v1459
    %v1480 = vpop.xlane.xlu0 %1479
    %1481 = vadd.xlane.f32.xlu0 %v1462
    %v1482 = vpop.xlane.xlu0 %1481
    %v1483 = vrcp.pop 128.0
    %v1484 = vmul.f32 %v1468, %v1483
    %v1485 = vmul.f32 %v1470, %v1483
    %v1486 = vmul.f32 %v1472, %v1483
    %v1487 = vmul.f32 %v1474, %v1483
    %v1488 = vmul.f32 %v1476, %v1483
    %v1489 = vmul.f32 %v1478, %v1483
    %v1490 = vmul.f32 %v1480, %v1483
    %v1491 = vmul.f32 %v1482, %v1483
    %v1492 = vsub.f32 %v1435, %v1484
    %v1493 = vsub.f32 %v1438, %v1485
    %v1494 = vsub.f32 %v1443, %v1486
    %v1495 = vsub.f32 %v1446, %v1487
    %v1496 = vsub.f32 %v1451, %v1488
    %v1497 = vsub.f32 %v1454, %v1489
    %v1498 = vsub.f32 %v1459, %v1490
    %v1499 = vsub.f32 %v1462, %v1491
    %v1500 = vmul.f32 %v1492, %v1492
    %v1501 = vmul.f32 %v1493, %v1493
    %v1502 = vmul.f32 %v1494, %v1494
    %v1503 = vmul.f32 %v1495, %v1495
    %v1504 = vmul.f32 %v1496, %v1496
    %v1505 = vmul.f32 %v1497, %v1497
    %v1506 = vmul.f32 %v1498, %v1498
    %v1507 = vmul.f32 %v1499, %v1499
    %1508 = vadd.xlane.f32.xlu0 %v1500
    %v1509 = vpop.xlane.xlu0 %1508
    %1510 = vadd.xlane.f32.xlu0 %v1501
    %v1511 = vpop.xlane.xlu0 %1510
    %1512 = vadd.xlane.f32.xlu0 %v1502
    %v1513 = vpop.xlane.xlu0 %1512
    %1514 = vadd.xlane.f32.xlu0 %v1503
    %v1515 = vpop.xlane.xlu0 %1514
    %1516 = vadd.xlane.f32.xlu0 %v1504
    %v1517 = vpop.xlane.xlu0 %1516
    %1518 = vadd.xlane.f32.xlu0 %v1505
    %v1519 = vpop.xlane.xlu0 %1518
    %1520 = vadd.xlane.f32.xlu0 %v1506
    %v1521 = vpop.xlane.xlu0 %1520
    %1522 = vadd.xlane.f32.xlu0 %v1507
    %v1523 = vpop.xlane.xlu0 %1522
    %v1524 = vmul.f32 %v1509, %v1483
    %v1525 = vmul.f32 %v1511, %v1483
    %v1526 = vmul.f32 %v1513, %v1483
    %v1527 = vmul.f32 %v1515, %v1483
    %v1528 = vmul.f32 %v1517, %v1483
    %v1529 = vmul.f32 %v1519, %v1483
    %v1530 = vmul.f32 %v1521, %v1483
    %v1531 = vmul.f32 %v1523, %v1483
    %v1532 = vadd.f32 %v1524, 1e-05
    %v1533 = vadd.f32 %v1525, 1e-05
    %v1534 = vadd.f32 %v1526, 1e-05
    %v1535 = vadd.f32 %v1527, 1e-05
    %v1536 = vadd.f32 %v1528, 1e-05
    %v1537 = vadd.f32 %v1529, 1e-05
    %v1538 = vadd.f32 %v1530, 1e-05
    %v1539 = vadd.f32 %v1531, 1e-05
    %v1540 = vrsqrt.pop %v1532
    %v1541 = vrsqrt.pop %v1533
    %v1542 = vrsqrt.pop %v1534
    %v1543 = vrsqrt.pop %v1535
    %v1544 = vrsqrt.pop %v1536
    %v1545 = vrsqrt.pop %v1537
    %v1546 = vrsqrt.pop %v1538
    %v1547 = vrsqrt.pop %v1539
    %v1548 = vmul.f32 %v1492, %v1540
    %v1549 = vmul.f32 %v1493, %v1541
    %v1550 = vmul.f32 %v1494, %v1542
    %v1551 = vmul.f32 %v1495, %v1543
    %v1552 = vmul.f32 %v1496, %v1544
    %v1553 = vmul.f32 %v1497, %v1545
    %v1554 = vmul.f32 %v1498, %v1546
    %v1555 = vmul.f32 %v1499, %v1547
    %v1557 = vlaneseq
    %v1558 = vshrl.u32 %v1557, 7
    %v1559 = vsub.s32 0, %v1558
    %v1560 = vrot.slane %v1465, %v1559
    %v1562 = vmul.f32 %v1548, %v1560
    %v1563 = vmul.f32 %v1549, %v1560
    %v1564 = vmul.f32 %v1550, %v1560
    %v1565 = vmul.f32 %v1551, %v1560
    %v1566 = vmul.f32 %v1552, %v1560
    %v1567 = vmul.f32 %v1553, %v1560
    %v1568 = vmul.f32 %v1554, %v1560
    %v1569 = vmul.f32 %v1555, %v1560
    %v1571 = vlaneseq
    %v1572 = vshrl.u32 %v1571, 7
    %v1573 = vsub.s32 0, %v1572
    %v1574 = vrot.slane %v1466, %v1573
    %v1576 = vadd.f32 %v1562, %v1574
    %v1577 = vadd.f32 %v1563, %v1574
    %v1578 = vadd.f32 %v1564, %v1574
    %v1579 = vadd.f32 %v1565, %v1574
    %v1580 = vadd.f32 %v1566, %v1574
    %v1581 = vadd.f32 %v1567, %v1574
    %v1582 = vadd.f32 %v1568, %v1574
    %v1583 = vadd.f32 %v1569, %v1574
    %v1584 = vpack.c.bf16 %v1577, %v1576
    %v1585 = vpack.c.bf16 %v1579, %v1578
    %v1586 = vpack.c.bf16 %v1581, %v1580
    %v1587 = vpack.c.bf16 %v1583, %v1582
    %v1588 = vld [vmem:[#allocation4] sm:$0xf]
    %v1589 = vld [vmem:[#allocation4 + $0x4] sm:$0xf]
    %v1590 = vld [vmem:[#allocation4 + $0x8] sm:$0xf]
    %v1591 = vld [vmem:[#allocation4 + $0xc] sm:$0xf]
    %v1592 = vld [vmem:[#allocation4 + $0x10] sm:$0xf]
    %v1593 = vld [vmem:[#allocation4 + $0x14] sm:$0xf]
    %v1594 = vld [vmem:[#allocation4 + $0x18] sm:$0xf]
    %v1595 = vld [vmem:[#allocation4 + $0x1c] sm:$0xf]
    %v1596 = vld [vmem:[#allocation4 + $0x20] sm:$0xf]
    %v1597 = vld [vmem:[#allocation4 + $0x24] sm:$0xf]
    %v1598 = vld [vmem:[#allocation4 + $0x28] sm:$0xf]
    %v1599 = vld [vmem:[#allocation4 + $0x2c] sm:$0xf]
    %v1600 = vld [vmem:[#allocation4 + $0x30] sm:$0xf]
    %v1601 = vld [vmem:[#allocation4 + $0x34] sm:$0xf]
    %v1602 = vld [vmem:[#allocation4 + $0x38] sm:$0xf]
    %v1603 = vld [vmem:[#allocation4 + $0x3c] sm:$0xf]
    %v1604 = vld [vmem:[%s9] sm:$0x1]
    %v1606 = vlaneseq
    %v1607 = vshrl.u32 %v1606, 7
    %v1608 = vsub.s32 0, %v1607
    %v1609 = vrot.slane %v1604, %v1608
    %v1627 = vunpack.c.l.b16 %v1588
    %v1628 = vunpack.c.l.b16 %v1589
    %v1629 = vunpack.c.l.b16 %v1590
    %v1630 = vunpack.c.l.b16 %v1591
    %v1631 = vunpack.c.l.b16 %v1592
    %v1632 = vunpack.c.l.b16 %v1593
    %v1633 = vunpack.c.l.b16 %v1594
    %v1634 = vunpack.c.l.b16 %v1595
    %v1635 = vunpack.c.l.b16 %v1596
    %v1636 = vunpack.c.l.b16 %v1597
    %v1637 = vunpack.c.l.b16 %v1598
    %v1638 = vunpack.c.l.b16 %v1599
    %v1639 = vunpack.c.l.b16 %v1600
    %v1640 = vunpack.c.l.b16 %v1601
    %v1641 = vunpack.c.l.b16 %v1602
    %v1642 = vunpack.c.l.b16 %v1603
    %v1643 = vpack.c.b16 %v1628, %v1627
    %v1644 = vpack.c.b16 %v1630, %v1629
    %v1645 = vpack.c.b16 %v1632, %v1631
    %v1646 = vpack.c.b16 %v1634, %v1633
    %v1647 = vpack.c.b16 %v1636, %v1635
    %v1648 = vpack.c.b16 %v1638, %v1637
    %v1649 = vpack.c.b16 %v1640, %v1639
    %v1650 = vpack.c.b16 %v1642, %v1641
    %1659 = vmatprep.subr.bf16.mxu0 0
    %1660 = vmatpush1.bf16.msra.mxu0 %v1650
    %1661 = vmatprep.subr.bf16.mxu0 0
    %1662 = vmatpush1.bf16.msra.mxu0 %v1649
    %1663 = vmatprep.subr.bf16.mxu0 0
    %1664 = vmatpush1.bf16.msra.mxu0 %v1648
    %1665 = vmatprep.subr.bf16.mxu0 0
    %1666 = vmatpush1.bf16.msra.mxu0 %v1647
    %1667 = vmatprep.subr.bf16.mxu0 0
    %1668 = vmatpush1.bf16.msra.mxu0 %v1646
    %1669 = vmatprep.subr.bf16.mxu0 0
    %1670 = vmatpush1.bf16.msra.mxu0 %v1645
    %1671 = vmatprep.subr.bf16.mxu0 0
    %1672 = vmatpush1.bf16.msra.mxu0 %v1644
    %1673 = vmatprep.subr.bf16.mxu0 0
    %1674 = vmatpush1.bf16.msra.mxu0 %v1643
    %1675 = vmatprep.subr.bf16.mxu0 0
    %1676 = vmatpush2.bf16.msra.mxu0 0
    %1677 = vmatprep.subr.bf16.mxu0 0
    %1678 = vmatpush2.bf16.msra.mxu0 0
    %1679 = vmatprep.subr.bf16.mxu0 0
    %1680 = vmatpush2.bf16.msra.mxu0 0
    %1681 = vmatprep.subr.bf16.mxu0 0
    %1682 = vmatpush2.bf16.msra.mxu0 0
    %1683 = vmatprep.subr.bf16.mxu0 0
    %1684 = vmatpush2.bf16.msra.mxu0 0
    %1685 = vmatprep.subr.bf16.mxu0 0
    %1686 = vmatpush2.bf16.msra.mxu0 0
    %1687 = vmatprep.subr.bf16.mxu0 0
    %1688 = vmatpush2.bf16.msra.mxu0 0
    %1689 = vmatprep.subr.bf16.mxu0 0
    %1690 = vmatpush2.bf16.msra.mxu0 0
    %1691 = vmatprep.mubr.bf16.mxu0 0
    %1692 = vmatmul.mubr.bf16.gmra.mxu0 %v1584
    %v1693 = vpop.f32.mrf.mxu0
    %v1694 = vadd.f32 %v1609, %v1693
    %v1695 = vpop.f32.mrf.mxu0
    %v1696 = vpop.f32.mrf.mxu0
    %v1697 = vadd.f32 %v1609, %v1696
    %v1698 = vpop.f32.mrf.mxu0
    %1699 = vmatprep.mubr.bf16.mxu0 0
    %1700 = vmatmul.mubr.bf16.gmra.mxu0 %v1585
    %v1701 = vpop.f32.mrf.mxu0
    %v1702 = vadd.f32 %v1609, %v1701
    %v1703 = vpop.f32.mrf.mxu0
    %v1704 = vpop.f32.mrf.mxu0
    %v1705 = vadd.f32 %v1609, %v1704
    %v1706 = vpop.f32.mrf.mxu0
    %1707 = vmatprep.mubr.bf16.mxu0 0
    %1708 = vmatmul.mubr.bf16.gmra.mxu0 %v1586
    %v1709 = vpop.f32.mrf.mxu0
    %v1710 = vadd.f32 %v1609, %v1709
    %v1711 = vpop.f32.mrf.mxu0
    %v1712 = vpop.f32.mrf.mxu0
    %v1713 = vadd.f32 %v1609, %v1712
    %v1714 = vpop.f32.mrf.mxu0
    %1715 = vmatprep.mubr.bf16.mxu0 0
    %1716 = vmatmul.mubr.bf16.gmra.mxu0 %v1587
    %v1717 = vpop.f32.mrf.mxu0
    %v1718 = vadd.f32 %v1609, %v1717
    %v1719 = vpop.f32.mrf.mxu0
    %v1720 = vpop.f32.mrf.mxu0
    %v1721 = vadd.f32 %v1609, %v1720
    %v1722 = vpop.f32.mrf.mxu0
    %1723 = vdwg.mxu0
    %v1724 = vmax.f32 %v1694, 0.0
    %v1725 = vmax.f32 %v1697, 0.0
    %v1726 = vmax.f32 %v1702, 0.0
    %v1727 = vmax.f32 %v1705, 0.0
    %v1728 = vmax.f32 %v1710, 0.0
    %v1729 = vmax.f32 %v1713, 0.0
    %v1730 = vmax.f32 %v1718, 0.0
    %v1731 = vmax.f32 %v1721, 0.0
    %v1732 = vpack.c.bf16 %v1725, %v1724
    %v1733 = vpack.c.bf16 %v1727, %v1726
    %v1734 = vpack.c.bf16 %v1729, %v1728
    %v1735 = vpack.c.bf16 %v1731, %v1730
    %v1736 = vld [vmem:[#allocation6] sm:$0xf]
    %v1737 = vld [vmem:[#allocation6 + $0x4] sm:$0xf]
    %v1738 = vld [vmem:[#allocation6 + $0x8] sm:$0xf]
    %v1739 = vld [vmem:[#allocation6 + $0xc] sm:$0xf]
    %v1740 = vld [vmem:[#allocation6 + $0x10] sm:$0xf]
    %v1741 = vld [vmem:[#allocation6 + $0x14] sm:$0xf]
    %v1742 = vld [vmem:[#allocation6 + $0x18] sm:$0xf]
    %v1743 = vld [vmem:[#allocation6 + $0x1c] sm:$0xf]
    %v1744 = vld [vmem:[#allocation6 + $0x20] sm:$0xf]
    %v1745 = vld [vmem:[#allocation6 + $0x24] sm:$0xf]
    %v1746 = vld [vmem:[#allocation6 + $0x28] sm:$0xf]
    %v1747 = vld [vmem:[#allocation6 + $0x2c] sm:$0xf]
    %v1748 = vld [vmem:[#allocation6 + $0x30] sm:$0xf]
    %v1749 = vld [vmem:[#allocation6 + $0x34] sm:$0xf]
    %v1750 = vld [vmem:[#allocation6 + $0x38] sm:$0xf]
    %v1751 = vld [vmem:[#allocation6 + $0x3c] sm:$0xf]
    %v1752 = vld [vmem:[%s11] sm:$0x1]
    %v1754 = vlaneseq
    %v1755 = vshrl.u32 %v1754, 7
    %v1756 = vsub.s32 0, %v1755
    %v1757 = vrot.slane %v1752, %v1756
    %v1775 = vunpack.c.l.b16 %v1736
    %v1776 = vunpack.c.l.b16 %v1737
    %v1777 = vunpack.c.l.b16 %v1738
    %v1778 = vunpack.c.l.b16 %v1739
    %v1779 = vunpack.c.l.b16 %v1740
    %v1780 = vunpack.c.l.b16 %v1741
    %v1781 = vunpack.c.l.b16 %v1742
    %v1782 = vunpack.c.l.b16 %v1743
    %v1783 = vunpack.c.l.b16 %v1744
    %v1784 = vunpack.c.l.b16 %v1745
    %v1785 = vunpack.c.l.b16 %v1746
    %v1786 = vunpack.c.l.b16 %v1747
    %v1787 = vunpack.c.l.b16 %v1748
    %v1788 = vunpack.c.l.b16 %v1749
    %v1789 = vunpack.c.l.b16 %v1750
    %v1790 = vunpack.c.l.b16 %v1751
    %v1791 = vpack.c.b16 %v1776, %v1775
    %v1792 = vpack.c.b16 %v1778, %v1777
    %v1793 = vpack.c.b16 %v1780, %v1779
    %v1794 = vpack.c.b16 %v1782, %v1781
    %v1795 = vpack.c.b16 %v1784, %v1783
    %v1796 = vpack.c.b16 %v1786, %v1785
    %v1797 = vpack.c.b16 %v1788, %v1787
    %v1798 = vpack.c.b16 %v1790, %v1789
    %1807 = vmatprep.subr.bf16.mxu0 0
    %1808 = vmatpush1.bf16.msra.mxu0 %v1798
    %1809 = vmatprep.subr.bf16.mxu0 0
    %1810 = vmatpush1.bf16.msra.mxu0 %v1797
    %1811 = vmatprep.subr.bf16.mxu0 0
    %1812 = vmatpush1.bf16.msra.mxu0 %v1796
    %1813 = vmatprep.subr.bf16.mxu0 0
    %1814 = vmatpush1.bf16.msra.mxu0 %v1795
    %1815 = vmatprep.subr.bf16.mxu0 0
    %1816 = vmatpush1.bf16.msra.mxu0 %v1794
    %1817 = vmatprep.subr.bf16.mxu0 0
    %1818 = vmatpush1.bf16.msra.mxu0 %v1793
    %1819 = vmatprep.subr.bf16.mxu0 0
    %1820 = vmatpush1.bf16.msra.mxu0 %v1792
    %1821 = vmatprep.subr.bf16.mxu0 0
    %1822 = vmatpush1.bf16.msra.mxu0 %v1791
    %1823 = vmatprep.subr.bf16.mxu0 0
    %1824 = vmatpush2.bf16.msra.mxu0 0
    %1825 = vmatprep.subr.bf16.mxu0 0
    %1826 = vmatpush2.bf16.msra.mxu0 0
    %1827 = vmatprep.subr.bf16.mxu0 0
    %1828 = vmatpush2.bf16.msra.mxu0 0
    %1829 = vmatprep.subr.bf16.mxu0 0
    %1830 = vmatpush2.bf16.msra.mxu0 0
    %1831 = vmatprep.subr.bf16.mxu0 0
    %1832 = vmatpush2.bf16.msra.mxu0 0
    %1833 = vmatprep.subr.bf16.mxu0 0
    %1834 = vmatpush2.bf16.msra.mxu0 0
    %1835 = vmatprep.subr.bf16.mxu0 0
    %1836 = vmatpush2.bf16.msra.mxu0 0
    %1837 = vmatprep.subr.bf16.mxu0 0
    %1838 = vmatpush2.bf16.msra.mxu0 0
    %1839 = vmatprep.mubr.bf16.mxu0 0
    %1840 = vmatmul.mubr.bf16.gmra.mxu0 %v1732
    %v1841 = vpop.f32.mrf.mxu0
    %v1842 = vadd.f32 %v1757, %v1841
    %v1843 = vpop.f32.mrf.mxu0
    %v1844 = vpop.f32.mrf.mxu0
    %v1845 = vadd.f32 %v1757, %v1844
    %v1846 = vpop.f32.mrf.mxu0
    %1847 = vmatprep.mubr.bf16.mxu0 0
    %1848 = vmatmul.mubr.bf16.gmra.mxu0 %v1733
    %v1849 = vpop.f32.mrf.mxu0
    %v1850 = vadd.f32 %v1757, %v1849
    %v1851 = vpop.f32.mrf.mxu0
    %v1852 = vpop.f32.mrf.mxu0
    %v1853 = vadd.f32 %v1757, %v1852
    %v1854 = vpop.f32.mrf.mxu0
    %1855 = vmatprep.mubr.bf16.mxu0 0
    %1856 = vmatmul.mubr.bf16.gmra.mxu0 %v1734
    %v1857 = vpop.f32.mrf.mxu0
    %v1858 = vadd.f32 %v1757, %v1857
    %v1859 = vpop.f32.mrf.mxu0
    %v1860 = vpop.f32.mrf.mxu0
    %v1861 = vadd.f32 %v1757, %v1860
    %v1862 = vpop.f32.mrf.mxu0
    %1863 = vmatprep.mubr.bf16.mxu0 0
    %1864 = vmatmul.mubr.bf16.gmra.mxu0 %v1735
    %v1865 = vpop.f32.mrf.mxu0
    %v1866 = vadd.f32 %v1757, %v1865
    %v1867 = vpop.f32.mrf.mxu0
    %v1868 = vpop.f32.mrf.mxu0
    %v1869 = vadd.f32 %v1757, %v1868
    %v1870 = vpop.f32.mrf.mxu0
    %1871 = vdwg.mxu0
    %v1872 = vadd.f32 %v1576, %v1842
    %v1873 = vadd.f32 %v1577, %v1845
    %v1874 = vadd.f32 %v1578, %v1850
    %v1875 = vadd.f32 %v1579, %v1853
    %v1876 = vadd.f32 %v1580, %v1858
    %v1877 = vadd.f32 %v1581, %v1861
    %v1878 = vadd.f32 %v1582, %v1866
    %v1879 = vadd.f32 %v1583, %v1869
    %v1880 = vld [vmem:[#allocation7] sm:$0x1]
    %v1881 = vld [vmem:[#allocation9] sm:$0x1]
    %1882 = vadd.xlane.f32.xlu0 %v1872
    %v1883 = vpop.xlane.xlu0 %1882
    %1884 = vadd.xlane.f32.xlu0 %v1873
    %v1885 = vpop.xlane.xlu0 %1884
    %1886 = vadd.xlane.f32.xlu0 %v1874
    %v1887 = vpop.xlane.xlu0 %1886
    %1888 = vadd.xlane.f32.xlu0 %v1875
    %v1889 = vpop.xlane.xlu0 %1888
    %1890 = vadd.xlane.f32.xlu0 %v1876
    %v1891 = vpop.xlane.xlu0 %1890
    %1892 = vadd.xlane.f32.xlu0 %v1877
    %v1893 = vpop.xlane.xlu0 %1892
    %1894 = vadd.xlane.f32.xlu0 %v1878
    %v1895 = vpop.xlane.xlu0 %1894
    %1896 = vadd.xlane.f32.xlu0 %v1879
    %v1897 = vpop.xlane.xlu0 %1896
    %v1898 = vmul.f32 %v1883, %v1483
    %v1899 = vmul.f32 %v1885, %v1483
    %v1900 = vmul.f32 %v1887, %v1483
    %v1901 = vmul.f32 %v1889, %v1483
    %v1902 = vmul.f32 %v1891, %v1483
    %v1903 = vmul.f32 %v1893, %v1483
    %v1904 = vmul.f32 %v1895, %v1483
    %v1905 = vmul.f32 %v1897, %v1483
    %v1906 = vsub.f32 %v1872, %v1898
    %v1907 = vsub.f32 %v1873, %v1899
    %v1908 = vsub.f32 %v1874, %v1900
    %v1909 = vsub.f32 %v1875, %v1901
    %v1910 = vsub.f32 %v1876, %v1902
    %v1911 = vsub.f32 %v1877, %v1903
    %v1912 = vsub.f32 %v1878, %v1904
    %v1913 = vsub.f32 %v1879, %v1905
    %v1914 = vmul.f32 %v1906, %v1906
    %v1915 = vmul.f32 %v1907, %v1907
    %v1916 = vmul.f32 %v1908, %v1908
    %v1917 = vmul.f32 %v1909, %v1909
    %v1918 = vmul.f32 %v1910, %v1910
    %v1919 = vmul.f32 %v1911, %v1911
    %v1920 = vmul.f32 %v1912, %v1912
    %v1921 = vmul.f32 %v1913, %v1913
    %1922 = vadd.xlane.f32.xlu0 %v1914
    %v1923 = vpop.xlane.xlu0 %1922
    %1924 = vadd.xlane.f32.xlu0 %v1915
    %v1925 = vpop.xlane.xlu0 %1924
    %1926 = vadd.xlane.f32.xlu0 %v1916
    %v1927 = vpop.xlane.xlu0 %1926
    %1928 = vadd.xlane.f32.xlu0 %v1917
    %v1929 = vpop.xlane.xlu0 %1928
    %1930 = vadd.xlane.f32.xlu0 %v1918
    %v1931 = vpop.xlane.xlu0 %1930
    %1932 = vadd.xlane.f32.xlu0 %v1919
    %v1933 = vpop.xlane.xlu0 %1932
    %1934 = vadd.xlane.f32.xlu0 %v1920
    %v1935 = vpop.xlane.xlu0 %1934
    %1936 = vadd.xlane.f32.xlu0 %v1921
    %v1937 = vpop.xlane.xlu0 %1936
    %v1938 = vmul.f32 %v1923, %v1483
    %v1939 = vmul.f32 %v1925, %v1483
    %v1940 = vmul.f32 %v1927, %v1483
    %v1941 = vmul.f32 %v1929, %v1483
    %v1942 = vmul.f32 %v1931, %v1483
    %v1943 = vmul.f32 %v1933, %v1483
    %v1944 = vmul.f32 %v1935, %v1483
    %v1945 = vmul.f32 %v1937, %v1483
    %v1946 = vadd.f32 %v1938, 1e-05
    %v1947 = vadd.f32 %v1939, 1e-05
    %v1948 = vadd.f32 %v1940, 1e-05
    %v1949 = vadd.f32 %v1941, 1e-05
    %v1950 = vadd.f32 %v1942, 1e-05
    %v1951 = vadd.f32 %v1943, 1e-05
    %v1952 = vadd.f32 %v1944, 1e-05
    %v1953 = vadd.f32 %v1945, 1e-05
    %v1954 = vrsqrt.pop %v1946
    %v1955 = vrsqrt.pop %v1947
    %v1956 = vrsqrt.pop %v1948
    %v1957 = vrsqrt.pop %v1949
    %v1958 = vrsqrt.pop %v1950
    %v1959 = vrsqrt.pop %v1951
    %v1960 = vrsqrt.pop %v1952
    %v1961 = vrsqrt.pop %v1953
    %v1962 = vmul.f32 %v1906, %v1954
    %v1963 = vmul.f32 %v1907, %v1955
    %v1964 = vmul.f32 %v1908, %v1956
    %v1965 = vmul.f32 %v1909, %v1957
    %v1966 = vmul.f32 %v1910, %v1958
    %v1967 = vmul.f32 %v1911, %v1959
    %v1968 = vmul.f32 %v1912, %v1960
    %v1969 = vmul.f32 %v1913, %v1961
    %v1971 = vlaneseq
    %v1972 = vshrl.u32 %v1971, 7
    %v1973 = vsub.s32 0, %v1972
    %v1974 = vrot.slane %v1880, %v1973
    %v1976 = vmul.f32 %v1962, %v1974
    %v1977 = vmul.f32 %v1963, %v1974
    %v1978 = vmul.f32 %v1964, %v1974
    %v1979 = vmul.f32 %v1965, %v1974
    %v1980 = vmul.f32 %v1966, %v1974
    %v1981 = vmul.f32 %v1967, %v1974
    %v1982 = vmul.f32 %v1968, %v1974
    %v1983 = vmul.f32 %v1969, %v1974
    %v1985 = vlaneseq
    %v1986 = vshrl.u32 %v1985, 7
    %v1987 = vsub.s32 0, %v1986
    %v1988 = vrot.slane %v1881, %v1987
    %v1990 = vadd.f32 %v1976, %v1988
    %v1991 = vadd.f32 %v1977, %v1988
    %v1992 = vadd.f32 %v1978, %v1988
    %v1993 = vadd.f32 %v1979, %v1988
    %v1994 = vadd.f32 %v1980, %v1988
    %v1995 = vadd.f32 %v1981, %v1988
    %v1996 = vadd.f32 %v1982, %v1988
    %v1997 = vadd.f32 %v1983, %v1988
    %v1998 = vpack.c.bf16 %v1991, %v1990
    %v1999 = vpack.c.bf16 %v1993, %v1992
    %v2000 = vpack.c.bf16 %v1995, %v1994
    %v2001 = vpack.c.bf16 %v1997, %v1996
    %s2002 = scalar_lea.vmem [#allocation2], 192
    %v2003 = vld [vmem:[%s2002] sm:$0xff]
    %v2004 = vld [vmem:[%s2002 + $0x8] sm:$0xf]
    %v2005 = vld [vmem:[%s2002 + $0xc] sm:$0xff]
    %v2006 = vld [vmem:[%s2002 + $0x14] sm:$0xf]
    %v2007 = vld [vmem:[%s2002 + $0x18] sm:$0xff]
    %v2008 = vld [vmem:[%s2002 + $0x20] sm:$0xf]
    %v2009 = vld [vmem:[%s2002 + $0x24] sm:$0xff]
    %v2010 = vld [vmem:[%s2002 + $0x2c] sm:$0xf]
    %v2011 = vld [vmem:[%s2002 + $0x30] sm:$0xff]
    %v2012 = vld [vmem:[%s2002 + $0x38] sm:$0xf]
    %v2013 = vld [vmem:[%s2002 + $0x3c] sm:$0xff]
    %v2014 = vld [vmem:[%s2002 + $0x44] sm:$0xf]
    %v2015 = vld [vmem:[%s2002 + $0x48] sm:$0xff]
    %v2016 = vld [vmem:[%s2002 + $0x50] sm:$0xf]
    %v2017 = vld [vmem:[%s2002 + $0x54] sm:$0xff]
    %v2018 = vld [vmem:[%s2002 + $0x5c] sm:$0xf]
    %v2019 = vld [vmem:[%s2002 + $0x60] sm:$0xff]
    %v2020 = vld [vmem:[%s2002 + $0x68] sm:$0xf]
    %v2021 = vld [vmem:[%s2002 + $0x6c] sm:$0xff]
    %v2022 = vld [vmem:[%s2002 + $0x74] sm:$0xf]
    %v2023 = vld [vmem:[%s2002 + $0x78] sm:$0xff]
    %v2024 = vld [vmem:[%s2002 + $0x80] sm:$0xf]
    %v2025 = vld [vmem:[%s2002 + $0x84] sm:$0xff]
    %v2026 = vld [vmem:[%s2002 + $0x8c] sm:$0xf]
    %v2027 = vld [vmem:[%s2002 + $0x90] sm:$0xff]
    %v2028 = vld [vmem:[%s2002 + $0x98] sm:$0xf]
    %v2029 = vld [vmem:[%s2002 + $0x9c] sm:$0xff]
    %v2030 = vld [vmem:[%s2002 + $0xa4] sm:$0xf]
    %v2031 = vld [vmem:[%s2002 + $0xa8] sm:$0xff]
    %v2032 = vld [vmem:[%s2002 + $0xb0] sm:$0xf]
    %v2033 = vld [vmem:[%s2002 + $0xb4] sm:$0xff]
    %v2034 = vld [vmem:[%s2002 + $0xbc] sm:$0xf]
    %s2035 = scalar_lea.vmem %s3, 3
    %v2036 = vld [vmem:[%s2035] sm:$0x7]
    %v2038 = vlaneseq
    %v2039 = vshrl.u32 %v2038, 7
    %v2040 = vsub.s32 0, %v2039
    %v2041 = vrot.slane %v2036, %v2040
    %v2042 = vlaneseq
    %v2043 = vshrl.u32 %v2042, 7
    %v2044 = vsub.s32 1, %v2043
    %v2045 = vrot.slane %v2036, %v2044
    %v2046 = vlaneseq
    %v2047 = vshrl.u32 %v2046, 7
    %v2048 = vsub.s32 2, %v2047
    %v2049 = vrot.slane %v2036, %v2048
    %v2085 = vunpack.c.l.b16 %v2003
    %v2086 = vunpack.c.h.b16 %v2003
    %v2087 = vunpack.c.l.b16 %v2004
    %v2088 = vunpack.c.l.b16 %v2005
    %v2089 = vunpack.c.h.b16 %v2005
    %v2090 = vunpack.c.l.b16 %v2006
    %v2091 = vunpack.c.l.b16 %v2007
    %v2092 = vunpack.c.h.b16 %v2007
    %v2093 = vunpack.c.l.b16 %v2008
    %v2094 = vunpack.c.l.b16 %v2009
    %v2095 = vunpack.c.h.b16 %v2009
    %v2096 = vunpack.c.l.b16 %v2010
    %v2097 = vunpack.c.l.b16 %v2011
    %v2098 = vunpack.c.h.b16 %v2011
    %v2099 = vunpack.c.l.b16 %v2012
    %v2100 = vunpack.c.l.b16 %v2013
    %v2101 = vunpack.c.h.b16 %v2013
    %v2102 = vunpack.c.l.b16 %v2014
    %v2103 = vunpack.c.l.b16 %v2015
    %v2104 = vunpack.c.h.b16 %v2015
    %v2105 = vunpack.c.l.b16 %v2016
    %v2106 = vunpack.c.l.b16 %v2017
    %v2107 = vunpack.c.h.b16 %v2017
    %v2108 = vunpack.c.l.b16 %v2018
    %v2109 = vunpack.c.l.b16 %v2019
    %v2110 = vunpack.c.h.b16 %v2019
    %v2111 = vunpack.c.l.b16 %v2020
    %v2112 = vunpack.c.l.b16 %v2021
    %v2113 = vunpack.c.h.b16 %v2021
    %v2114 = vunpack.c.l.b16 %v2022
    %v2115 = vunpack.c.l.b16 %v2023
    %v2116 = vunpack.c.h.b16 %v2023
    %v2117 = vunpack.c.l.b16 %v2024
    %v2118 = vunpack.c.l.b16 %v2025
    %v2119 = vunpack.c.h.b16 %v2025
    %v2120 = vunpack.c.l.b16 %v2026
    %v2121 = vunpack.c.l.b16 %v2027
    %v2122 = vunpack.c.h.b16 %v2027
    %v2123 = vunpack.c.l.b16 %v2028
    %v2124 = vunpack.c.l.b16 %v2029
    %v2125 = vunpack.c.h.b16 %v2029
    %v2126 = vunpack.c.l.b16 %v2030
    %v2127 = vunpack.c.l.b16 %v2031
    %v2128 = vunpack.c.h.b16 %v2031
    %v2129 = vunpack.c.l.b16 %v2032
    %v2130 = vunpack.c.l.b16 %v2033
    %v2131 = vunpack.c.h.b16 %v2033
    %v2132 = vunpack.c.l.b16 %v2034
    %v2133 = vpack.c.b16 %v2088, %v2085
    %v2134 = vpack.c.b16 %v2089, %v2086
    %v2135 = vpack.c.b16 %v2090, %v2087
    %v2136 = vpack.c.b16 %v2094, %v2091
    %v2137 = vpack.c.b16 %v2095, %v2092
    %v2138 = vpack.c.b16 %v2096, %v2093
    %v2139 = vpack.c.b16 %v2100, %v2097
    %v2140 = vpack.c.b16 %v2101, %v2098
    %v2141 = vpack.c.b16 %v2102, %v2099
    %v2142 = vpack.c.b16 %v2106, %v2103
    %v2143 = vpack.c.b16 %v2107, %v2104
    %v2144 = vpack.c.b16 %v2108, %v2105
    %v2145 = vpack.c.b16 %v2112, %v2109
    %v2146 = vpack.c.b16 %v2113, %v2110
    %v2147 = vpack.c.b16 %v2114, %v2111
    %v2148 = vpack.c.b16 %v2118, %v2115
    %v2149 = vpack.c.b16 %v2119, %v2116
    %v2150 = vpack.c.b16 %v2120, %v2117
    %v2151 = vpack.c.b16 %v2124, %v2121
    %v2152 = vpack.c.b16 %v2125, %v2122
    %v2153 = vpack.c.b16 %v2126, %v2123
    %v2154 = vpack.c.b16 %v2130, %v2127
    %v2155 = vpack.c.b16 %v2131, %v2128
    %v2156 = vpack.c.b16 %v2132, %v2129
    %2181 = vmatprep.subr.bf16.mxu0 %v2155
    %2182 = vmatpush1.bf16.msra.mxu0 %v2154
    %2183 = vmatprep.subr.bf16.mxu0 %v2152
    %2184 = vmatpush1.bf16.msra.mxu0 %v2151
    %2185 = vmatprep.subr.bf16.mxu0 %v2149
    %2186 = vmatpush1.bf16.msra.mxu0 %v2148
    %2187 = vmatprep.subr.bf16.mxu0 %v2146
    %2188 = vmatpush1.bf16.msra.mxu0 %v2145
    %2189 = vmatprep.subr.bf16.mxu0 %v2143
    %2190 = vmatpush1.bf16.msra.mxu0 %v2142
    %2191 = vmatprep.subr.bf16.mxu0 %v2140
    %2192 = vmatpush1.bf16.msra.mxu0 %v2139
    %2193 = vmatprep.subr.bf16.mxu0 %v2137
    %2194 = vmatpush1.bf16.msra.mxu0 %v2136
    %2195 = vmatprep.subr.bf16.mxu0 %v2134
    %2196 = vmatpush1.bf16.msra.mxu0 %v2133
    %2197 = vmatprep.subr.bf16.mxu0 0
    %2198 = vmatpush2.bf16.msra.mxu0 0
    %2199 = vmatprep.subr.bf16.mxu0 0
    %2200 = vmatpush2.bf16.msra.mxu0 0
    %2201 = vmatprep.subr.bf16.mxu0 0
    %2202 = vmatpush2.bf16.msra.mxu0 0
    %2203 = vmatprep.subr.bf16.mxu0 0
    %2204 = vmatpush2.bf16.msra.mxu0 0
    %2205 = vmatprep.subr.bf16.mxu0 0
    %2206 = vmatpush2.bf16.msra.mxu0 0
    %2207 = vmatprep.subr.bf16.mxu0 0
    %2208 = vmatpush2.bf16.msra.mxu0 0
    %2209 = vmatprep.subr.bf16.mxu0 0
    %2210 = vmatpush2.bf16.msra.mxu0 0
    %2211 = vmatprep.subr.bf16.mxu0 0
    %2212 = vmatpush2.bf16.msra.mxu0 0
    %2213 = vmatprep.mubr.bf16.mxu0 0
    %2214 = vmatmul.mubr.bf16.gmra.mxu0 %v1998
    %v2215 = vpop.f32.mrf.mxu0
    %v2216 = vadd.f32 %v2041, %v2215
    %v2217 = vpop.f32.mrf.mxu0
    %v2218 = vadd.f32 %v2045, %v2217
    %v2219 = vpop.f32.mrf.mxu0
    %v2220 = vadd.f32 %v2041, %v2219
    %v2221 = vpop.f32.mrf.mxu0
    %v2222 = vadd.f32 %v2045, %v2221
    %2223 = vmatprep.mubr.bf16.mxu0 0
    %2224 = vmatmul.mubr.bf16.gmra.mxu0 %v1999
    %v2225 = vpop.f32.mrf.mxu0
    %v2226 = vadd.f32 %v2041, %v2225
    %v2227 = vpop.f32.mrf.mxu0
    %v2228 = vadd.f32 %v2045, %v2227
    %v2229 = vpop.f32.mrf.mxu0
    %v2230 = vadd.f32 %v2041, %v2229
    %v2231 = vpop.f32.mrf.mxu0
    %v2232 = vadd.f32 %v2045, %v2231
    %2233 = vmatprep.mubr.bf16.mxu0 0
    %2234 = vmatmul.mubr.bf16.gmra.mxu0 %v2000
    %v2235 = vpop.f32.mrf.mxu0
    %v2236 = vadd.f32 %v2041, %v2235
    %v2237 = vpop.f32.mrf.mxu0
    %v2238 = vadd.f32 %v2045, %v2237
    %v2239 = vpop.f32.mrf.mxu0
    %v2240 = vadd.f32 %v2041, %v2239
    %v2241 = vpop.f32.mrf.mxu0
    %v2242 = vadd.f32 %v2045, %v2241
    %2243 = vmatprep.mubr.bf16.mxu0 0
    %2244 = vmatmul.mubr.bf16.gmra.mxu0 %v2001
    %v2245 = vpop.f32.mrf.mxu0
    %v2246 = vadd.f32 %v2041, %v2245
    %v2247 = vpop.f32.mrf.mxu0
    %v2248 = vadd.f32 %v2045, %v2247
    %v2249 = vpop.f32.mrf.mxu0
    %v2250 = vadd.f32 %v2041, %v2249
    %v2251 = vpop.f32.mrf.mxu0
    %v2252 = vadd.f32 %v2045, %v2251
    %2253 = vdwg.mxu0
    %2254 = vmatprep.subr.bf16.mxu0 0
    %2255 = vmatpush1.bf16.msra.mxu0 %v2156
    %2256 = vmatprep.subr.bf16.mxu0 0
    %2257 = vmatpush1.bf16.msra.mxu0 %v2153
    %2258 = vmatprep.subr.bf16.mxu0 0
    %2259 = vmatpush1.bf16.msra.mxu0 %v2150
    %2260 = vmatprep.subr.bf16.mxu0 0
    %2261 = vmatpush1.bf16.msra.mxu0 %v2147
    %2262 = vmatprep.subr.bf16.mxu0 0
    %2263 = vmatpush1.bf16.msra.mxu0 %v2144
    %2264 = vmatprep.subr.bf16.mxu0 0
    %2265 = vmatpush1.bf16.msra.mxu0 %v2141
    %2266 = vmatprep.subr.bf16.mxu0 0
    %2267 = vmatpush1.bf16.msra.mxu0 %v2138
    %2268 = vmatprep.subr.bf16.mxu0 0
    %2269 = vmatpush1.bf16.msra.mxu0 %v2135
    %2270 = vmatprep.subr.bf16.mxu0 0
    %2271 = vmatpush2.bf16.msra.mxu0 0
    %2272 = vmatprep.subr.bf16.mxu0 0
    %2273 = vmatpush2.bf16.msra.mxu0 0
    %2274 = vmatprep.subr.bf16.mxu0 0
    %2275 = vmatpush2.bf16.msra.mxu0 0
    %2276 = vmatprep.subr.bf16.mxu0 0
    %2277 = vmatpush2.bf16.msra.mxu0 0
    %2278 = vmatprep.subr.bf16.mxu0 0
    %2279 = vmatpush2.bf16.msra.mxu0 0
    %2280 = vmatprep.subr.bf16.mxu0 0
    %2281 = vmatpush2.bf16.msra.mxu0 0
    %2282 = vmatprep.subr.bf16.mxu0 0
    %2283 = vmatpush2.bf16.msra.mxu0 0
    %2284 = vmatprep.subr.bf16.mxu0 0
    %2285 = vmatpush2.bf16.msra.mxu0 0
    %2286 = vmatprep.mubr.bf16.mxu0 0
    %2287 = vmatmul.mubr.bf16.gmra.mxu0 %v1998
    %v2288 = vpop.f32.mrf.mxu0
    %v2289 = vadd.f32 %v2049, %v2288
    %v2290 = vpop.f32.mrf.mxu0
    %v2291 = vpop.f32.mrf.mxu0
    %v2292 = vadd.f32 %v2049, %v2291
    %v2293 = vpop.f32.mrf.mxu0
    %2294 = vmatprep.mubr.bf16.mxu0 0
    %2295 = vmatmul.mubr.bf16.gmra.mxu0 %v1999
    %v2296 = vpop.f32.mrf.mxu0
    %v2297 = vadd.f32 %v2049, %v2296
    %v2298 = vpop.f32.mrf.mxu0
    %v2299 = vpop.f32.mrf.mxu0
    %v2300 = vadd.f32 %v2049, %v2299
    %v2301 = vpop.f32.mrf.mxu0
    %2302 = vmatprep.mubr.bf16.mxu0 0
    %2303 = vmatmul.mubr.bf16.gmra.mxu0 %v2000
    %v2304 = vpop.f32.mrf.mxu0
    %v2305 = vadd.f32 %v2049, %v2304
    %v2306 = vpop.f32.mrf.mxu0
    %v2307 = vpop.f32.mrf.mxu0
    %v2308 = vadd.f32 %v2049, %v2307
    %v2309 = vpop.f32.mrf.mxu0
    %2310 = vmatprep.mubr.bf16.mxu0 0
    %2311 = vmatmul.mubr.bf16.gmra.mxu0 %v2001
    %v2312 = vpop.f32.mrf.mxu0
    %v2313 = vadd.f32 %v2049, %v2312
    %v2314 = vpop.f32.mrf.mxu0
    %v2315 = vpop.f32.mrf.mxu0
    %v2316 = vadd.f32 %v2049, %v2315
    %v2317 = vpop.f32.mrf.mxu0
    %2318 = vdwg.mxu0
    %v2319 = vpack.c.bf16 %v2216, %v2216
    %v2320 = vpack.c.bf16 %v2220, %v2220
    %v2321 = vpack.c.bf16 %v2226, %v2226
    %v2322 = vpack.c.bf16 %v2230, %v2230
    %v2323 = vpack.c.bf16 %v2236, %v2236
    %v2324 = vpack.c.bf16 %v2240, %v2240
    %v2325 = vpack.c.bf16 %v2246, %v2246
    %v2326 = vpack.c.bf16 %v2250, %v2250
    %v2327 = vpack.c.bf16 %v2218, %v2218
    %v2328 = vpack.c.bf16 %v2222, %v2222
    %v2329 = vpack.c.bf16 %v2228, %v2228
    %v2330 = vpack.c.bf16 %v2232, %v2232
    %v2331 = vpack.c.bf16 %v2238, %v2238
    %v2332 = vpack.c.bf16 %v2242, %v2242
    %v2333 = vpack.c.bf16 %v2248, %v2248
    %v2334 = vpack.c.bf16 %v2252, %v2252
    %2335 = vmatprep.subr.bf16.mxu0 0
    %2336 = vmatpush1.bf16.xpose.msra.mxu0 0
    %2337 = vmatprep.subr.bf16.mxu0 0
    %2338 = vmatpush1.bf16.xpose.msra.mxu0 0
    %2339 = vmatprep.subr.bf16.mxu0 0
    %2340 = vmatpush1.bf16.xpose.msra.mxu0 0
    %2341 = vmatprep.subr.bf16.mxu0 0
    %2342 = vmatpush1.bf16.xpose.msra.mxu0 0
    %2343 = vmatprep.subr.bf16.mxu0 0
    %2344 = vmatpush1.bf16.xpose.msra.mxu0 0
    %2345 = vmatprep.subr.bf16.mxu0 0
    %2346 = vmatpush1.bf16.xpose.msra.mxu0 0
    %2347 = vmatprep.subr.bf16.mxu0 0
    %2348 = vmatpush1.bf16.xpose.msra.mxu0 0
    %2349 = vmatprep.subr.bf16.mxu0 0
    %2350 = vmatpush1.bf16.xpose.msra.mxu0 %v2327
    %2351 = vmatprep.subr.bf16.mxu0 0
    %2352 = vmatpush2.bf16.xpose.msra.mxu0 0
    %2353 = vmatprep.subr.bf16.mxu0 0
    %2354 = vmatpush2.bf16.xpose.msra.mxu0 0
    %2355 = vmatprep.subr.bf16.mxu0 0
    %2356 = vmatpush2.bf16.xpose.msra.mxu0 0
    %2357 = vmatprep.subr.bf16.mxu0 0
    %2358 = vmatpush2.bf16.xpose.msra.mxu0 0
    %2359 = vmatprep.subr.bf16.mxu0 0
    %2360 = vmatpush2.bf16.xpose.msra.mxu0 0
    %2361 = vmatprep.subr.bf16.mxu0 0
    %2362 = vmatpush2.bf16.xpose.msra.mxu0 0
    %2363 = vmatprep.subr.bf16.mxu0 0
    %2364 = vmatpush2.bf16.xpose.msra.mxu0 0
    %2365 = vmatprep.subr.bf16.mxu0 0
    %2366 = vmatpush2.bf16.xpose.msra.mxu0 0
    %2367 = vmatprep.mubr.bf16.mxu0 0
    %2368 = vmatmul.mubr.bf16.gmra.mxu0 %v2319
    %v2369 = vpop.f32.mrf.mxu0
    %v2370 = vadd.f32 0.0, %v2369
    %v2371 = vpop.f32.mrf.mxu0
    %v2372 = vpop.f32.mrf.mxu0
    %v2373 = vpop.f32.mrf.mxu0
    %2374 = vdwg.mxu0
    %2375 = vmatprep.subr.bf16.mxu0 0
    %2376 = vmatpush1.bf16.xpose.msra.mxu0 0
    %2377 = vmatprep.subr.bf16.mxu0 0
    %2378 = vmatpush1.bf16.xpose.msra.mxu0 0
    %2379 = vmatprep.subr.bf16.mxu0 0
    %2380 = vmatpush1.bf16.xpose.msra.mxu0 0
    %2381 = vmatprep.subr.bf16.mxu0 0
    %2382 = vmatpush1.bf16.xpose.msra.mxu0 0
    %2383 = vmatprep.subr.bf16.mxu0 0
    %2384 = vmatpush1.bf16.xpose.msra.mxu0 0
    %2385 = vmatprep.subr.bf16.mxu0 0
    %2386 = vmatpush1.bf16.xpose.msra.mxu0 0
    %2387 = vmatprep.subr.bf16.mxu0 0
    %2388 = vmatpush1.bf16.xpose.msra.mxu0 0
    %2389 = vmatprep.subr.bf16.mxu0 0
    %2390 = vmatpush1.bf16.xpose.msra.mxu0 %v2328
    %2391 = vmatprep.subr.bf16.mxu0 0
    %2392 = vmatpush2.bf16.xpose.msra.mxu0 0
    %2393 = vmatprep.subr.bf16.mxu0 0
    %2394 = vmatpush2.bf16.xpose.msra.mxu0 0
    %2395 = vmatprep.subr.bf16.mxu0 0
    %2396 = vmatpush2.bf16.xpose.msra.mxu0 0
    %2397 = vmatprep.subr.bf16.mxu0 0
    %2398 = vmatpush2.bf16.xpose.msra.mxu0 0
    %2399 = vmatprep.subr.bf16.mxu0 0
    %2400 = vmatpush2.bf16.xpose.msra.mxu0 0
    %2401 = vmatprep.subr.bf16.mxu0 0
    %2402 = vmatpush2.bf16.xpose.msra.mxu0 0
    %2403 = vmatprep.subr.bf16.mxu0 0
    %2404 = vmatpush2.bf16.xpose.msra.mxu0 0
    %2405 = vmatprep.subr.bf16.mxu0 0
    %2406 = vmatpush2.bf16.xpose.msra.mxu0 0
    %2407 = vmatprep.mubr.bf16.mxu0 0
    %2408 = vmatmul.mubr.bf16.gmra.mxu0 %v2320
    %v2409 = vpop.f32.mrf.mxu0
    %v2410 = vadd.f32 0.0, %v2409
    %v2411 = vpop.f32.mrf.mxu0
    %v2412 = vpop.f32.mrf.mxu0
    %v2413 = vpop.f32.mrf.mxu0
    %2414 = vdwg.mxu0
    %2415 = vmatprep.subr.bf16.mxu0 0
    %2416 = vmatpush1.bf16.xpose.msra.mxu0 0
    %2417 = vmatprep.subr.bf16.mxu0 0
    %2418 = vmatpush1.bf16.xpose.msra.mxu0 0
    %2419 = vmatprep.subr.bf16.mxu0 0
    %2420 = vmatpush1.bf16.xpose.msra.mxu0 0
    %2421 = vmatprep.subr.bf16.mxu0 0
    %2422 = vmatpush1.bf16.xpose.msra.mxu0 0
    %2423 = vmatprep.subr.bf16.mxu0 0
    %2424 = vmatpush1.bf16.xpose.msra.mxu0 0
    %2425 = vmatprep.subr.bf16.mxu0 0
    %2426 = vmatpush1.bf16.xpose.msra.mxu0 0
    %2427 = vmatprep.subr.bf16.mxu0 0
    %2428 = vmatpush1.bf16.xpose.msra.mxu0 0
    %2429 = vmatprep.subr.bf16.mxu0 0
    %2430 = vmatpush1.bf16.xpose.msra.mxu0 %v2329
    %2431 = vmatprep.subr.bf16.mxu0 0
    %2432 = vmatpush2.bf16.xpose.msra.mxu0 0
    %2433 = vmatprep.subr.bf16.mxu0 0
    %2434 = vmatpush2.bf16.xpose.msra.mxu0 0
    %2435 = vmatprep.subr.bf16.mxu0 0
    %2436 = vmatpush2.bf16.xpose.msra.mxu0 0
    %2437 = vmatprep.subr.bf16.mxu0 0
    %2438 = vmatpush2.bf16.xpose.msra.mxu0 0
    %2439 = vmatprep.subr.bf16.mxu0 0
    %2440 = vmatpush2.bf16.xpose.msra.mxu0 0
    %2441 = vmatprep.subr.bf16.mxu0 0
    %2442 = vmatpush2.bf16.xpose.msra.mxu0 0
    %2443 = vmatprep.subr.bf16.mxu0 0
    %2444 = vmatpush2.bf16.xpose.msra.mxu0 0
    %2445 = vmatprep.subr.bf16.mxu0 0
    %2446 = vmatpush2.bf16.xpose.msra.mxu0 0
    %2447 = vmatprep.mubr.bf16.mxu0 0
    %2448 = vmatmul.mubr.bf16.gmra.mxu0 %v2321
    %v2449 = vpop.f32.mrf.mxu0
    %v2450 = vadd.f32 0.0, %v2449
    %v2451 = vpop.f32.mrf.mxu0
    %v2452 = vpop.f32.mrf.mxu0
    %v2453 = vpop.f32.mrf.mxu0
    %2454 = vdwg.mxu0
    %2455 = vmatprep.subr.bf16.mxu0 0
    %2456 = vmatpush1.bf16.xpose.msra.mxu0 0
    %2457 = vmatprep.subr.bf16.mxu0 0
    %2458 = vmatpush1.bf16.xpose.msra.mxu0 0
    %2459 = vmatprep.subr.bf16.mxu0 0
    %2460 = vmatpush1.bf16.xpose.msra.mxu0 0
    %2461 = vmatprep.subr.bf16.mxu0 0
    %2462 = vmatpush1.bf16.xpose.msra.mxu0 0
    %2463 = vmatprep.subr.bf16.mxu0 0
    %2464 = vmatpush1.bf16.xpose.msra.mxu0 0
    %2465 = vmatprep.subr.bf16.mxu0 0
    %2466 = vmatpush1.bf16.xpose.msra.mxu0 0
    %2467 = vmatprep.subr.bf16.mxu0 0
    %2468 = vmatpush1.bf16.xpose.msra.mxu0 0
    %2469 = vmatprep.subr.bf16.mxu0 0
    %2470 = vmatpush1.bf16.xpose.msra.mxu0 %v2330
    %2471 = vmatprep.subr.bf16.mxu0 0
    %2472 = vmatpush2.bf16.xpose.msra.mxu0 0
    %2473 = vmatprep.subr.bf16.mxu0 0
    %2474 = vmatpush2.bf16.xpose.msra.mxu0 0
    %2475 = vmatprep.subr.bf16.mxu0 0
    %2476 = vmatpush2.bf16.xpose.msra.mxu0 0
    %2477 = vmatprep.subr.bf16.mxu0 0
    %2478 = vmatpush2.bf16.xpose.msra.mxu0 0
    %2479 = vmatprep.subr.bf16.mxu0 0
    %2480 = vmatpush2.bf16.xpose.msra.mxu0 0
    %2481 = vmatprep.subr.bf16.mxu0 0
    %2482 = vmatpush2.bf16.xpose.msra.mxu0 0
    %2483 = vmatprep.subr.bf16.mxu0 0
    %2484 = vmatpush2.bf16.xpose.msra.mxu0 0
    %2485 = vmatprep.subr.bf16.mxu0 0
    %2486 = vmatpush2.bf16.xpose.msra.mxu0 0
    %2487 = vmatprep.mubr.bf16.mxu0 0
    %2488 = vmatmul.mubr.bf16.gmra.mxu0 %v2322
    %v2489 = vpop.f32.mrf.mxu0
    %v2490 = vadd.f32 0.0, %v2489
    %v2491 = vpop.f32.mrf.mxu0
    %v2492 = vpop.f32.mrf.mxu0
    %v2493 = vpop.f32.mrf.mxu0
    %2494 = vdwg.mxu0
    %2495 = vmatprep.subr.bf16.mxu0 0
    %2496 = vmatpush1.bf16.xpose.msra.mxu0 0
    %2497 = vmatprep.subr.bf16.mxu0 0
    %2498 = vmatpush1.bf16.xpose.msra.mxu0 0
    %2499 = vmatprep.subr.bf16.mxu0 0
    %2500 = vmatpush1.bf16.xpose.msra.mxu0 0
    %2501 = vmatprep.subr.bf16.mxu0 0
    %2502 = vmatpush1.bf16.xpose.msra.mxu0 0
    %2503 = vmatprep.subr.bf16.mxu0 0
    %2504 = vmatpush1.bf16.xpose.msra.mxu0 0
    %2505 = vmatprep.subr.bf16.mxu0 0
    %2506 = vmatpush1.bf16.xpose.msra.mxu0 0
    %2507 = vmatprep.subr.bf16.mxu0 0
    %2508 = vmatpush1.bf16.xpose.msra.mxu0 0
    %2509 = vmatprep.subr.bf16.mxu0 0
    %2510 = vmatpush1.bf16.xpose.msra.mxu0 %v2331
    %2511 = vmatprep.subr.bf16.mxu0 0
    %2512 = vmatpush2.bf16.xpose.msra.mxu0 0
    %2513 = vmatprep.subr.bf16.mxu0 0
    %2514 = vmatpush2.bf16.xpose.msra.mxu0 0
    %2515 = vmatprep.subr.bf16.mxu0 0
    %2516 = vmatpush2.bf16.xpose.msra.mxu0 0
    %2517 = vmatprep.subr.bf16.mxu0 0
    %2518 = vmatpush2.bf16.xpose.msra.mxu0 0
    %2519 = vmatprep.subr.bf16.mxu0 0
    %2520 = vmatpush2.bf16.xpose.msra.mxu0 0
    %2521 = vmatprep.subr.bf16.mxu0 0
    %2522 = vmatpush2.bf16.xpose.msra.mxu0 0
    %2523 = vmatprep.subr.bf16.mxu0 0
    %2524 = vmatpush2.bf16.xpose.msra.mxu0 0
    %2525 = vmatprep.subr.bf16.mxu0 0
    %2526 = vmatpush2.bf16.xpose.msra.mxu0 0
    %2527 = vmatprep.mubr.bf16.mxu0 0
    %2528 = vmatmul.mubr.bf16.gmra.mxu0 %v2323
    %v2529 = vpop.f32.mrf.mxu0
    %v2530 = vadd.f32 0.0, %v2529
    %v2531 = vpop.f32.mrf.mxu0
    %v2532 = vpop.f32.mrf.mxu0
    %v2533 = vpop.f32.mrf.mxu0
    %2534 = vdwg.mxu0
    %2535 = vmatprep.subr.bf16.mxu0 0
    %2536 = vmatpush1.bf16.xpose.msra.mxu0 0
    %2537 = vmatprep.subr.bf16.mxu0 0
    %2538 = vmatpush1.bf16.xpose.msra.mxu0 0
    %2539 = vmatprep.subr.bf16.mxu0 0
    %2540 = vmatpush1.bf16.xpose.msra.mxu0 0
    %2541 = vmatprep.subr.bf16.mxu0 0
    %2542 = vmatpush1.bf16.xpose.msra.mxu0 0
    %2543 = vmatprep.subr.bf16.mxu0 0
    %2544 = vmatpush1.bf16.xpose.msra.mxu0 0
    %2545 = vmatprep.subr.bf16.mxu0 0
    %2546 = vmatpush1.bf16.xpose.msra.mxu0 0
    %2547 = vmatprep.subr.bf16.mxu0 0
    %2548 = vmatpush1.bf16.xpose.msra.mxu0 0
    %2549 = vmatprep.subr.bf16.mxu0 0
    %2550 = vmatpush1.bf16.xpose.msra.mxu0 %v2332
    %2551 = vmatprep.subr.bf16.mxu0 0
    %2552 = vmatpush2.bf16.xpose.msra.mxu0 0
    %2553 = vmatprep.subr.bf16.mxu0 0
    %2554 = vmatpush2.bf16.xpose.msra.mxu0 0
    %2555 = vmatprep.subr.bf16.mxu0 0
    %2556 = vmatpush2.bf16.xpose.msra.mxu0 0
    %2557 = vmatprep.subr.bf16.mxu0 0
    %2558 = vmatpush2.bf16.xpose.msra.mxu0 0
    %2559 = vmatprep.subr.bf16.mxu0 0
    %2560 = vmatpush2.bf16.xpose.msra.mxu0 0
    %2561 = vmatprep.subr.bf16.mxu0 0
    %2562 = vmatpush2.bf16.xpose.msra.mxu0 0
    %2563 = vmatprep.subr.bf16.mxu0 0
    %2564 = vmatpush2.bf16.xpose.msra.mxu0 0
    %2565 = vmatprep.subr.bf16.mxu0 0
    %2566 = vmatpush2.bf16.xpose.msra.mxu0 0
    %2567 = vmatprep.mubr.bf16.mxu0 0
    %2568 = vmatmul.mubr.bf16.gmra.mxu0 %v2324
    %v2569 = vpop.f32.mrf.mxu0
    %v2570 = vadd.f32 0.0, %v2569
    %v2571 = vpop.f32.mrf.mxu0
    %v2572 = vpop.f32.mrf.mxu0
    %v2573 = vpop.f32.mrf.mxu0
    %2574 = vdwg.mxu0
    %2575 = vmatprep.subr.bf16.mxu0 0
    %2576 = vmatpush1.bf16.xpose.msra.mxu0 0
    %2577 = vmatprep.subr.bf16.mxu0 0
    %2578 = vmatpush1.bf16.xpose.msra.mxu0 0
    %2579 = vmatprep.subr.bf16.mxu0 0
    %2580 = vmatpush1.bf16.xpose.msra.mxu0 0
    %2581 = vmatprep.subr.bf16.mxu0 0
    %2582 = vmatpush1.bf16.xpose.msra.mxu0 0
    %2583 = vmatprep.subr.bf16.mxu0 0
    %2584 = vmatpush1.bf16.xpose.msra.mxu0 0
    %2585 = vmatprep.subr.bf16.mxu0 0
    %2586 = vmatpush1.bf16.xpose.msra.mxu0 0
    %2587 = vmatprep.subr.bf16.mxu0 0
    %2588 = vmatpush1.bf16.xpose.msra.mxu0 0
    %2589 = vmatprep.subr.bf16.mxu0 0
    %2590 = vmatpush1.bf16.xpose.msra.mxu0 %v2333
    %2591 = vmatprep.subr.bf16.mxu0 0
    %2592 = vmatpush2.bf16.xpose.msra.mxu0 0
    %2593 = vmatprep.subr.bf16.mxu0 0
    %2594 = vmatpush2.bf16.xpose.msra.mxu0 0
    %2595 = vmatprep.subr.bf16.mxu0 0
    %2596 = vmatpush2.bf16.xpose.msra.mxu0 0
    %2597 = vmatprep.subr.bf16.mxu0 0
    %2598 = vmatpush2.bf16.xpose.msra.mxu0 0
    %2599 = vmatprep.subr.bf16.mxu0 0
    %2600 = vmatpush2.bf16.xpose.msra.mxu0 0
    %2601 = vmatprep.subr.bf16.mxu0 0
    %2602 = vmatpush2.bf16.xpose.msra.mxu0 0
    %2603 = vmatprep.subr.bf16.mxu0 0
    %2604 = vmatpush2.bf16.xpose.msra.mxu0 0
    %2605 = vmatprep.subr.bf16.mxu0 0
    %2606 = vmatpush2.bf16.xpose.msra.mxu0 0
    %2607 = vmatprep.mubr.bf16.mxu0 0
    %2608 = vmatmul.mubr.bf16.gmra.mxu0 %v2325
    %v2609 = vpop.f32.mrf.mxu0
    %v2610 = vadd.f32 0.0, %v2609
    %v2611 = vpop.f32.mrf.mxu0
    %v2612 = vpop.f32.mrf.mxu0
    %v2613 = vpop.f32.mrf.mxu0
    %2614 = vdwg.mxu0
    %2615 = vmatprep.subr.bf16.mxu0 0
    %2616 = vmatpush1.bf16.xpose.msra.mxu0 0
    %2617 = vmatprep.subr.bf16.mxu0 0
    %2618 = vmatpush1.bf16.xpose.msra.mxu0 0
    %2619 = vmatprep.subr.bf16.mxu0 0
    %2620 = vmatpush1.bf16.xpose.msra.mxu0 0
    %2621 = vmatprep.subr.bf16.mxu0 0
    %2622 = vmatpush1.bf16.xpose.msra.mxu0 0
    %2623 = vmatprep.subr.bf16.mxu0 0
    %2624 = vmatpush1.bf16.xpose.msra.mxu0 0
    %2625 = vmatprep.subr.bf16.mxu0 0
    %2626 = vmatpush1.bf16.xpose.msra.mxu0 0
    %2627 = vmatprep.subr.bf16.mxu0 0
    %2628 = vmatpush1.bf16.xpose.msra.mxu0 0
    %2629 = vmatprep.subr.bf16.mxu0 0
    %2630 = vmatpush1.bf16.xpose.msra.mxu0 %v2334
    %2631 = vmatprep.subr.bf16.mxu0 0
    %2632 = vmatpush2.bf16.xpose.msra.mxu0 0
    %2633 = vmatprep.subr.bf16.mxu0 0
    %2634 = vmatpush2.bf16.xpose.msra.mxu0 0
    %2635 = vmatprep.subr.bf16.mxu0 0
    %2636 = vmatpush2.bf16.xpose.msra.mxu0 0
    %2637 = vmatprep.subr.bf16.mxu0 0
    %2638 = vmatpush2.bf16.xpose.msra.mxu0 0
    %2639 = vmatprep.subr.bf16.mxu0 0
    %2640 = vmatpush2.bf16.xpose.msra.mxu0 0
    %2641 = vmatprep.subr.bf16.mxu0 0
    %2642 = vmatpush2.bf16.xpose.msra.mxu0 0
    %2643 = vmatprep.subr.bf16.mxu0 0
    %2644 = vmatpush2.bf16.xpose.msra.mxu0 0
    %2645 = vmatprep.subr.bf16.mxu0 0
    %2646 = vmatpush2.bf16.xpose.msra.mxu0 0
    %2647 = vmatprep.mubr.bf16.mxu0 0
    %2648 = vmatmul.mubr.bf16.gmra.mxu0 %v2326
    %v2649 = vpop.f32.mrf.mxu0
    %v2650 = vadd.f32 0.0, %v2649
    %v2651 = vpop.f32.mrf.mxu0
    %v2652 = vpop.f32.mrf.mxu0
    %v2653 = vpop.f32.mrf.mxu0
    %2654 = vdwg.mxu0
    %v2655 = vmul.f32 %v2370, 0.088388346
    %v2656 = vmul.f32 %v2410, 0.088388346
    %v2657 = vmul.f32 %v2450, 0.088388346
    %v2658 = vmul.f32 %v2490, 0.088388346
    %v2659 = vmul.f32 %v2530, 0.088388346
    %v2660 = vmul.f32 %v2570, 0.088388346
    %v2661 = vmul.f32 %v2610, 0.088388346
    %v2662 = vmul.f32 %v2650, 0.088388346
    %v2663 = vsel %vm851, %v2655, -inf
    %2664 = vmax.xlane.f32.xlu0 %v2663
    %v2665 = vpop.xlane.xlu0 %2664
    %v2666 = vsel %vm851, %v2656, -inf
    %2667 = vmax.xlane.f32.xlu0 %v2666
    %v2668 = vpop.xlane.xlu0 %2667
    %v2669 = vsel %vm851, %v2657, -inf
    %2670 = vmax.xlane.f32.xlu0 %v2669
    %v2671 = vpop.xlane.xlu0 %2670
    %v2672 = vsel %vm851, %v2658, -inf
    %2673 = vmax.xlane.f32.xlu0 %v2672
    %v2674 = vpop.xlane.xlu0 %2673
    %v2675 = vsel %vm851, %v2659, -inf
    %2676 = vmax.xlane.f32.xlu0 %v2675
    %v2677 = vpop.xlane.xlu0 %2676
    %v2678 = vsel %vm851, %v2660, -inf
    %2679 = vmax.xlane.f32.xlu0 %v2678
    %v2680 = vpop.xlane.xlu0 %2679
    %v2681 = vsel %vm851, %v2661, -inf
    %2682 = vmax.xlane.f32.xlu0 %v2681
    %v2683 = vpop.xlane.xlu0 %2682
    %v2684 = vsel %vm851, %v2662, -inf
    %2685 = vmax.xlane.f32.xlu0 %v2684
    %v2686 = vpop.xlane.xlu0 %2685
    %v2687 = vsub.f32 %v2655, %v2665
    %v2688 = vsub.f32 %v2656, %v2668
    %v2689 = vsub.f32 %v2657, %v2671
    %v2690 = vsub.f32 %v2658, %v2674
    %v2691 = vsub.f32 %v2659, %v2677
    %v2692 = vsub.f32 %v2660, %v2680
    %v2693 = vsub.f32 %v2661, %v2683
    %v2694 = vsub.f32 %v2662, %v2686
    %v2695 = vmul.f32 %v2687, 1.442695
    %v2696 = vpow.pop %v2695
    %v2697 = vmul.f32 %v2688, 1.442695
    %v2698 = vpow.pop %v2697
    %v2699 = vmul.f32 %v2689, 1.442695
    %v2700 = vpow.pop %v2699
    %v2701 = vmul.f32 %v2690, 1.442695
    %v2702 = vpow.pop %v2701
    %v2703 = vmul.f32 %v2691, 1.442695
    %v2704 = vpow.pop %v2703
    %v2705 = vmul.f32 %v2692, 1.442695
    %v2706 = vpow.pop %v2705
    %v2707 = vmul.f32 %v2693, 1.442695
    %v2708 = vpow.pop %v2707
    %v2709 = vmul.f32 %v2694, 1.442695
    %v2710 = vpow.pop %v2709
    %v2711 = vsel %vm851, %v2696, 0.0
    %2712 = vadd.xlane.f32.xlu0 %v2711
    %v2713 = vpop.xlane.xlu0 %2712
    %v2714 = vsel %vm851, %v2698, 0.0
    %2715 = vadd.xlane.f32.xlu0 %v2714
    %v2716 = vpop.xlane.xlu0 %2715
    %v2717 = vsel %vm851, %v2700, 0.0
    %2718 = vadd.xlane.f32.xlu0 %v2717
    %v2719 = vpop.xlane.xlu0 %2718
    %v2720 = vsel %vm851, %v2702, 0.0
    %2721 = vadd.xlane.f32.xlu0 %v2720
    %v2722 = vpop.xlane.xlu0 %2721
    %v2723 = vsel %vm851, %v2704, 0.0
    %2724 = vadd.xlane.f32.xlu0 %v2723
    %v2725 = vpop.xlane.xlu0 %2724
    %v2726 = vsel %vm851, %v2706, 0.0
    %2727 = vadd.xlane.f32.xlu0 %v2726
    %v2728 = vpop.xlane.xlu0 %2727
    %v2729 = vsel %vm851, %v2708, 0.0
    %2730 = vadd.xlane.f32.xlu0 %v2729
    %v2731 = vpop.xlane.xlu0 %2730
    %v2732 = vsel %vm851, %v2710, 0.0
    %2733 = vadd.xlane.f32.xlu0 %v2732
    %v2734 = vpop.xlane.xlu0 %2733
    %v2735 = vrcp.pop %v2713
    %v2736 = vrcp.pop %v2716
    %v2737 = vrcp.pop %v2719
    %v2738 = vrcp.pop %v2722
    %v2739 = vrcp.pop %v2725
    %v2740 = vrcp.pop %v2728
    %v2741 = vrcp.pop %v2731
    %v2742 = vrcp.pop %v2734
    %v2743 = vmul.f32 %v2696, %v2735
    %v2744 = vmul.f32 %v2698, %v2736
    %v2745 = vmul.f32 %v2700, %v2737
    %v2746 = vmul.f32 %v2702, %v2738
    %v2747 = vmul.f32 %v2704, %v2739
    %v2748 = vmul.f32 %v2706, %v2740
    %v2749 = vmul.f32 %v2708, %v2741
    %v2750 = vmul.f32 %v2710, %v2742
    %v2751 = vpack.c.bf16 %v2743, %v2743
    %v2752 = vpack.c.bf16 %v2744, %v2744
    %v2753 = vpack.c.bf16 %v2745, %v2745
    %v2754 = vpack.c.bf16 %v2746, %v2746
    %v2755 = vpack.c.bf16 %v2747, %v2747
    %v2756 = vpack.c.bf16 %v2748, %v2748
    %v2757 = vpack.c.bf16 %v2749, %v2749
    %v2758 = vpack.c.bf16 %v2750, %v2750
    %v2759 = vpack.c.bf16 %v2289, %v2289
    %v2760 = vpack.c.bf16 %v2292, %v2292
    %v2761 = vpack.c.bf16 %v2297, %v2297
    %v2762 = vpack.c.bf16 %v2300, %v2300
    %v2763 = vpack.c.bf16 %v2305, %v2305
    %v2764 = vpack.c.bf16 %v2308, %v2308
    %v2765 = vpack.c.bf16 %v2313, %v2313
    %v2766 = vpack.c.bf16 %v2316, %v2316
    %v2768 = vsel %vm851, %v2751, 0
    %v2771 = vsel %vm959, %v2759, 0
    %2773 = vmatprep.subr.bf16.mxu0 0
    %2774 = vmatpush1.bf16.msra.mxu0 0
    %2775 = vmatprep.subr.bf16.mxu0 0
    %2776 = vmatpush1.bf16.msra.mxu0 0
    %2777 = vmatprep.subr.bf16.mxu0 0
    %2778 = vmatpush1.bf16.msra.mxu0 0
    %2779 = vmatprep.subr.bf16.mxu0 0
    %2780 = vmatpush1.bf16.msra.mxu0 0
    %2781 = vmatprep.subr.bf16.mxu0 0
    %2782 = vmatpush1.bf16.msra.mxu0 0
    %2783 = vmatprep.subr.bf16.mxu0 0
    %2784 = vmatpush1.bf16.msra.mxu0 0
    %2785 = vmatprep.subr.bf16.mxu0 0
    %2786 = vmatpush1.bf16.msra.mxu0 0
    %2787 = vmatprep.subr.bf16.mxu0 0
    %2788 = vmatpush1.bf16.msra.mxu0 %v2771
    %2789 = vmatprep.subr.bf16.mxu0 0
    %2790 = vmatpush2.bf16.msra.mxu0 0
    %2791 = vmatprep.subr.bf16.mxu0 0
    %2792 = vmatpush2.bf16.msra.mxu0 0
    %2793 = vmatprep.subr.bf16.mxu0 0
    %2794 = vmatpush2.bf16.msra.mxu0 0
    %2795 = vmatprep.subr.bf16.mxu0 0
    %2796 = vmatpush2.bf16.msra.mxu0 0
    %2797 = vmatprep.subr.bf16.mxu0 0
    %2798 = vmatpush2.bf16.msra.mxu0 0
    %2799 = vmatprep.subr.bf16.mxu0 0
    %2800 = vmatpush2.bf16.msra.mxu0 0
    %2801 = vmatprep.subr.bf16.mxu0 0
    %2802 = vmatpush2.bf16.msra.mxu0 0
    %2803 = vmatprep.subr.bf16.mxu0 0
    %2804 = vmatpush2.bf16.msra.mxu0 0
    %2805 = vmatprep.mubr.bf16.mxu0 0
    %2806 = vmatmul.mubr.bf16.gmra.mxu0 %v2768
    %v2807 = vpop.f32.mrf.mxu0
    %v2808 = vadd.f32 0.0, %v2807
    %v2809 = vpop.f32.mrf.mxu0
    %v2810 = vpop.f32.mrf.mxu0
    %v2811 = vpop.f32.mrf.mxu0
    %2812 = vdwg.mxu0
    %v2814 = vsel %vm851, %v2752, 0
    %v2817 = vsel %vm959, %v2760, 0
    %2819 = vmatprep.subr.bf16.mxu0 0
    %2820 = vmatpush1.bf16.msra.mxu0 0
    %2821 = vmatprep.subr.bf16.mxu0 0
    %2822 = vmatpush1.bf16.msra.mxu0 0
    %2823 = vmatprep.subr.bf16.mxu0 0
    %2824 = vmatpush1.bf16.msra.mxu0 0
    %2825 = vmatprep.subr.bf16.mxu0 0
    %2826 = vmatpush1.bf16.msra.mxu0 0
    %2827 = vmatprep.subr.bf16.mxu0 0
    %2828 = vmatpush1.bf16.msra.mxu0 0
    %2829 = vmatprep.subr.bf16.mxu0 0
    %2830 = vmatpush1.bf16.msra.mxu0 0
    %2831 = vmatprep.subr.bf16.mxu0 0
    %2832 = vmatpush1.bf16.msra.mxu0 0
    %2833 = vmatprep.subr.bf16.mxu0 0
    %2834 = vmatpush1.bf16.msra.mxu0 %v2817
    %2835 = vmatprep.subr.bf16.mxu0 0
    %2836 = vmatpush2.bf16.msra.mxu0 0
    %2837 = vmatprep.subr.bf16.mxu0 0
    %2838 = vmatpush2.bf16.msra.mxu0 0
    %2839 = vmatprep.subr.bf16.mxu0 0
    %2840 = vmatpush2.bf16.msra.mxu0 0
    %2841 = vmatprep.subr.bf16.mxu0 0
    %2842 = vmatpush2.bf16.msra.mxu0 0
    %2843 = vmatprep.subr.bf16.mxu0 0
    %2844 = vmatpush2.bf16.msra.mxu0 0
    %2845 = vmatprep.subr.bf16.mxu0 0
    %2846 = vmatpush2.bf16.msra.mxu0 0
    %2847 = vmatprep.subr.bf16.mxu0 0
    %2848 = vmatpush2.bf16.msra.mxu0 0
    %2849 = vmatprep.subr.bf16.mxu0 0
    %2850 = vmatpush2.bf16.msra.mxu0 0
    %2851 = vmatprep.mubr.bf16.mxu0 0
    %2852 = vmatmul.mubr.bf16.gmra.mxu0 %v2814
    %v2853 = vpop.f32.mrf.mxu0
    %v2854 = vadd.f32 0.0, %v2853
    %v2855 = vpop.f32.mrf.mxu0
    %v2856 = vpop.f32.mrf.mxu0
    %v2857 = vpop.f32.mrf.mxu0
    %2858 = vdwg.mxu0
    %v2860 = vsel %vm851, %v2753, 0
    %v2863 = vsel %vm959, %v2761, 0
    %2865 = vmatprep.subr.bf16.mxu0 0
    %2866 = vmatpush1.bf16.msra.mxu0 0
    %2867 = vmatprep.subr.bf16.mxu0 0
    %2868 = vmatpush1.bf16.msra.mxu0 0
    %2869 = vmatprep.subr.bf16.mxu0 0
    %2870 = vmatpush1.bf16.msra.mxu0 0
    %2871 = vmatprep.subr.bf16.mxu0 0
    %2872 = vmatpush1.bf16.msra.mxu0 0
    %2873 = vmatprep.subr.bf16.mxu0 0
    %2874 = vmatpush1.bf16.msra.mxu0 0
    %2875 = vmatprep.subr.bf16.mxu0 0
    %2876 = vmatpush1.bf16.msra.mxu0 0
    %2877 = vmatprep.subr.bf16.mxu0 0
    %2878 = vmatpush1.bf16.msra.mxu0 0
    %2879 = vmatprep.subr.bf16.mxu0 0
    %2880 = vmatpush1.bf16.msra.mxu0 %v2863
    %2881 = vmatprep.subr.bf16.mxu0 0
    %2882 = vmatpush2.bf16.msra.mxu0 0
    %2883 = vmatprep.subr.bf16.mxu0 0
    %2884 = vmatpush2.bf16.msra.mxu0 0
    %2885 = vmatprep.subr.bf16.mxu0 0
    %2886 = vmatpush2.bf16.msra.mxu0 0
    %2887 = vmatprep.subr.bf16.mxu0 0
    %2888 = vmatpush2.bf16.msra.mxu0 0
    %2889 = vmatprep.subr.bf16.mxu0 0
    %2890 = vmatpush2.bf16.msra.mxu0 0
    %2891 = vmatprep.subr.bf16.mxu0 0
    %2892 = vmatpush2.bf16.msra.mxu0 0
    %2893 = vmatprep.subr.bf16.mxu0 0
    %2894 = vmatpush2.bf16.msra.mxu0 0
    %2895 = vmatprep.subr.bf16.mxu0 0
    %2896 = vmatpush2.bf16.msra.mxu0 0
    %2897 = vmatprep.mubr.bf16.mxu0 0
    %2898 = vmatmul.mubr.bf16.gmra.mxu0 %v2860
    %v2899 = vpop.f32.mrf.mxu0
    %v2900 = vadd.f32 0.0, %v2899
    %v2901 = vpop.f32.mrf.mxu0
    %v2902 = vpop.f32.mrf.mxu0
    %v2903 = vpop.f32.mrf.mxu0
    %2904 = vdwg.mxu0
    %v2906 = vsel %vm851, %v2754, 0
    %v2909 = vsel %vm959, %v2762, 0
    %2911 = vmatprep.subr.bf16.mxu0 0
    %2912 = vmatpush1.bf16.msra.mxu0 0
    %2913 = vmatprep.subr.bf16.mxu0 0
    %2914 = vmatpush1.bf16.msra.mxu0 0
    %2915 = vmatprep.subr.bf16.mxu0 0
    %2916 = vmatpush1.bf16.msra.mxu0 0
    %2917 = vmatprep.subr.bf16.mxu0 0
    %2918 = vmatpush1.bf16.msra.mxu0 0
    %2919 = vmatprep.subr.bf16.mxu0 0
    %2920 = vmatpush1.bf16.msra.mxu0 0
    %2921 = vmatprep.subr.bf16.mxu0 0
    %2922 = vmatpush1.bf16.msra.mxu0 0
    %2923 = vmatprep.subr.bf16.mxu0 0
    %2924 = vmatpush1.bf16.msra.mxu0 0
    %2925 = vmatprep.subr.bf16.mxu0 0
    %2926 = vmatpush1.bf16.msra.mxu0 %v2909
    %2927 = vmatprep.subr.bf16.mxu0 0
    %2928 = vmatpush2.bf16.msra.mxu0 0
    %2929 = vmatprep.subr.bf16.mxu0 0
    %2930 = vmatpush2.bf16.msra.mxu0 0
    %2931 = vmatprep.subr.bf16.mxu0 0
    %2932 = vmatpush2.bf16.msra.mxu0 0
    %2933 = vmatprep.subr.bf16.mxu0 0
    %2934 = vmatpush2.bf16.msra.mxu0 0
    %2935 = vmatprep.subr.bf16.mxu0 0
    %2936 = vmatpush2.bf16.msra.mxu0 0
    %2937 = vmatprep.subr.bf16.mxu0 0
    %2938 = vmatpush2.bf16.msra.mxu0 0
    %2939 = vmatprep.subr.bf16.mxu0 0
    %2940 = vmatpush2.bf16.msra.mxu0 0
    %2941 = vmatprep.subr.bf16.mxu0 0
    %2942 = vmatpush2.bf16.msra.mxu0 0
    %2943 = vmatprep.mubr.bf16.mxu0 0
    %2944 = vmatmul.mubr.bf16.gmra.mxu0 %v2906
    %v2945 = vpop.f32.mrf.mxu0
    %v2946 = vadd.f32 0.0, %v2945
    %v2947 = vpop.f32.mrf.mxu0
    %v2948 = vpop.f32.mrf.mxu0
    %v2949 = vpop.f32.mrf.mxu0
    %2950 = vdwg.mxu0
    %v2952 = vsel %vm851, %v2755, 0
    %v2955 = vsel %vm959, %v2763, 0
    %2957 = vmatprep.subr.bf16.mxu0 0
    %2958 = vmatpush1.bf16.msra.mxu0 0
    %2959 = vmatprep.subr.bf16.mxu0 0
    %2960 = vmatpush1.bf16.msra.mxu0 0
    %2961 = vmatprep.subr.bf16.mxu0 0
    %2962 = vmatpush1.bf16.msra.mxu0 0
    %2963 = vmatprep.subr.bf16.mxu0 0
    %2964 = vmatpush1.bf16.msra.mxu0 0
    %2965 = vmatprep.subr.bf16.mxu0 0
    %2966 = vmatpush1.bf16.msra.mxu0 0
    %2967 = vmatprep.subr.bf16.mxu0 0
    %2968 = vmatpush1.bf16.msra.mxu0 0
    %2969 = vmatprep.subr.bf16.mxu0 0
    %2970 = vmatpush1.bf16.msra.mxu0 0
    %2971 = vmatprep.subr.bf16.mxu0 0
    %2972 = vmatpush1.bf16.msra.mxu0 %v2955
    %2973 = vmatprep.subr.bf16.mxu0 0
    %2974 = vmatpush2.bf16.msra.mxu0 0
    %2975 = vmatprep.subr.bf16.mxu0 0
    %2976 = vmatpush2.bf16.msra.mxu0 0
    %2977 = vmatprep.subr.bf16.mxu0 0
    %2978 = vmatpush2.bf16.msra.mxu0 0
    %2979 = vmatprep.subr.bf16.mxu0 0
    %2980 = vmatpush2.bf16.msra.mxu0 0
    %2981 = vmatprep.subr.bf16.mxu0 0
    %2982 = vmatpush2.bf16.msra.mxu0 0
    %2983 = vmatprep.subr.bf16.mxu0 0
    %2984 = vmatpush2.bf16.msra.mxu0 0
    %2985 = vmatprep.subr.bf16.mxu0 0
    %2986 = vmatpush2.bf16.msra.mxu0 0
    %2987 = vmatprep.subr.bf16.mxu0 0
    %2988 = vmatpush2.bf16.msra.mxu0 0
    %2989 = vmatprep.mubr.bf16.mxu0 0
    %2990 = vmatmul.mubr.bf16.gmra.mxu0 %v2952
    %v2991 = vpop.f32.mrf.mxu0
    %v2992 = vadd.f32 0.0, %v2991
    %v2993 = vpop.f32.mrf.mxu0
    %v2994 = vpop.f32.mrf.mxu0
    %v2995 = vpop.f32.mrf.mxu0
    %2996 = vdwg.mxu0
    %v2998 = vsel %vm851, %v2756, 0
    %v3001 = vsel %vm959, %v2764, 0
    %3003 = vmatprep.subr.bf16.mxu0 0
    %3004 = vmatpush1.bf16.msra.mxu0 0
    %3005 = vmatprep.subr.bf16.mxu0 0
    %3006 = vmatpush1.bf16.msra.mxu0 0
    %3007 = vmatprep.subr.bf16.mxu0 0
    %3008 = vmatpush1.bf16.msra.mxu0 0
    %3009 = vmatprep.subr.bf16.mxu0 0
    %3010 = vmatpush1.bf16.msra.mxu0 0
    %3011 = vmatprep.subr.bf16.mxu0 0
    %3012 = vmatpush1.bf16.msra.mxu0 0
    %3013 = vmatprep.subr.bf16.mxu0 0
    %3014 = vmatpush1.bf16.msra.mxu0 0
    %3015 = vmatprep.subr.bf16.mxu0 0
    %3016 = vmatpush1.bf16.msra.mxu0 0
    %3017 = vmatprep.subr.bf16.mxu0 0
    %3018 = vmatpush1.bf16.msra.mxu0 %v3001
    %3019 = vmatprep.subr.bf16.mxu0 0
    %3020 = vmatpush2.bf16.msra.mxu0 0
    %3021 = vmatprep.subr.bf16.mxu0 0
    %3022 = vmatpush2.bf16.msra.mxu0 0
    %3023 = vmatprep.subr.bf16.mxu0 0
    %3024 = vmatpush2.bf16.msra.mxu0 0
    %3025 = vmatprep.subr.bf16.mxu0 0
    %3026 = vmatpush2.bf16.msra.mxu0 0
    %3027 = vmatprep.subr.bf16.mxu0 0
    %3028 = vmatpush2.bf16.msra.mxu0 0
    %3029 = vmatprep.subr.bf16.mxu0 0
    %3030 = vmatpush2.bf16.msra.mxu0 0
    %3031 = vmatprep.subr.bf16.mxu0 0
    %3032 = vmatpush2.bf16.msra.mxu0 0
    %3033 = vmatprep.subr.bf16.mxu0 0
    %3034 = vmatpush2.bf16.msra.mxu0 0
    %3035 = vmatprep.mubr.bf16.mxu0 0
    %3036 = vmatmul.mubr.bf16.gmra.mxu0 %v2998
    %v3037 = vpop.f32.mrf.mxu0
    %v3038 = vadd.f32 0.0, %v3037
    %v3039 = vpop.f32.mrf.mxu0
    %v3040 = vpop.f32.mrf.mxu0
    %v3041 = vpop.f32.mrf.mxu0
    %3042 = vdwg.mxu0
    %v3044 = vsel %vm851, %v2757, 0
    %v3047 = vsel %vm959, %v2765, 0
    %3049 = vmatprep.subr.bf16.mxu0 0
    %3050 = vmatpush1.bf16.msra.mxu0 0
    %3051 = vmatprep.subr.bf16.mxu0 0
    %3052 = vmatpush1.bf16.msra.mxu0 0
    %3053 = vmatprep.subr.bf16.mxu0 0
    %3054 = vmatpush1.bf16.msra.mxu0 0
    %3055 = vmatprep.subr.bf16.mxu0 0
    %3056 = vmatpush1.bf16.msra.mxu0 0
    %3057 = vmatprep.subr.bf16.mxu0 0
    %3058 = vmatpush1.bf16.msra.mxu0 0
    %3059 = vmatprep.subr.bf16.mxu0 0
    %3060 = vmatpush1.bf16.msra.mxu0 0
    %3061 = vmatprep.subr.bf16.mxu0 0
    %3062 = vmatpush1.bf16.msra.mxu0 0
    %3063 = vmatprep.subr.bf16.mxu0 0
    %3064 = vmatpush1.bf16.msra.mxu0 %v3047
    %3065 = vmatprep.subr.bf16.mxu0 0
    %3066 = vmatpush2.bf16.msra.mxu0 0
    %3067 = vmatprep.subr.bf16.mxu0 0
    %3068 = vmatpush2.bf16.msra.mxu0 0
    %3069 = vmatprep.subr.bf16.mxu0 0
    %3070 = vmatpush2.bf16.msra.mxu0 0
    %3071 = vmatprep.subr.bf16.mxu0 0
    %3072 = vmatpush2.bf16.msra.mxu0 0
    %3073 = vmatprep.subr.bf16.mxu0 0
    %3074 = vmatpush2.bf16.msra.mxu0 0
    %3075 = vmatprep.subr.bf16.mxu0 0
    %3076 = vmatpush2.bf16.msra.mxu0 0
    %3077 = vmatprep.subr.bf16.mxu0 0
    %3078 = vmatpush2.bf16.msra.mxu0 0
    %3079 = vmatprep.subr.bf16.mxu0 0
    %3080 = vmatpush2.bf16.msra.mxu0 0
    %3081 = vmatprep.mubr.bf16.mxu0 0
    %3082 = vmatmul.mubr.bf16.gmra.mxu0 %v3044
    %v3083 = vpop.f32.mrf.mxu0
    %v3084 = vadd.f32 0.0, %v3083
    %v3085 = vpop.f32.mrf.mxu0
    %v3086 = vpop.f32.mrf.mxu0
    %v3087 = vpop.f32.mrf.mxu0
    %3088 = vdwg.mxu0
    %v3090 = vsel %vm851, %v2758, 0
    %v3093 = vsel %vm959, %v2766, 0
    %3095 = vmatprep.subr.bf16.mxu0 0
    %3096 = vmatpush1.bf16.msra.mxu0 0
    %3097 = vmatprep.subr.bf16.mxu0 0
    %3098 = vmatpush1.bf16.msra.mxu0 0
    %3099 = vmatprep.subr.bf16.mxu0 0
    %3100 = vmatpush1.bf16.msra.mxu0 0
    %3101 = vmatprep.subr.bf16.mxu0 0
    %3102 = vmatpush1.bf16.msra.mxu0 0
    %3103 = vmatprep.subr.bf16.mxu0 0
    %3104 = vmatpush1.bf16.msra.mxu0 0
    %3105 = vmatprep.subr.bf16.mxu0 0
    %3106 = vmatpush1.bf16.msra.mxu0 0
    %3107 = vmatprep.subr.bf16.mxu0 0
    %3108 = vmatpush1.bf16.msra.mxu0 0
    %3109 = vmatprep.subr.bf16.mxu0 0
    %3110 = vmatpush1.bf16.msra.mxu0 %v3093
    %3111 = vmatprep.subr.bf16.mxu0 0
    %3112 = vmatpush2.bf16.msra.mxu0 0
    %3113 = vmatprep.subr.bf16.mxu0 0
    %3114 = vmatpush2.bf16.msra.mxu0 0
    %3115 = vmatprep.subr.bf16.mxu0 0
    %3116 = vmatpush2.bf16.msra.mxu0 0
    %3117 = vmatprep.subr.bf16.mxu0 0
    %3118 = vmatpush2.bf16.msra.mxu0 0
    %3119 = vmatprep.subr.bf16.mxu0 0
    %3120 = vmatpush2.bf16.msra.mxu0 0
    %3121 = vmatprep.subr.bf16.mxu0 0
    %3122 = vmatpush2.bf16.msra.mxu0 0
    %3123 = vmatprep.subr.bf16.mxu0 0
    %3124 = vmatpush2.bf16.msra.mxu0 0
    %3125 = vmatprep.subr.bf16.mxu0 0
    %3126 = vmatpush2.bf16.msra.mxu0 0
    %3127 = vmatprep.mubr.bf16.mxu0 0
    %3128 = vmatmul.mubr.bf16.gmra.mxu0 %v3090
    %v3129 = vpop.f32.mrf.mxu0
    %v3130 = vadd.f32 0.0, %v3129
    %v3131 = vpop.f32.mrf.mxu0
    %v3132 = vpop.f32.mrf.mxu0
    %v3133 = vpop.f32.mrf.mxu0
    %3134 = vdwg.mxu0
    %v3135 = vpack.c.bf16 %v2854, %v2808
    %v3136 = vpack.c.bf16 %v2946, %v2900
    %v3137 = vpack.c.bf16 %v3038, %v2992
    %v3138 = vpack.c.bf16 %v3130, %v3084
    %s3139 = scalar_lea.vmem %s4, 64
    %v3140 = vld [vmem:[%s3139] sm:$0xf]
    %v3141 = vld [vmem:[%s3139 + $0x4] sm:$0xf]
    %v3142 = vld [vmem:[%s3139 + $0x8] sm:$0xf]
    %v3143 = vld [vmem:[%s3139 + $0xc] sm:$0xf]
    %v3144 = vld [vmem:[%s3139 + $0x10] sm:$0xf]
    %v3145 = vld [vmem:[%s3139 + $0x14] sm:$0xf]
    %v3146 = vld [vmem:[%s3139 + $0x18] sm:$0xf]
    %v3147 = vld [vmem:[%s3139 + $0x1c] sm:$0xf]
    %v3148 = vld [vmem:[%s3139 + $0x20] sm:$0xf]
    %v3149 = vld [vmem:[%s3139 + $0x24] sm:$0xf]
    %v3150 = vld [vmem:[%s3139 + $0x28] sm:$0xf]
    %v3151 = vld [vmem:[%s3139 + $0x2c] sm:$0xf]
    %v3152 = vld [vmem:[%s3139 + $0x30] sm:$0xf]
    %v3153 = vld [vmem:[%s3139 + $0x34] sm:$0xf]
    %v3154 = vld [vmem:[%s3139 + $0x38] sm:$0xf]
    %v3155 = vld [vmem:[%s3139 + $0x3c] sm:$0xf]
    %s3156 = scalar_lea.vmem %s5, 1
    %v3157 = vld [vmem:[%s3156] sm:$0x1]
    %v3159 = vlaneseq
    %v3160 = vshrl.u32 %v3159, 7
    %v3161 = vsub.s32 0, %v3160
    %v3162 = vrot.slane %v3157, %v3161
    %v3180 = vunpack.c.l.b16 %v3140
    %v3181 = vunpack.c.l.b16 %v3141
    %v3182 = vunpack.c.l.b16 %v3142
    %v3183 = vunpack.c.l.b16 %v3143
    %v3184 = vunpack.c.l.b16 %v3144
    %v3185 = vunpack.c.l.b16 %v3145
    %v3186 = vunpack.c.l.b16 %v3146
    %v3187 = vunpack.c.l.b16 %v3147
    %v3188 = vunpack.c.l.b16 %v3148
    %v3189 = vunpack.c.l.b16 %v3149
    %v3190 = vunpack.c.l.b16 %v3150
    %v3191 = vunpack.c.l.b16 %v3151
    %v3192 = vunpack.c.l.b16 %v3152
    %v3193 = vunpack.c.l.b16 %v3153
    %v3194 = vunpack.c.l.b16 %v3154
    %v3195 = vunpack.c.l.b16 %v3155
    %v3196 = vpack.c.b16 %v3181, %v3180
    %v3197 = vpack.c.b16 %v3183, %v3182
    %v3198 = vpack.c.b16 %v3185, %v3184
    %v3199 = vpack.c.b16 %v3187, %v3186
    %v3200 = vpack.c.b16 %v3189, %v3188
    %v3201 = vpack.c.b16 %v3191, %v3190
    %v3202 = vpack.c.b16 %v3193, %v3192
    %v3203 = vpack.c.b16 %v3195, %v3194
    %3212 = vmatprep.subr.bf16.mxu0 0
    %3213 = vmatpush1.bf16.msra.mxu0 %v3203
    %3214 = vmatprep.subr.bf16.mxu0 0
    %3215 = vmatpush1.bf16.msra.mxu0 %v3202
    %3216 = vmatprep.subr.bf16.mxu0 0
    %3217 = vmatpush1.bf16.msra.mxu0 %v3201
    %3218 = vmatprep.subr.bf16.mxu0 0
    %3219 = vmatpush1.bf16.msra.mxu0 %v3200
    %3220 = vmatprep.subr.bf16.mxu0 0
    %3221 = vmatpush1.bf16.msra.mxu0 %v3199
    %3222 = vmatprep.subr.bf16.mxu0 0
    %3223 = vmatpush1.bf16.msra.mxu0 %v3198
    %3224 = vmatprep.subr.bf16.mxu0 0
    %3225 = vmatpush1.bf16.msra.mxu0 %v3197
    %3226 = vmatprep.subr.bf16.mxu0 0
    %3227 = vmatpush1.bf16.msra.mxu0 %v3196
    %3228 = vmatprep.subr.bf16.mxu0 0
    %3229 = vmatpush2.bf16.msra.mxu0 0
    %3230 = vmatprep.subr.bf16.mxu0 0
    %3231 = vmatpush2.bf16.msra.mxu0 0
    %3232 = vmatprep.subr.bf16.mxu0 0
    %3233 = vmatpush2.bf16.msra.mxu0 0
    %3234 = vmatprep.subr.bf16.mxu0 0
    %3235 = vmatpush2.bf16.msra.mxu0 0
    %3236 = vmatprep.subr.bf16.mxu0 0
    %3237 = vmatpush2.bf16.msra.mxu0 0
    %3238 = vmatprep.subr.bf16.mxu0 0
    %3239 = vmatpush2.bf16.msra.mxu0 0
    %3240 = vmatprep.subr.bf16.mxu0 0
    %3241 = vmatpush2.bf16.msra.mxu0 0
    %3242 = vmatprep.subr.bf16.mxu0 0
    %3243 = vmatpush2.bf16.msra.mxu0 0
    %3244 = vmatprep.mubr.bf16.mxu0 0
    %3245 = vmatmul.mubr.bf16.gmra.mxu0 %v3135
    %v3246 = vpop.f32.mrf.mxu0
    %v3247 = vadd.f32 %v3162, %v3246
    %v3248 = vpop.f32.mrf.mxu0
    %v3249 = vpop.f32.mrf.mxu0
    %v3250 = vadd.f32 %v3162, %v3249
    %v3251 = vpop.f32.mrf.mxu0
    %3252 = vmatprep.mubr.bf16.mxu0 0
    %3253 = vmatmul.mubr.bf16.gmra.mxu0 %v3136
    %v3254 = vpop.f32.mrf.mxu0
    %v3255 = vadd.f32 %v3162, %v3254
    %v3256 = vpop.f32.mrf.mxu0
    %v3257 = vpop.f32.mrf.mxu0
    %v3258 = vadd.f32 %v3162, %v3257
    %v3259 = vpop.f32.mrf.mxu0
    %3260 = vmatprep.mubr.bf16.mxu0 0
    %3261 = vmatmul.mubr.bf16.gmra.mxu0 %v3137
    %v3262 = vpop.f32.mrf.mxu0
    %v3263 = vadd.f32 %v3162, %v3262
    %v3264 = vpop.f32.mrf.mxu0
    %v3265 = vpop.f32.mrf.mxu0
    %v3266 = vadd.f32 %v3162, %v3265
    %v3267 = vpop.f32.mrf.mxu0
    %3268 = vmatprep.mubr.bf16.mxu0 0
    %3269 = vmatmul.mubr.bf16.gmra.mxu0 %v3138
    %v3270 = vpop.f32.mrf.mxu0
    %v3271 = vadd.f32 %v3162, %v3270
    %v3272 = vpop.f32.mrf.mxu0
    %v3273 = vpop.f32.mrf.mxu0
    %v3274 = vadd.f32 %v3162, %v3273
    %v3275 = vpop.f32.mrf.mxu0
    %3276 = vdwg.mxu0
    %s3277 = scalar_lea.vmem %s6, 1
    %v3278 = vld [vmem:[%s3277] sm:$0x1]
    %s3279 = scalar_lea.vmem %s7, 1
    %v3280 = vld [vmem:[%s3279] sm:$0x1]
    %3281 = vadd.xlane.f32.xlu0 %v3247
    %v3282 = vpop.xlane.xlu0 %3281
    %3283 = vadd.xlane.f32.xlu0 %v3250
    %v3284 = vpop.xlane.xlu0 %3283
    %3285 = vadd.xlane.f32.xlu0 %v3255
    %v3286 = vpop.xlane.xlu0 %3285
    %3287 = vadd.xlane.f32.xlu0 %v3258
    %v3288 = vpop.xlane.xlu0 %3287
    %3289 = vadd.xlane.f32.xlu0 %v3263
    %v3290 = vpop.xlane.xlu0 %3289
    %3291 = vadd.xlane.f32.xlu0 %v3266
    %v3292 = vpop.xlane.xlu0 %3291
    %3293 = vadd.xlane.f32.xlu0 %v3271
    %v3294 = vpop.xlane.xlu0 %3293
    %3295 = vadd.xlane.f32.xlu0 %v3274
    %v3296 = vpop.xlane.xlu0 %3295
    %v3297 = vmul.f32 %v3282, %v1483
    %v3298 = vmul.f32 %v3284, %v1483
    %v3299 = vmul.f32 %v3286, %v1483
    %v3300 = vmul.f32 %v3288, %v1483
    %v3301 = vmul.f32 %v3290, %v1483
    %v3302 = vmul.f32 %v3292, %v1483
    %v3303 = vmul.f32 %v3294, %v1483
    %v3304 = vmul.f32 %v3296, %v1483
    %v3305 = vsub.f32 %v3247, %v3297
    %v3306 = vsub.f32 %v3250, %v3298
    %v3307 = vsub.f32 %v3255, %v3299
    %v3308 = vsub.f32 %v3258, %v3300
    %v3309 = vsub.f32 %v3263, %v3301
    %v3310 = vsub.f32 %v3266, %v3302
    %v3311 = vsub.f32 %v3271, %v3303
    %v3312 = vsub.f32 %v3274, %v3304
    %v3313 = vmul.f32 %v3305, %v3305
    %v3314 = vmul.f32 %v3306, %v3306
    %v3315 = vmul.f32 %v3307, %v3307
    %v3316 = vmul.f32 %v3308, %v3308
    %v3317 = vmul.f32 %v3309, %v3309
    %v3318 = vmul.f32 %v3310, %v3310
    %v3319 = vmul.f32 %v3311, %v3311
    %v3320 = vmul.f32 %v3312, %v3312
    %3321 = vadd.xlane.f32.xlu0 %v3313
    %v3322 = vpop.xlane.xlu0 %3321
    %3323 = vadd.xlane.f32.xlu0 %v3314
    %v3324 = vpop.xlane.xlu0 %3323
    %3325 = vadd.xlane.f32.xlu0 %v3315
    %v3326 = vpop.xlane.xlu0 %3325
    %3327 = vadd.xlane.f32.xlu0 %v3316
    %v3328 = vpop.xlane.xlu0 %3327
    %3329 = vadd.xlane.f32.xlu0 %v3317
    %v3330 = vpop.xlane.xlu0 %3329
    %3331 = vadd.xlane.f32.xlu0 %v3318
    %v3332 = vpop.xlane.xlu0 %3331
    %3333 = vadd.xlane.f32.xlu0 %v3319
    %v3334 = vpop.xlane.xlu0 %3333
    %3335 = vadd.xlane.f32.xlu0 %v3320
    %v3336 = vpop.xlane.xlu0 %3335
    %v3337 = vmul.f32 %v3322, %v1483
    %v3338 = vmul.f32 %v3324, %v1483
    %v3339 = vmul.f32 %v3326, %v1483
    %v3340 = vmul.f32 %v3328, %v1483
    %v3341 = vmul.f32 %v3330, %v1483
    %v3342 = vmul.f32 %v3332, %v1483
    %v3343 = vmul.f32 %v3334, %v1483
    %v3344 = vmul.f32 %v3336, %v1483
    %v3345 = vadd.f32 %v3337, 1e-05
    %v3346 = vadd.f32 %v3338, 1e-05
    %v3347 = vadd.f32 %v3339, 1e-05
    %v3348 = vadd.f32 %v3340, 1e-05
    %v3349 = vadd.f32 %v3341, 1e-05
    %v3350 = vadd.f32 %v3342, 1e-05
    %v3351 = vadd.f32 %v3343, 1e-05
    %v3352 = vadd.f32 %v3344, 1e-05
    %v3353 = vrsqrt.pop %v3345
    %v3354 = vrsqrt.pop %v3346
    %v3355 = vrsqrt.pop %v3347
    %v3356 = vrsqrt.pop %v3348
    %v3357 = vrsqrt.pop %v3349
    %v3358 = vrsqrt.pop %v3350
    %v3359 = vrsqrt.pop %v3351
    %v3360 = vrsqrt.pop %v3352
    %v3361 = vmul.f32 %v3305, %v3353
    %v3362 = vmul.f32 %v3306, %v3354
    %v3363 = vmul.f32 %v3307, %v3355
    %v3364 = vmul.f32 %v3308, %v3356
    %v3365 = vmul.f32 %v3309, %v3357
    %v3366 = vmul.f32 %v3310, %v3358
    %v3367 = vmul.f32 %v3311, %v3359
    %v3368 = vmul.f32 %v3312, %v3360
    %v3370 = vlaneseq
    %v3371 = vshrl.u32 %v3370, 7
    %v3372 = vsub.s32 0, %v3371
    %v3373 = vrot.slane %v3278, %v3372
    %v3375 = vmul.f32 %v3361, %v3373
    %v3376 = vmul.f32 %v3362, %v3373
    %v3377 = vmul.f32 %v3363, %v3373
    %v3378 = vmul.f32 %v3364, %v3373
    %v3379 = vmul.f32 %v3365, %v3373
    %v3380 = vmul.f32 %v3366, %v3373
    %v3381 = vmul.f32 %v3367, %v3373
    %v3382 = vmul.f32 %v3368, %v3373
    %v3384 = vlaneseq
    %v3385 = vshrl.u32 %v3384, 7
    %v3386 = vsub.s32 0, %v3385
    %v3387 = vrot.slane %v3280, %v3386
    %v3389 = vadd.f32 %v3375, %v3387
    %v3390 = vadd.f32 %v3376, %v3387
    %v3391 = vadd.f32 %v3377, %v3387
    %v3392 = vadd.f32 %v3378, %v3387
    %v3393 = vadd.f32 %v3379, %v3387
    %v3394 = vadd.f32 %v3380, %v3387
    %v3395 = vadd.f32 %v3381, %v3387
    %v3396 = vadd.f32 %v3382, %v3387
    %v3397 = vpack.c.bf16 %v3390, %v3389
    %v3398 = vpack.c.bf16 %v3392, %v3391
    %v3399 = vpack.c.bf16 %v3394, %v3393
    %v3400 = vpack.c.bf16 %v3396, %v3395
    %s3401 = scalar_lea.vmem [#allocation4], 64
    %v3402 = vld [vmem:[%s3401] sm:$0xf]
    %v3403 = vld [vmem:[%s3401 + $0x4] sm:$0xf]
    %v3404 = vld [vmem:[%s3401 + $0x8] sm:$0xf]
    %v3405 = vld [vmem:[%s3401 + $0xc] sm:$0xf]
    %v3406 = vld [vmem:[%s3401 + $0x10] sm:$0xf]
    %v3407 = vld [vmem:[%s3401 + $0x14] sm:$0xf]
    %v3408 = vld [vmem:[%s3401 + $0x18] sm:$0xf]
    %v3409 = vld [vmem:[%s3401 + $0x1c] sm:$0xf]
    %v3410 = vld [vmem:[%s3401 + $0x20] sm:$0xf]
    %v3411 = vld [vmem:[%s3401 + $0x24] sm:$0xf]
    %v3412 = vld [vmem:[%s3401 + $0x28] sm:$0xf]
    %v3413 = vld [vmem:[%s3401 + $0x2c] sm:$0xf]
    %v3414 = vld [vmem:[%s3401 + $0x30] sm:$0xf]
    %v3415 = vld [vmem:[%s3401 + $0x34] sm:$0xf]
    %v3416 = vld [vmem:[%s3401 + $0x38] sm:$0xf]
    %v3417 = vld [vmem:[%s3401 + $0x3c] sm:$0xf]
    %s3418 = scalar_lea.vmem %s9, 1
    %v3419 = vld [vmem:[%s3418] sm:$0x1]
    %v3421 = vlaneseq
    %v3422 = vshrl.u32 %v3421, 7
    %v3423 = vsub.s32 0, %v3422
    %v3424 = vrot.slane %v3419, %v3423
    %v3442 = vunpack.c.l.b16 %v3402
    %v3443 = vunpack.c.l.b16 %v3403
    %v3444 = vunpack.c.l.b16 %v3404
    %v3445 = vunpack.c.l.b16 %v3405
    %v3446 = vunpack.c.l.b16 %v3406
    %v3447 = vunpack.c.l.b16 %v3407
    %v3448 = vunpack.c.l.b16 %v3408
    %v3449 = vunpack.c.l.b16 %v3409
    %v3450 = vunpack.c.l.b16 %v3410
    %v3451 = vunpack.c.l.b16 %v3411
    %v3452 = vunpack.c.l.b16 %v3412
    %v3453 = vunpack.c.l.b16 %v3413
    %v3454 = vunpack.c.l.b16 %v3414
    %v3455 = vunpack.c.l.b16 %v3415
    %v3456 = vunpack.c.l.b16 %v3416
    %v3457 = vunpack.c.l.b16 %v3417
    %v3458 = vpack.c.b16 %v3443, %v3442
    %v3459 = vpack.c.b16 %v3445, %v3444
    %v3460 = vpack.c.b16 %v3447, %v3446
    %v3461 = vpack.c.b16 %v3449, %v3448
    %v3462 = vpack.c.b16 %v3451, %v3450
    %v3463 = vpack.c.b16 %v3453, %v3452
    %v3464 = vpack.c.b16 %v3455, %v3454
    %v3465 = vpack.c.b16 %v3457, %v3456
    %3474 = vmatprep.subr.bf16.mxu0 0
    %3475 = vmatpush1.bf16.msra.mxu0 %v3465
    %3476 = vmatprep.subr.bf16.mxu0 0
    %3477 = vmatpush1.bf16.msra.mxu0 %v3464
    %3478 = vmatprep.subr.bf16.mxu0 0
    %3479 = vmatpush1.bf16.msra.mxu0 %v3463
    %3480 = vmatprep.subr.bf16.mxu0 0
    %3481 = vmatpush1.bf16.msra.mxu0 %v3462
    %3482 = vmatprep.subr.bf16.mxu0 0
    %3483 = vmatpush1.bf16.msra.mxu0 %v3461
    %3484 = vmatprep.subr.bf16.mxu0 0
    %3485 = vmatpush1.bf16.msra.mxu0 %v3460
    %3486 = vmatprep.subr.bf16.mxu0 0
    %3487 = vmatpush1.bf16.msra.mxu0 %v3459
    %3488 = vmatprep.subr.bf16.mxu0 0
    %3489 = vmatpush1.bf16.msra.mxu0 %v3458
    %3490 = vmatprep.subr.bf16.mxu0 0
    %3491 = vmatpush2.bf16.msra.mxu0 0
    %3492 = vmatprep.subr.bf16.mxu0 0
    %3493 = vmatpush2.bf16.msra.mxu0 0
    %3494 = vmatprep.subr.bf16.mxu0 0
    %3495 = vmatpush2.bf16.msra.mxu0 0
    %3496 = vmatprep.subr.bf16.mxu0 0
    %3497 = vmatpush2.bf16.msra.mxu0 0
    %3498 = vmatprep.subr.bf16.mxu0 0
    %3499 = vmatpush2.bf16.msra.mxu0 0
    %3500 = vmatprep.subr.bf16.mxu0 0
    %3501 = vmatpush2.bf16.msra.mxu0 0
    %3502 = vmatprep.subr.bf16.mxu0 0
    %3503 = vmatpush2.bf16.msra.mxu0 0
    %3504 = vmatprep.subr.bf16.mxu0 0
    %3505 = vmatpush2.bf16.msra.mxu0 0
    %3506 = vmatprep.mubr.bf16.mxu0 0
    %3507 = vmatmul.mubr.bf16.gmra.mxu0 %v3397
    %v3508 = vpop.f32.mrf.mxu0
    %v3509 = vadd.f32 %v3424, %v3508
    %v3510 = vpop.f32.mrf.mxu0
    %v3511 = vpop.f32.mrf.mxu0
    %v3512 = vadd.f32 %v3424, %v3511
    %v3513 = vpop.f32.mrf.mxu0
    %3514 = vmatprep.mubr.bf16.mxu0 0
    %3515 = vmatmul.mubr.bf16.gmra.mxu0 %v3398
    %v3516 = vpop.f32.mrf.mxu0
    %v3517 = vadd.f32 %v3424, %v3516
    %v3518 = vpop.f32.mrf.mxu0
    %v3519 = vpop.f32.mrf.mxu0
    %v3520 = vadd.f32 %v3424, %v3519
    %v3521 = vpop.f32.mrf.mxu0
    %3522 = vmatprep.mubr.bf16.mxu0 0
    %3523 = vmatmul.mubr.bf16.gmra.mxu0 %v3399
    %v3524 = vpop.f32.mrf.mxu0
    %v3525 = vadd.f32 %v3424, %v3524
    %v3526 = vpop.f32.mrf.mxu0
    %v3527 = vpop.f32.mrf.mxu0
    %v3528 = vadd.f32 %v3424, %v3527
    %v3529 = vpop.f32.mrf.mxu0
    %3530 = vmatprep.mubr.bf16.mxu0 0
    %3531 = vmatmul.mubr.bf16.gmra.mxu0 %v3400
    %v3532 = vpop.f32.mrf.mxu0
    %v3533 = vadd.f32 %v3424, %v3532
    %v3534 = vpop.f32.mrf.mxu0
    %v3535 = vpop.f32.mrf.mxu0
    %v3536 = vadd.f32 %v3424, %v3535
    %v3537 = vpop.f32.mrf.mxu0
    %3538 = vdwg.mxu0
    %v3539 = vmax.f32 %v3509, 0.0
    %v3540 = vmax.f32 %v3512, 0.0
    %v3541 = vmax.f32 %v3517, 0.0
    %v3542 = vmax.f32 %v3520, 0.0
    %v3543 = vmax.f32 %v3525, 0.0
    %v3544 = vmax.f32 %v3528, 0.0
    %v3545 = vmax.f32 %v3533, 0.0
    %v3546 = vmax.f32 %v3536, 0.0
    %v3547 = vpack.c.bf16 %v3540, %v3539
    %v3548 = vpack.c.bf16 %v3542, %v3541
    %v3549 = vpack.c.bf16 %v3544, %v3543
    %v3550 = vpack.c.bf16 %v3546, %v3545
    %s3551 = scalar_lea.vmem [#allocation6], 64
    %v3552 = vld [vmem:[%s3551] sm:$0xf]
    %v3553 = vld [vmem:[%s3551 + $0x4] sm:$0xf]
    %v3554 = vld [vmem:[%s3551 + $0x8] sm:$0xf]
    %v3555 = vld [vmem:[%s3551 + $0xc] sm:$0xf]
    %v3556 = vld [vmem:[%s3551 + $0x10] sm:$0xf]
    %v3557 = vld [vmem:[%s3551 + $0x14] sm:$0xf]
    %v3558 = vld [vmem:[%s3551 + $0x18] sm:$0xf]
    %v3559 = vld [vmem:[%s3551 + $0x1c] sm:$0xf]
    %v3560 = vld [vmem:[%s3551 + $0x20] sm:$0xf]
    %v3561 = vld [vmem:[%s3551 + $0x24] sm:$0xf]
    %v3562 = vld [vmem:[%s3551 + $0x28] sm:$0xf]
    %v3563 = vld [vmem:[%s3551 + $0x2c] sm:$0xf]
    %v3564 = vld [vmem:[%s3551 + $0x30] sm:$0xf]
    %v3565 = vld [vmem:[%s3551 + $0x34] sm:$0xf]
    %v3566 = vld [vmem:[%s3551 + $0x38] sm:$0xf]
    %v3567 = vld [vmem:[%s3551 + $0x3c] sm:$0xf]
    %s3568 = scalar_lea.vmem %s11, 1
    %v3569 = vld [vmem:[%s3568] sm:$0x1]
    %v3571 = vlaneseq
    %v3572 = vshrl.u32 %v3571, 7
    %v3573 = vsub.s32 0, %v3572
    %v3574 = vrot.slane %v3569, %v3573
    %v3592 = vunpack.c.l.b16 %v3552
    %v3593 = vunpack.c.l.b16 %v3553
    %v3594 = vunpack.c.l.b16 %v3554
    %v3595 = vunpack.c.l.b16 %v3555
    %v3596 = vunpack.c.l.b16 %v3556
    %v3597 = vunpack.c.l.b16 %v3557
    %v3598 = vunpack.c.l.b16 %v3558
    %v3599 = vunpack.c.l.b16 %v3559
    %v3600 = vunpack.c.l.b16 %v3560
    %v3601 = vunpack.c.l.b16 %v3561
    %v3602 = vunpack.c.l.b16 %v3562
    %v3603 = vunpack.c.l.b16 %v3563
    %v3604 = vunpack.c.l.b16 %v3564
    %v3605 = vunpack.c.l.b16 %v3565
    %v3606 = vunpack.c.l.b16 %v3566
    %v3607 = vunpack.c.l.b16 %v3567
    %v3608 = vpack.c.b16 %v3593, %v3592
    %v3609 = vpack.c.b16 %v3595, %v3594
    %v3610 = vpack.c.b16 %v3597, %v3596
    %v3611 = vpack.c.b16 %v3599, %v3598
    %v3612 = vpack.c.b16 %v3601, %v3600
    %v3613 = vpack.c.b16 %v3603, %v3602
    %v3614 = vpack.c.b16 %v3605, %v3604
    %v3615 = vpack.c.b16 %v3607, %v3606
    %3624 = vmatprep.subr.bf16.mxu0 0
    %3625 = vmatpush1.bf16.msra.mxu0 %v3615
    %3626 = vmatprep.subr.bf16.mxu0 0
    %3627 = vmatpush1.bf16.msra.mxu0 %v3614
    %3628 = vmatprep.subr.bf16.mxu0 0
    %3629 = vmatpush1.bf16.msra.mxu0 %v3613
    %3630 = vmatprep.subr.bf16.mxu0 0
    %3631 = vmatpush1.bf16.msra.mxu0 %v3612
    %3632 = vmatprep.subr.bf16.mxu0 0
    %3633 = vmatpush1.bf16.msra.mxu0 %v3611
    %3634 = vmatprep.subr.bf16.mxu0 0
    %3635 = vmatpush1.bf16.msra.mxu0 %v3610
    %3636 = vmatprep.subr.bf16.mxu0 0
    %3637 = vmatpush1.bf16.msra.mxu0 %v3609
    %3638 = vmatprep.subr.bf16.mxu0 0
    %3639 = vmatpush1.bf16.msra.mxu0 %v3608
    %3640 = vmatprep.subr.bf16.mxu0 0
    %3641 = vmatpush2.bf16.msra.mxu0 0
    %3642 = vmatprep.subr.bf16.mxu0 0
    %3643 = vmatpush2.bf16.msra.mxu0 0
    %3644 = vmatprep.subr.bf16.mxu0 0
    %3645 = vmatpush2.bf16.msra.mxu0 0
    %3646 = vmatprep.subr.bf16.mxu0 0
    %3647 = vmatpush2.bf16.msra.mxu0 0
    %3648 = vmatprep.subr.bf16.mxu0 0
    %3649 = vmatpush2.bf16.msra.mxu0 0
    %3650 = vmatprep.subr.bf16.mxu0 0
    %3651 = vmatpush2.bf16.msra.mxu0 0
    %3652 = vmatprep.subr.bf16.mxu0 0
    %3653 = vmatpush2.bf16.msra.mxu0 0
    %3654 = vmatprep.subr.bf16.mxu0 0
    %3655 = vmatpush2.bf16.msra.mxu0 0
    %3656 = vmatprep.mubr.bf16.mxu0 0
    %3657 = vmatmul.mubr.bf16.gmra.mxu0 %v3547
    %v3658 = vpop.f32.mrf.mxu0
    %v3659 = vadd.f32 %v3574, %v3658
    %v3660 = vpop.f32.mrf.mxu0
    %v3661 = vpop.f32.mrf.mxu0
    %v3662 = vadd.f32 %v3574, %v3661
    %v3663 = vpop.f32.mrf.mxu0
    %3664 = vmatprep.mubr.bf16.mxu0 0
    %3665 = vmatmul.mubr.bf16.gmra.mxu0 %v3548
    %v3666 = vpop.f32.mrf.mxu0
    %v3667 = vadd.f32 %v3574, %v3666
    %v3668 = vpop.f32.mrf.mxu0
    %v3669 = vpop.f32.mrf.mxu0
    %v3670 = vadd.f32 %v3574, %v3669
    %v3671 = vpop.f32.mrf.mxu0
    %3672 = vmatprep.mubr.bf16.mxu0 0
    %3673 = vmatmul.mubr.bf16.gmra.mxu0 %v3549
    %v3674 = vpop.f32.mrf.mxu0
    %v3675 = vadd.f32 %v3574, %v3674
    %v3676 = vpop.f32.mrf.mxu0
    %v3677 = vpop.f32.mrf.mxu0
    %v3678 = vadd.f32 %v3574, %v3677
    %v3679 = vpop.f32.mrf.mxu0
    %3680 = vmatprep.mubr.bf16.mxu0 0
    %3681 = vmatmul.mubr.bf16.gmra.mxu0 %v3550
    %v3682 = vpop.f32.mrf.mxu0
    %v3683 = vadd.f32 %v3574, %v3682
    %v3684 = vpop.f32.mrf.mxu0
    %v3685 = vpop.f32.mrf.mxu0
    %v3686 = vadd.f32 %v3574, %v3685
    %v3687 = vpop.f32.mrf.mxu0
    %3688 = vdwg.mxu0
    %v3689 = vadd.f32 %v3389, %v3659
    %v3690 = vadd.f32 %v3390, %v3662
    %v3691 = vadd.f32 %v3391, %v3667
    %v3692 = vadd.f32 %v3392, %v3670
    %v3693 = vadd.f32 %v3393, %v3675
    %v3694 = vadd.f32 %v3394, %v3678
    %v3695 = vadd.f32 %v3395, %v3683
    %v3696 = vadd.f32 %v3396, %v3686
    %s3697 = scalar_lea.vmem [#allocation7], 1
    %v3698 = vld [vmem:[%s3697] sm:$0x1]
    %s3699 = scalar_lea.vmem [#allocation9], 1
    %v3700 = vld [vmem:[%s3699] sm:$0x1]
    %3701 = vadd.xlane.f32.xlu0 %v3689
    %v3702 = vpop.xlane.xlu0 %3701
    %3703 = vadd.xlane.f32.xlu0 %v3690
    %v3704 = vpop.xlane.xlu0 %3703
    %3705 = vadd.xlane.f32.xlu0 %v3691
    %v3706 = vpop.xlane.xlu0 %3705
    %3707 = vadd.xlane.f32.xlu0 %v3692
    %v3708 = vpop.xlane.xlu0 %3707
    %3709 = vadd.xlane.f32.xlu0 %v3693
    %v3710 = vpop.xlane.xlu0 %3709
    %3711 = vadd.xlane.f32.xlu0 %v3694
    %v3712 = vpop.xlane.xlu0 %3711
    %3713 = vadd.xlane.f32.xlu0 %v3695
    %v3714 = vpop.xlane.xlu0 %3713
    %3715 = vadd.xlane.f32.xlu0 %v3696
    %v3716 = vpop.xlane.xlu0 %3715
    %v3717 = vmul.f32 %v3702, %v1483
    %v3718 = vmul.f32 %v3704, %v1483
    %v3719 = vmul.f32 %v3706, %v1483
    %v3720 = vmul.f32 %v3708, %v1483
    %v3721 = vmul.f32 %v3710, %v1483
    %v3722 = vmul.f32 %v3712, %v1483
    %v3723 = vmul.f32 %v3714, %v1483
    %v3724 = vmul.f32 %v3716, %v1483
    %v3725 = vsub.f32 %v3689, %v3717
    %v3726 = vsub.f32 %v3690, %v3718
    %v3727 = vsub.f32 %v3691, %v3719
    %v3728 = vsub.f32 %v3692, %v3720
    %v3729 = vsub.f32 %v3693, %v3721
    %v3730 = vsub.f32 %v3694, %v3722
    %v3731 = vsub.f32 %v3695, %v3723
    %v3732 = vsub.f32 %v3696, %v3724
    %v3733 = vmul.f32 %v3725, %v3725
    %v3734 = vmul.f32 %v3726, %v3726
    %v3735 = vmul.f32 %v3727, %v3727
    %v3736 = vmul.f32 %v3728, %v3728
    %v3737 = vmul.f32 %v3729, %v3729
    %v3738 = vmul.f32 %v3730, %v3730
    %v3739 = vmul.f32 %v3731, %v3731
    %v3740 = vmul.f32 %v3732, %v3732
    %3741 = vadd.xlane.f32.xlu0 %v3733
    %v3742 = vpop.xlane.xlu0 %3741
    %3743 = vadd.xlane.f32.xlu0 %v3734
    %v3744 = vpop.xlane.xlu0 %3743
    %3745 = vadd.xlane.f32.xlu0 %v3735
    %v3746 = vpop.xlane.xlu0 %3745
    %3747 = vadd.xlane.f32.xlu0 %v3736
    %v3748 = vpop.xlane.xlu0 %3747
    %3749 = vadd.xlane.f32.xlu0 %v3737
    %v3750 = vpop.xlane.xlu0 %3749
    %3751 = vadd.xlane.f32.xlu0 %v3738
    %v3752 = vpop.xlane.xlu0 %3751
    %3753 = vadd.xlane.f32.xlu0 %v3739
    %v3754 = vpop.xlane.xlu0 %3753
    %3755 = vadd.xlane.f32.xlu0 %v3740
    %v3756 = vpop.xlane.xlu0 %3755
    %v3757 = vmul.f32 %v3742, %v1483
    %v3758 = vmul.f32 %v3744, %v1483
    %v3759 = vmul.f32 %v3746, %v1483
    %v3760 = vmul.f32 %v3748, %v1483
    %v3761 = vmul.f32 %v3750, %v1483
    %v3762 = vmul.f32 %v3752, %v1483
    %v3763 = vmul.f32 %v3754, %v1483
    %v3764 = vmul.f32 %v3756, %v1483
    %v3765 = vadd.f32 %v3757, 1e-05
    %v3766 = vadd.f32 %v3758, 1e-05
    %v3767 = vadd.f32 %v3759, 1e-05
    %v3768 = vadd.f32 %v3760, 1e-05
    %v3769 = vadd.f32 %v3761, 1e-05
    %v3770 = vadd.f32 %v3762, 1e-05
    %v3771 = vadd.f32 %v3763, 1e-05
    %v3772 = vadd.f32 %v3764, 1e-05
    %v3773 = vrsqrt.pop %v3765
    %v3774 = vrsqrt.pop %v3766
    %v3775 = vrsqrt.pop %v3767
    %v3776 = vrsqrt.pop %v3768
    %v3777 = vrsqrt.pop %v3769
    %v3778 = vrsqrt.pop %v3770
    %v3779 = vrsqrt.pop %v3771
    %v3780 = vrsqrt.pop %v3772
    %v3781 = vmul.f32 %v3725, %v3773
    %v3782 = vmul.f32 %v3726, %v3774
    %v3783 = vmul.f32 %v3727, %v3775
    %v3784 = vmul.f32 %v3728, %v3776
    %v3785 = vmul.f32 %v3729, %v3777
    %v3786 = vmul.f32 %v3730, %v3778
    %v3787 = vmul.f32 %v3731, %v3779
    %v3788 = vmul.f32 %v3732, %v3780
    %v3790 = vlaneseq
    %v3791 = vshrl.u32 %v3790, 7
    %v3792 = vsub.s32 0, %v3791
    %v3793 = vrot.slane %v3698, %v3792
    %v3795 = vmul.f32 %v3781, %v3793
    %v3796 = vmul.f32 %v3782, %v3793
    %v3797 = vmul.f32 %v3783, %v3793
    %v3798 = vmul.f32 %v3784, %v3793
    %v3799 = vmul.f32 %v3785, %v3793
    %v3800 = vmul.f32 %v3786, %v3793
    %v3801 = vmul.f32 %v3787, %v3793
    %v3802 = vmul.f32 %v3788, %v3793
    %v3804 = vlaneseq
    %v3805 = vshrl.u32 %v3804, 7
    %v3806 = vsub.s32 0, %v3805
    %v3807 = vrot.slane %v3700, %v3806
    %v3809 = vadd.f32 %v3795, %v3807
    %v3810 = vadd.f32 %v3796, %v3807
    %v3811 = vadd.f32 %v3797, %v3807
    %v3812 = vadd.f32 %v3798, %v3807
    %v3813 = vadd.f32 %v3799, %v3807
    %v3814 = vadd.f32 %v3800, %v3807
    %v3815 = vadd.f32 %v3801, %v3807
    %v3816 = vadd.f32 %v3802, %v3807
    %3817 = vst [vmem:[%s14] sm:$0xff] %v3809
    %3818 = vst [vmem:[%s14 + $0x8] sm:$0xff] %v3810
    %3819 = vst [vmem:[%s14 + $0x10] sm:$0xff] %v3811
    %3820 = vst [vmem:[%s14 + $0x18] sm:$0xff] %v3812
    %3821 = vst [vmem:[%s14 + $0x20] sm:$0xff] %v3813
    %3822 = vst [vmem:[%s14 + $0x28] sm:$0xff] %v3814
    %3823 = vst [vmem:[%s14 + $0x30] sm:$0xff] %v3815
    %3824 = vst [vmem:[%s14 + $0x38] sm:$0xff] %v3816
    // Predicated region
    $region78: #{transformer_forward.1} parent=1 // pred_check
      _
    $region79: #{transformer_forward.1} parent=1 // pred_check_branch
      %3826 = sbr.rel (0) target = $region81
    $region80: #{transformer_forward.1} parent=1 // pred_region
      _
    $region81: #{transformer_forward.1} parent=1 // pred_fallthru
      _
    // Predicated region
    $region82: #{transformer_forward.1} parent=1 // pred_check
      _
    $region83: #{transformer_forward.1} parent=1 // pred_check_branch
      %3828 = sbr.rel (0) target = $region85
    $region84: #{transformer_forward.1} parent=1 // pred_region
      _
    $region85: #{transformer_forward.1} parent=1 // pred_fallthru
      _
    %3829 = vsyncpa [#allocation3], 1
    %3830 = vsyncpa [#allocation5], 1
    %3831 = vsyncpa [#allocation8], 1

</llo_original>
